<compile_context>
chip_gen: v7x
topology: tpu7x:2x2x1
jax: 0.10.0
libtpu: 0.0.40
codegen_flags: <defaults>
</compile_context>

<pallas_src>
import functools

import numpy as np
import jax
import jax.numpy as jnp
from jax.experimental import pallas as pl
from jax.experimental.pallas import tpu as pltpu

LN_EPS = 1e-3   # matches torch LayerNorm(eps=0.001) in MLP and ImgChLayerNorm


# =============================================================================
# Fused kernel: entire ConvDecoder + entire MLP decoder
# =============================================================================
def _multi_decoder_kernel(x_ref, wlin_ref, blin_ref, d0_ref, d0mu_ref,
                          lnA_ref, lnB_ref, lng_ref, lnb_ref, d1_ref, b1_ref,
                          m0_ref, g0_ref, c0_ref, m1_ref, g1_ref, c1_ref,
                          mh_ref, bh_ref, img_ref, vec_ref):
    f32 = jnp.float32
    bf16 = jnp.bfloat16
    x = x_ref[...]                                       # (tm, feat) f32
    xb = x.astype(bf16)

    # ---------------- CNN path ----------------
    # Linear: (tm, feat) @ (feat, 512) + b
    h = jnp.dot(xb, wlin_ref[...], preferred_element_type=f32) + blin_ref[...]
    hb = h.astype(bf16)
    # ConvTranspose2d #0 (32->16, k=4, s=2, p=1, bias=False) as dense NHWC-flat matmul
    y = jnp.dot(hb, d0_ref[...], preferred_element_type=f32)        # (tm, 8*8*16)
    # ImgChLayerNorm(16): per-pixel channel LN via block-averaging matmuls.
    # Mean uses the init-time folded d0mu = deconv0_mat @ ln_gather (cheaper K=512);
    # variance gathers (y-mu)^2 with ln_gather; ln_scatter broadcasts back.
    mu_px = jnp.dot(hb, d0mu_ref[...], preferred_element_type=f32)  # (tm, 64)
    mu = jnp.dot(mu_px.astype(bf16), lnB_ref[...], preferred_element_type=f32)
    d = y - mu
    var_px = jnp.dot((d * d).astype(bf16), lnA_ref[...], preferred_element_type=f32)
    var = jnp.dot(var_px.astype(bf16), lnB_ref[...], preferred_element_type=f32)
    yn = d * jax.lax.rsqrt(var + LN_EPS) * lng_ref[...] + lnb_ref[...]
    act = yn * jax.nn.sigmoid(yn)                                    # SiLU (f32)
    # ConvTranspose2d #1 (16->3, bias=True); bias already carries the `+0.5`
    # (cnn_sigmoid=False).  Output is (tm, 768) -> unmasked lane-dense store.
    img_ref[...] = (jnp.dot(act.astype(bf16), d1_ref[...], preferred_element_type=f32)
                    + b1_ref[...])

    # ---------------- MLP path (weights ~5 KiB, kept f32) ----------------
    def ln_silu(hh, g, b):
        mu_ = jnp.mean(hh, axis=-1, keepdims=True)
        var_ = jnp.mean(jnp.square(hh - mu_), axis=-1, keepdims=True)
        hn = (hh - mu_) * jax.lax.rsqrt(var_ + LN_EPS) * g + b
        return hn * jax.nn.sigmoid(hn)

    v = ln_silu(jnp.dot(x, m0_ref[...], preferred_element_type=f32),
                g0_ref[...], c0_ref[...])
    v = ln_silu(jnp.dot(v, m1_ref[...], preferred_element_type=f32),
                g1_ref[...], c1_ref[...])
    # head padded to 128 lanes (zero columns) -> unmasked store; sliced in wrapper
    vec_ref[...] = jnp.tanh(jnp.dot(v, mh_ref[...], preferred_element_type=f32)
                            + bh_ref[...])


# =============================================================================
# Init-time (hoisted) weight-layout transforms
# =============================================================================
def _deconv_dense_matrix(w, hi, wi):
    """torch ConvTranspose2d(k=4, s=2, p=1) as a dense matrix on NHWC-flat vectors.

    w: (Cin, Cout, 4, 4) numpy, torch layout.  Returns D of shape
    (hi*wi*Cin, 2hi*2wi*Cout) with out_flat = in_flat @ D, flat order (h, w, c)."""
    cin, cout, k, _ = w.shape
    ho, wo = 2 * hi, 2 * wi
    D = np.zeros((hi * wi * cin, ho * wo * cout), np.float32)
    for oh in range(ho):
        for kh in range(k):
            t = oh + 1 - kh                   # ih = (oh + pad - kh) / stride
            if t % 2 != 0 or not (0 <= t // 2 < hi):
                continue
            ih = t // 2
            for ow in range(wo):
                for kw in range(k):
                    s = ow + 1 - kw
                    if s % 2 != 0 or not (0 <= s // 2 < wi):
                        continue
                    iw = s // 2
                    r = (ih * wi + iw) * cin
                    c = (oh * wo + ow) * cout
                    D[r:r + cin, c:c + cout] += w[:, :, kh, kw]
    return D


def init_params(key, feat_size=32, depth=16, minres=4, img_hw=16, img_ch=3,
                mlp_layers=2, mlp_units=32, vec_dim=8, head_pad=128):
    layer_num = int(np.log2(img_hw) - np.log2(minres))             # 2
    embed = minres * minres * depth * 2 ** (layer_num - 1)          # 512
    cin0 = embed // (minres * minres)                               # 32
    cout0 = cin0 // 2                                               # 16
    ks = list(jax.random.split(key, 12))

    def u(k, shape, fan_in):
        s = 1.0 / np.sqrt(np.float32(fan_in))
        return jax.random.uniform(k, shape, jnp.float32, -s, s)

    p = {}
    # ---------------- ConvDecoder ----------------
    # heavy matmul operands stored in bf16 (MXU-native, halves weight DMA)
    p["cnn_lin_w"] = u(ks[0], (feat_size, embed), feat_size).astype(jnp.bfloat16)
    p["cnn_lin_b"] = jnp.zeros((1, embed), jnp.float32)
    deconv0_w = np.asarray(u(ks[1], (cin0, cout0, 4, 4), cin0 * 16))     # bias=False
    deconv1_w = np.asarray(u(ks[2], (cout0, img_ch, 4, 4), cout0 * 16))
    deconv1_b = np.zeros((img_ch,), np.float32)
    h0 = w0 = minres                    # 4x4  -> 8x8
    h1 = w1 = 2 * minres                # 8x8  -> 16x16
    d0 = _deconv_dense_matrix(deconv0_w, h0, w0)                     # (512, 1024)
    d1 = _deconv_dense_matrix(deconv1_w, h1, w1)                     # (1024, 768)
    n_pos0 = (2 * h0) * (2 * w0)        # 64 pixels after deconv0
    n_pos1 = (2 * h1) * (2 * w1)        # 256 pixels after deconv1
    eye = np.eye(n_pos0, dtype=np.float32)
    ln_gather = np.kron(eye, np.ones((cout0, 1), np.float32) / cout0)    # (1024, 64)
    ln_scatter = np.kron(eye, np.ones((1, cout0), np.float32))           # (64, 1024)
    p["deconv0_mat"] = jnp.asarray(d0, jnp.bfloat16)
    p["d0mu_mat"] = jnp.asarray(d0 @ ln_gather, jnp.bfloat16)       # folded: deconv0 @ gather
    p["ln_gather"] = jnp.asarray(ln_gather, jnp.bfloat16)           # 1/16 exact in bf16
    p["ln_scatter"] = jnp.asarray(ln_scatter, jnp.bfloat16)
    p["deconv1_mat"] = jnp.asarray(d1, jnp.bfloat16)
    # ImgChLayerNorm(16) affine params tiled across pixels (lane layout (h,w,c))
    p["deconv0_ln_g"] = jnp.asarray(np.tile(np.ones((cout0,), np.float32), n_pos0)[None, :])
    p["deconv0_ln_b"] = jnp.asarray(np.tile(np.zeros((cout0,), np.float32), n_pos0)[None, :])
    # deconv1 bias tiled + folded `+0.5` (cnn_sigmoid=False)
    p["deconv1_bias"] = jnp.asarray(np.tile(deconv1_b, n_pos1)[None, :] + 0.5)   # (1, 768)
    # ---------------- MLP decoder ----------------
    d_in = feat_size
    for i in range(mlp_layers):
        p[f"mlp{i}_w"] = u(ks[3 + i], (d_in, mlp_units), d_in)          # bias=False
        p[f"mlp{i}_ln_g"] = jnp.ones((1, mlp_units), jnp.float32)
        p[f"mlp{i}_ln_b"] = jnp.zeros((1, mlp_units), jnp.float32)
        d_in = mlp_units
    # head zero-padded to 128 output lanes for unmasked stores; sliced in wrapper
    head_w = np.zeros((mlp_units, head_pad), np.float32)
    head_w[:, :vec_dim] = np.asarray(u(ks[8], (mlp_units, vec_dim), mlp_units))
    p["mlp_head_w"] = jnp.asarray(head_w)
    p["mlp_head_b"] = jnp.zeros((1, head_pad), jnp.float32)
    return p


# =============================================================================
# pallas_call wrapper (single launch for the whole MultiDecoder)
# =============================================================================
def _fused_forward(x, p, *, vec_dim=8, tile_m=256):
    M, F = x.shape
    img_dim = p["deconv1_mat"].shape[1]                 # 16*16*3 = 768
    vec_pad = p["mlp_head_w"].shape[1]                  # 128
    mp = -(-M // 8) * 8                                 # pad rows to sublane granule
    tm = min(tile_m, mp)
    if mp % tm:
        mp += tm - (mp % tm)
    if mp != M:
        x = jnp.pad(x, ((0, mp - M), (0, 0)))           # zero rows -> finite garbage, sliced off

    weights = (p["cnn_lin_w"], p["cnn_lin_b"],
               p["deconv0_mat"], p["d0mu_mat"], p["ln_gather"], p["ln_scatter"],
               p["deconv0_ln_g"], p["deconv0_ln_b"],
               p["deconv1_mat"], p["deconv1_bias"],
               p["mlp0_w"], p["mlp0_ln_g"], p["mlp0_ln_b"],
               p["mlp1_w"], p["mlp1_ln_g"], p["mlp1_ln_b"],
               p["mlp_head_w"], p["mlp_head_b"])

    def _rep(a):   # weights: whole array, same block every grid step (fetched once)
        # NOTE: a further VMEM lever (needed only for tile_m >= 512 on v7x) is
        # single-buffering these via pipeline_mode=pl.Buffered(1); with bf16
        # weights the default double-buffered footprint is already small.
        return pl.BlockSpec(a.shape, lambda i, _nd=a.ndim: (0,) * _nd)

    img, vec = pl.pallas_call(
        _multi_decoder_kernel,
        out_shape=(jax.ShapeDtypeStruct((mp, img_dim), jnp.float32),
                   jax.ShapeDtypeStruct((mp, vec_pad), jnp.float32)),
        grid=(mp // tm,),
        in_specs=[pl.BlockSpec((tm, F), lambda i: (i, 0))] + [_rep(a) for a in weights],
        out_specs=(pl.BlockSpec((tm, img_dim), lambda i: (i, 0)),
                   pl.BlockSpec((tm, vec_pad), lambda i: (i, 0))),
        compiler_params=pltpu.CompilerParams(
            dimension_semantics=("parallel",),          # shards row tiles across v7x's 2 TCs
            vmem_limit_bytes=32 * 1024 * 1024),         # ~16 MiB needed at tm=256; fits v5e/v6e/v7x
    )(x, *weights)
    return img[:M], vec[:M, :vec_dim]


# =============================================================================
# Forward
# =============================================================================
def multi_decoder_forward(params, features, img_hw=16, img_ch=3, vec_dim=8):
    # features: (B, T, feat) — matches torch `features.shape[:-1] + self._shape` handling
    B, T, F = features.shape
    x = features.reshape(B * T, F)

    # single fused pallas_call for both decoder heads
    img_flat, vec_flat = _fused_forward(x, params, vec_dim=vec_dim)

    # CNN path (cnn key "image"): NHWC-flat (B*T, H*W*C) -> (B, T, H, W, C)
    img_mean = img_flat.reshape(B, T, img_hw, img_hw, img_ch)   # == torch permute(0,1,3,4,2)

    # MLP path (mlp key "vector", dist='normal'); tanh applied in-kernel
    vec_mean = vec_flat.reshape(B, T, vec_dim)
    # fixed std=1.0 -> (max_std - min_std) * sigmoid(std + 2.0) + min_std
    vec_std = (1.0 - 0.1) * jax.nn.sigmoid(jnp.asarray(3.0, jnp.float32)) + 0.1

    # TODO(synk): torch distribution wrappers (MSEDist / ContDist(Normal, Independent))
    # have no Pallas equivalent; we return the distribution parameters instead.
    return {
        "image": {"mean": img_mean},                       # MSEDist mean, (B,T,H,W,C)
        "vector": {"mean": vec_mean, "std": vec_std},      # Normal(tanh(mean), std)
    }


# =============================================================================
# Main
# =============================================================================
if __name__ == "__main__":
    key = jax.random.PRNGKey(0)
    pkey, fkey = jax.random.split(key)
    params = init_params(pkey)
    features = jax.random.normal(fkey, (2, 3, 32), jnp.float32)   # (batch, time, feat)

    out = jax.jit(functools.partial(multi_decoder_forward, params))(features)
    out = jax.block_until_ready(out)

    assert out["image"]["mean"].shape == (2, 3, 16, 16, 3)
    assert out["vector"]["mean"].shape == (2, 3, 8)
    assert bool(jnp.all(jnp.isfinite(out["image"]["mean"])))
    assert bool(jnp.all(jnp.isfinite(out["vector"]["mean"])))
    print("KERNEL_OK")
</pallas_src>

<mosaic_0001>
module attributes {stable_mosaic.version = 11 : i64} {
  func.func @_multi_decoder_kernel(%arg0: i32, %arg1: memref<8x32xf32, #tpu.memory_space<vmem>>, %arg2: memref<32x512xbf16, #tpu.memory_space<vmem>>, %arg3: memref<1x512xf32, #tpu.memory_space<vmem>>, %arg4: memref<512x1024xbf16, #tpu.memory_space<vmem>>, %arg5: memref<512x64xbf16, #tpu.memory_space<vmem>>, %arg6: memref<1024x64xbf16, #tpu.memory_space<vmem>>, %arg7: memref<64x1024xbf16, #tpu.memory_space<vmem>>, %arg8: memref<1x1024xf32, #tpu.memory_space<vmem>>, %arg9: memref<1x1024xf32, #tpu.memory_space<vmem>>, %arg10: memref<1024x768xbf16, #tpu.memory_space<vmem>>, %arg11: memref<1x768xf32, #tpu.memory_space<vmem>>, %arg12: memref<32x32xf32, #tpu.memory_space<vmem>>, %arg13: memref<1x32xf32, #tpu.memory_space<vmem>>, %arg14: memref<1x32xf32, #tpu.memory_space<vmem>>, %arg15: memref<32x32xf32, #tpu.memory_space<vmem>>, %arg16: memref<1x32xf32, #tpu.memory_space<vmem>>, %arg17: memref<1x32xf32, #tpu.memory_space<vmem>>, %arg18: memref<32x128xf32, #tpu.memory_space<vmem>>, %arg19: memref<1x128xf32, #tpu.memory_space<vmem>>, %arg20: memref<8x768xf32, #tpu.memory_space<vmem>>, %arg21: memref<8x128xf32, #tpu.memory_space<vmem>>) attributes {dimension_semantics = [#tpu.dimension_semantics<parallel>], iteration_bounds = array<i64: 1>, scalar_prefetch = 0 : i64, scratch_operands = 0 : i64, tpu.core_type = #tpu.core_type<tc>, window_params = [{transform_indices = @transform_0, window_bounds = array<i64: 8, 32>}, {pipeline_mode = #tpu.pipeline_mode<synchronous>, transform_indices = @transform_1, window_bounds = array<i64: 32, 512>}, {pipeline_mode = #tpu.pipeline_mode<synchronous>, transform_indices = @transform_2, window_bounds = array<i64: 1, 512>}, {pipeline_mode = #tpu.pipeline_mode<synchronous>, transform_indices = @transform_3, window_bounds = array<i64: 512, 1024>}, {pipeline_mode = #tpu.pipeline_mode<synchronous>, transform_indices = @transform_4, window_bounds = array<i64: 512, 64>}, {pipeline_mode = #tpu.pipeline_mode<synchronous>, transform_indices = @transform_5, window_bounds = array<i64: 1024, 64>}, {pipeline_mode = #tpu.pipeline_mode<synchronous>, transform_indices = @transform_6, window_bounds = array<i64: 64, 1024>}, {pipeline_mode = #tpu.pipeline_mode<synchronous>, transform_indices = @transform_7, window_bounds = array<i64: 1, 1024>}, {pipeline_mode = #tpu.pipeline_mode<synchronous>, transform_indices = @transform_8, window_bounds = array<i64: 1, 1024>}, {pipeline_mode = #tpu.pipeline_mode<synchronous>, transform_indices = @transform_9, window_bounds = array<i64: 1024, 768>}, {pipeline_mode = #tpu.pipeline_mode<synchronous>, transform_indices = @transform_10, window_bounds = array<i64: 1, 768>}, {pipeline_mode = #tpu.pipeline_mode<synchronous>, transform_indices = @transform_11, window_bounds = array<i64: 32, 32>}, {pipeline_mode = #tpu.pipeline_mode<synchronous>, transform_indices = @transform_12, window_bounds = array<i64: 1, 32>}, {pipeline_mode = #tpu.pipeline_mode<synchronous>, transform_indices = @transform_13, window_bounds = array<i64: 1, 32>}, {pipeline_mode = #tpu.pipeline_mode<synchronous>, transform_indices = @transform_14, window_bounds = array<i64: 32, 32>}, {pipeline_mode = #tpu.pipeline_mode<synchronous>, transform_indices = @transform_15, window_bounds = array<i64: 1, 32>}, {pipeline_mode = #tpu.pipeline_mode<synchronous>, transform_indices = @transform_16, window_bounds = array<i64: 1, 32>}, {pipeline_mode = #tpu.pipeline_mode<synchronous>, transform_indices = @transform_17, window_bounds = array<i64: 32, 128>}, {pipeline_mode = #tpu.pipeline_mode<synchronous>, transform_indices = @transform_18, window_bounds = array<i64: 1, 128>}, {transform_indices = @transform_19, window_bounds = array<i64: 8, 768>}, {transform_indices = @transform_20, window_bounds = array<i64: 8, 128>}]} {
    %c0 = arith.constant 0 : index
    %c0_0 = arith.constant 0 : index
    %0 = vector.load %arg1[%c0, %c0_0] : memref<8x32xf32, #tpu.memory_space<vmem>>, vector<8x32xf32>
    %1 = arith.truncf %0 : vector<8x32xf32> to vector<8x32xbf16>
    %c0_1 = arith.constant 0 : index
    %c0_2 = arith.constant 0 : index
    %2 = vector.load %arg2[%c0_1, %c0_2] : memref<32x512xbf16, #tpu.memory_space<vmem>>, vector<32x512xbf16>
    %cst = arith.constant dense<0.000000e+00> : vector<8x512xf32>
    %3 = tpu.matmul %1, %2, %cst {dimension_numbers = #tpu.dot_dimension_numbers<[1], [0], [0], [1], [0, 0, 1, 1], [], []>} : vector<8x32xbf16>, vector<32x512xbf16>, vector<8x512xf32> -> vector<8x512xf32>
    %c0_3 = arith.constant 0 : index
    %c0_4 = arith.constant 0 : index
    %4 = vector.load %arg3[%c0_3, %c0_4] : memref<1x512xf32, #tpu.memory_space<vmem>>, vector<1x512xf32>
    %5 = vector.broadcast %4 : vector<1x512xf32> to vector<8x512xf32>
    %6 = arith.addf %3, %5 : vector<8x512xf32>
    %7 = arith.truncf %6 : vector<8x512xf32> to vector<8x512xbf16>
    %c0_5 = arith.constant 0 : index
    %c0_6 = arith.constant 0 : index
    %8 = vector.load %arg4[%c0_5, %c0_6] : memref<512x1024xbf16, #tpu.memory_space<vmem>>, vector<512x1024xbf16>
    %cst_7 = arith.constant dense<0.000000e+00> : vector<8x1024xf32>
    %9 = tpu.matmul %7, %8, %cst_7 {dimension_numbers = #tpu.dot_dimension_numbers<[1], [0], [0], [1], [0, 0, 1, 1], [], []>} : vector<8x512xbf16>, vector<512x1024xbf16>, vector<8x1024xf32> -> vector<8x1024xf32>
    %c0_8 = arith.constant 0 : index
    %c0_9 = arith.constant 0 : index
    %10 = vector.load %arg5[%c0_8, %c0_9] : memref<512x64xbf16, #tpu.memory_space<vmem>>, vector<512x64xbf16>
    %cst_10 = arith.constant dense<0.000000e+00> : vector<8x64xf32>
    %11 = tpu.matmul %7, %10, %cst_10 {dimension_numbers = #tpu.dot_dimension_numbers<[1], [0], [0], [1], [0, 0, 1, 1], [], []>} : vector<8x512xbf16>, vector<512x64xbf16>, vector<8x64xf32> -> vector<8x64xf32>
    %12 = arith.truncf %11 : vector<8x64xf32> to vector<8x64xbf16>
    %c0_11 = arith.constant 0 : index
    %c0_12 = arith.constant 0 : index
    %13 = vector.load %arg7[%c0_11, %c0_12] : memref<64x1024xbf16, #tpu.memory_space<vmem>>, vector<64x1024xbf16>
    %cst_13 = arith.constant dense<0.000000e+00> : vector<8x1024xf32>
    %14 = tpu.matmul %12, %13, %cst_13 {dimension_numbers = #tpu.dot_dimension_numbers<[1], [0], [0], [1], [0, 0, 1, 1], [], []>} : vector<8x64xbf16>, vector<64x1024xbf16>, vector<8x1024xf32> -> vector<8x1024xf32>
    %15 = arith.subf %9, %14 : vector<8x1024xf32>
    %16 = arith.mulf %15, %15 : vector<8x1024xf32>
    %17 = arith.truncf %16 : vector<8x1024xf32> to vector<8x1024xbf16>
    %c0_14 = arith.constant 0 : index
    %c0_15 = arith.constant 0 : index
    %18 = vector.load %arg6[%c0_14, %c0_15] : memref<1024x64xbf16, #tpu.memory_space<vmem>>, vector<1024x64xbf16>
    %cst_16 = arith.constant dense<0.000000e+00> : vector<8x64xf32>
    %19 = tpu.matmul %17, %18, %cst_16 {dimension_numbers = #tpu.dot_dimension_numbers<[1], [0], [0], [1], [0, 0, 1, 1], [], []>} : vector<8x1024xbf16>, vector<1024x64xbf16>, vector<8x64xf32> -> vector<8x64xf32>
    %20 = arith.truncf %19 : vector<8x64xf32> to vector<8x64xbf16>
    %c0_17 = arith.constant 0 : index
    %c0_18 = arith.constant 0 : index
    %21 = vector.load %arg7[%c0_17, %c0_18] : memref<64x1024xbf16, #tpu.memory_space<vmem>>, vector<64x1024xbf16>
    %cst_19 = arith.constant dense<0.000000e+00> : vector<8x1024xf32>
    %22 = tpu.matmul %20, %21, %cst_19 {dimension_numbers = #tpu.dot_dimension_numbers<[1], [0], [0], [1], [0, 0, 1, 1], [], []>} : vector<8x64xbf16>, vector<64x1024xbf16>, vector<8x1024xf32> -> vector<8x1024xf32>
    %cst_20 = arith.constant 1.000000e-03 : f32
    %23 = vector.broadcast %cst_20 : f32 to vector<8x1024xf32>
    %24 = arith.addf %22, %23 : vector<8x1024xf32>
    %25 = math.rsqrt %24 : vector<8x1024xf32>
    %26 = arith.mulf %15, %25 : vector<8x1024xf32>
    %c0_21 = arith.constant 0 : index
    %c0_22 = arith.constant 0 : index
    %27 = vector.load %arg8[%c0_21, %c0_22] : memref<1x1024xf32, #tpu.memory_space<vmem>>, vector<1x1024xf32>
    %28 = vector.broadcast %27 : vector<1x1024xf32> to vector<8x1024xf32>
    %29 = arith.mulf %26, %28 : vector<8x1024xf32>
    %c0_23 = arith.constant 0 : index
    %c0_24 = arith.constant 0 : index
    %30 = vector.load %arg9[%c0_23, %c0_24] : memref<1x1024xf32, #tpu.memory_space<vmem>>, vector<1x1024xf32>
    %31 = vector.broadcast %30 : vector<1x1024xf32> to vector<8x1024xf32>
    %32 = arith.addf %29, %31 : vector<8x1024xf32>
    %33 = arith.negf %32 : vector<8x1024xf32>
    %34 = math.exp %33 : vector<8x1024xf32>
    %cst_25 = arith.constant 1.000000e+00 : f32
    %35 = vector.broadcast %cst_25 : f32 to vector<8x1024xf32>
    %36 = arith.addf %35, %34 : vector<8x1024xf32>
    %37 = arith.divf %35, %36 : vector<8x1024xf32>
    %38 = arith.mulf %32, %37 : vector<8x1024xf32>
    %39 = arith.truncf %38 : vector<8x1024xf32> to vector<8x1024xbf16>
    %c0_26 = arith.constant 0 : index
    %c0_27 = arith.constant 0 : index
    %40 = vector.load %arg10[%c0_26, %c0_27] : memref<1024x768xbf16, #tpu.memory_space<vmem>>, vector<1024x768xbf16>
    %cst_28 = arith.constant dense<0.000000e+00> : vector<8x768xf32>
    %41 = tpu.matmul %39, %40, %cst_28 {dimension_numbers = #tpu.dot_dimension_numbers<[1], [0], [0], [1], [0, 0, 1, 1], [], []>} : vector<8x1024xbf16>, vector<1024x768xbf16>, vector<8x768xf32> -> vector<8x768xf32>
    %c0_29 = arith.constant 0 : index
    %c0_30 = arith.constant 0 : index
    %42 = vector.load %arg11[%c0_29, %c0_30] : memref<1x768xf32, #tpu.memory_space<vmem>>, vector<1x768xf32>
    %43 = vector.broadcast %42 : vector<1x768xf32> to vector<8x768xf32>
    %44 = arith.addf %41, %43 : vector<8x768xf32>
    %c0_31 = arith.constant 0 : index
    %c0_32 = arith.constant 0 : index
    %45 = vector.load %arg20[%c0_31, %c0_32] : memref<8x768xf32, #tpu.memory_space<vmem>>, vector<8x768xf32>
    tpu.vector_store %arg20[%c0_31, %c0_32], %44 {strides = array<i32>} : memref<8x768xf32, #tpu.memory_space<vmem>>, vector<8x768xf32>,
    %c0_33 = arith.constant 0 : index
    %c0_34 = arith.constant 0 : index
    %46 = vector.load %arg12[%c0_33, %c0_34] : memref<32x32xf32, #tpu.memory_space<vmem>>, vector<32x32xf32>
    %cst_35 = arith.constant dense<0.000000e+00> : vector<8x32xf32>
    %47 = tpu.matmul %0, %46, %cst_35 {dimension_numbers = #tpu.dot_dimension_numbers<[1], [0], [0], [1], [0, 0, 1, 1], [], []>} : vector<8x32xf32>, vector<32x32xf32>, vector<8x32xf32> -> vector<8x32xf32>
    %c0_36 = arith.constant 0 : index
    %c0_37 = arith.constant 0 : index
    %48 = vector.load %arg13[%c0_36, %c0_37] : memref<1x32xf32, #tpu.memory_space<vmem>>, vector<1x32xf32>
    %c0_38 = arith.constant 0 : index
    %c0_39 = arith.constant 0 : index
    %49 = vector.load %arg14[%c0_38, %c0_39] : memref<1x32xf32, #tpu.memory_space<vmem>>, vector<1x32xf32>
    %cst_40 = arith.constant dense<0.000000e+00> : vector<8xf32>
    %50 = vector.multi_reduction <add>, %47, %cst_40 [1] : vector<8x32xf32> to vector<8xf32>
    %51 = vector.shape_cast %50 : vector<8xf32> to vector<8x1xf32>
    %cst_41 = arith.constant 3.200000e+01 : f32
    %52 = vector.broadcast %cst_41 : f32 to vector<8x1xf32>
    %53 = arith.divf %51, %52 : vector<8x1xf32>
    %54 = vector.broadcast %53 : vector<8x1xf32> to vector<8x32xf32>
    %55 = arith.subf %47, %54 : vector<8x32xf32>
    %56 = arith.mulf %55, %55 : vector<8x32xf32>
    %cst_42 = arith.constant dense<0.000000e+00> : vector<8xf32>
    %57 = vector.multi_reduction <add>, %56, %cst_42 [1] : vector<8x32xf32> to vector<8xf32>
    %58 = vector.shape_cast %57 : vector<8xf32> to vector<8x1xf32>
    %cst_43 = arith.constant 3.200000e+01 : f32
    %59 = vector.broadcast %cst_43 : f32 to vector<8x1xf32>
    %60 = arith.divf %58, %59 : vector<8x1xf32>
    %61 = vector.broadcast %53 : vector<8x1xf32> to vector<8x32xf32>
    %62 = arith.subf %47, %61 : vector<8x32xf32>
    %cst_44 = arith.constant 1.000000e-03 : f32
    %63 = vector.broadcast %cst_44 : f32 to vector<8x1xf32>
    %64 = arith.addf %60, %63 : vector<8x1xf32>
    %65 = math.rsqrt %64 : vector<8x1xf32>
    %66 = vector.broadcast %65 : vector<8x1xf32> to vector<8x32xf32>
    %67 = arith.mulf %62, %66 : vector<8x32xf32>
    %68 = vector.broadcast %48 : vector<1x32xf32> to vector<8x32xf32>
    %69 = arith.mulf %67, %68 : vector<8x32xf32>
    %70 = vector.broadcast %49 : vector<1x32xf32> to vector<8x32xf32>
    %71 = arith.addf %69, %70 : vector<8x32xf32>
    %72 = arith.negf %71 : vector<8x32xf32>
    %73 = math.exp %72 : vector<8x32xf32>
    %cst_45 = arith.constant 1.000000e+00 : f32
    %74 = vector.broadcast %cst_45 : f32 to vector<8x32xf32>
    %75 = arith.addf %74, %73 : vector<8x32xf32>
    %76 = arith.divf %74, %75 : vector<8x32xf32>
    %77 = arith.mulf %71, %76 : vector<8x32xf32>
    %c0_46 = arith.constant 0 : index
    %c0_47 = arith.constant 0 : index
    %78 = vector.load %arg15[%c0_46, %c0_47] : memref<32x32xf32, #tpu.memory_space<vmem>>, vector<32x32xf32>
    %cst_48 = arith.constant dense<0.000000e+00> : vector<8x32xf32>
    %79 = tpu.matmul %77, %78, %cst_48 {dimension_numbers = #tpu.dot_dimension_numbers<[1], [0], [0], [1], [0, 0, 1, 1], [], []>} : vector<8x32xf32>, vector<32x32xf32>, vector<8x32xf32> -> vector<8x32xf32>
    %c0_49 = arith.constant 0 : index
    %c0_50 = arith.constant 0 : index
    %80 = vector.load %arg16[%c0_49, %c0_50] : memref<1x32xf32, #tpu.memory_space<vmem>>, vector<1x32xf32>
    %c0_51 = arith.constant 0 : index
    %c0_52 = arith.constant 0 : index
    %81 = vector.load %arg17[%c0_51, %c0_52] : memref<1x32xf32, #tpu.memory_space<vmem>>, vector<1x32xf32>
    %cst_53 = arith.constant dense<0.000000e+00> : vector<8xf32>
    %82 = vector.multi_reduction <add>, %79, %cst_53 [1] : vector<8x32xf32> to vector<8xf32>
    %83 = vector.shape_cast %82 : vector<8xf32> to vector<8x1xf32>
    %cst_54 = arith.constant 3.200000e+01 : f32
    %84 = vector.broadcast %cst_54 : f32 to vector<8x1xf32>
    %85 = arith.divf %83, %84 : vector<8x1xf32>
    %86 = vector.broadcast %85 : vector<8x1xf32> to vector<8x32xf32>
    %87 = arith.subf %79, %86 : vector<8x32xf32>
    %88 = arith.mulf %87, %87 : vector<8x32xf32>
    %cst_55 = arith.constant dense<0.000000e+00> : vector<8xf32>
    %89 = vector.multi_reduction <add>, %88, %cst_55 [1] : vector<8x32xf32> to vector<8xf32>
    %90 = vector.shape_cast %89 : vector<8xf32> to vector<8x1xf32>
    %cst_56 = arith.constant 3.200000e+01 : f32
    %91 = vector.broadcast %cst_56 : f32 to vector<8x1xf32>
    %92 = arith.divf %90, %91 : vector<8x1xf32>
    %93 = vector.broadcast %85 : vector<8x1xf32> to vector<8x32xf32>
    %94 = arith.subf %79, %93 : vector<8x32xf32>
    %cst_57 = arith.constant 1.000000e-03 : f32
    %95 = vector.broadcast %cst_57 : f32 to vector<8x1xf32>
    %96 = arith.addf %92, %95 : vector<8x1xf32>
    %97 = math.rsqrt %96 : vector<8x1xf32>
    %98 = vector.broadcast %97 : vector<8x1xf32> to vector<8x32xf32>
    %99 = arith.mulf %94, %98 : vector<8x32xf32>
    %100 = vector.broadcast %80 : vector<1x32xf32> to vector<8x32xf32>
    %101 = arith.mulf %99, %100 : vector<8x32xf32>
    %102 = vector.broadcast %81 : vector<1x32xf32> to vector<8x32xf32>
    %103 = arith.addf %101, %102 : vector<8x32xf32>
    %104 = arith.negf %103 : vector<8x32xf32>
    %105 = math.exp %104 : vector<8x32xf32>
    %cst_58 = arith.constant 1.000000e+00 : f32
    %106 = vector.broadcast %cst_58 : f32 to vector<8x32xf32>
    %107 = arith.addf %106, %105 : vector<8x32xf32>
    %108 = arith.divf %106, %107 : vector<8x32xf32>
    %109 = arith.mulf %103, %108 : vector<8x32xf32>
    %c0_59 = arith.constant 0 : index
    %c0_60 = arith.constant 0 : index
    %110 = vector.load %arg18[%c0_59, %c0_60] : memref<32x128xf32, #tpu.memory_space<vmem>>, vector<32x128xf32>
    %cst_61 = arith.constant dense<0.000000e+00> : vector<8x128xf32>
    %111 = tpu.matmul %109, %110, %cst_61 {dimension_numbers = #tpu.dot_dimension_numbers<[1], [0], [0], [1], [0, 0, 1, 1], [], []>} : vector<8x32xf32>, vector<32x128xf32>, vector<8x128xf32> -> vector<8x128xf32>
    %c0_62 = arith.constant 0 : index
    %c0_63 = arith.constant 0 : index
    %112 = vector.load %arg19[%c0_62, %c0_63] : memref<1x128xf32, #tpu.memory_space<vmem>>, vector<1x128xf32>
    %113 = vector.broadcast %112 : vector<1x128xf32> to vector<8x128xf32>
    %114 = arith.addf %111, %113 : vector<8x128xf32>
    %115 = math.tanh %114 : vector<8x128xf32>
    %c0_64 = arith.constant 0 : index
    %c0_65 = arith.constant 0 : index
    %116 = vector.load %arg21[%c0_64, %c0_65] : memref<8x128xf32, #tpu.memory_space<vmem>>, vector<8x128xf32>
    tpu.vector_store %arg21[%c0_64, %c0_65], %115 {strides = array<i32>} : memref<8x128xf32, #tpu.memory_space<vmem>>, vector<8x128xf32>,
    return
  }
  func.func @transform_0(%arg0: i32) -> (i32, i32) {
    %c0_i32 = arith.constant 0 : i32
    %c0_i32_0 = arith.constant 0 : i32
    return %arg0, %c0_i32 : i32, i32
  }
  func.func @transform_1(%arg0: i32) -> (i32, i32) {
    %c0_i32 = arith.constant 0 : i32
    %c0_i32_0 = arith.constant 0 : i32
    %c0_i32_1 = arith.constant 0 : i32
    return %c0_i32, %c0_i32_0 : i32, i32
  }
  func.func @transform_2(%arg0: i32) -> (i32, i32) {
    %c0_i32 = arith.constant 0 : i32
    %c0_i32_0 = arith.constant 0 : i32
    %c0_i32_1 = arith.constant 0 : i32
    return %c0_i32, %c0_i32_0 : i32, i32
  }
  func.func @transform_3(%arg0: i32) -> (i32, i32) {
    %c0_i32 = arith.constant 0 : i32
    %c0_i32_0 = arith.constant 0 : i32
    %c0_i32_1 = arith.constant 0 : i32
    return %c0_i32, %c0_i32_0 : i32, i32
  }
  func.func @transform_4(%arg0: i32) -> (i32, i32) {
    %c0_i32 = arith.constant 0 : i32
    %c0_i32_0 = arith.constant 0 : i32
    %c0_i32_1 = arith.constant 0 : i32
    return %c0_i32, %c0_i32_0 : i32, i32
  }
  func.func @transform_5(%arg0: i32) -> (i32, i32) {
    %c0_i32 = arith.constant 0 : i32
    %c0_i32_0 = arith.constant 0 : i32
    %c0_i32_1 = arith.constant 0 : i32
    return %c0_i32, %c0_i32_0 : i32, i32
  }
  func.func @transform_6(%arg0: i32) -> (i32, i32) {
    %c0_i32 = arith.constant 0 : i32
    %c0_i32_0 = arith.constant 0 : i32
    %c0_i32_1 = arith.constant 0 : i32
    return %c0_i32, %c0_i32_0 : i32, i32
  }
  func.func @transform_7(%arg0: i32) -> (i32, i32) {
    %c0_i32 = arith.constant 0 : i32
    %c0_i32_0 = arith.constant 0 : i32
    %c0_i32_1 = arith.constant 0 : i32
    return %c0_i32, %c0_i32_0 : i32, i32
  }
  func.func @transform_8(%arg0: i32) -> (i32, i32) {
    %c0_i32 = arith.constant 0 : i32
    %c0_i32_0 = arith.constant 0 : i32
    %c0_i32_1 = arith.constant 0 : i32
    return %c0_i32, %c0_i32_0 : i32, i32
  }
  func.func @transform_9(%arg0: i32) -> (i32, i32) {
    %c0_i32 = arith.constant 0 : i32
    %c0_i32_0 = arith.constant 0 : i32
    %c0_i32_1 = arith.constant 0 : i32
    return %c0_i32, %c0_i32_0 : i32, i32
  }
  func.func @transform_10(%arg0: i32) -> (i32, i32) {
    %c0_i32 = arith.constant 0 : i32
    %c0_i32_0 = arith.constant 0 : i32
    %c0_i32_1 = arith.constant 0 : i32
    return %c0_i32, %c0_i32_0 : i32, i32
  }
  func.func @transform_11(%arg0: i32) -> (i32, i32) {
    %c0_i32 = arith.constant 0 : i32
    %c0_i32_0 = arith.constant 0 : i32
    %c0_i32_1 = arith.constant 0 : i32
    return %c0_i32, %c0_i32_0 : i32, i32
  }
  func.func @transform_12(%arg0: i32) -> (i32, i32) {
    %c0_i32 = arith.constant 0 : i32
    %c0_i32_0 = arith.constant 0 : i32
    %c0_i32_1 = arith.constant 0 : i32
    return %c0_i32, %c0_i32_0 : i32, i32
  }
  func.func @transform_13(%arg0: i32) -> (i32, i32) {
    %c0_i32 = arith.constant 0 : i32
    %c0_i32_0 = arith.constant 0 : i32
    %c0_i32_1 = arith.constant 0 : i32
    return %c0_i32, %c0_i32_0 : i32, i32
  }
  func.func @transform_14(%arg0: i32) -> (i32, i32) {
    %c0_i32 = arith.constant 0 : i32
    %c0_i32_0 = arith.constant 0 : i32
    %c0_i32_1 = arith.constant 0 : i32
    return %c0_i32, %c0_i32_0 : i32, i32
  }
  func.func @transform_15(%arg0: i32) -> (i32, i32) {
    %c0_i32 = arith.constant 0 : i32
    %c0_i32_0 = arith.constant 0 : i32
    %c0_i32_1 = arith.constant 0 : i32
    return %c0_i32, %c0_i32_0 : i32, i32
  }
  func.func @transform_16(%arg0: i32) -> (i32, i32) {
    %c0_i32 = arith.constant 0 : i32
    %c0_i32_0 = arith.constant 0 : i32
    %c0_i32_1 = arith.constant 0 : i32
    return %c0_i32, %c0_i32_0 : i32, i32
  }
  func.func @transform_17(%arg0: i32) -> (i32, i32) {
    %c0_i32 = arith.constant 0 : i32
    %c0_i32_0 = arith.constant 0 : i32
    %c0_i32_1 = arith.constant 0 : i32
    return %c0_i32, %c0_i32_0 : i32, i32
  }
  func.func @transform_18(%arg0: i32) -> (i32, i32) {
    %c0_i32 = arith.constant 0 : i32
    %c0_i32_0 = arith.constant 0 : i32
    %c0_i32_1 = arith.constant 0 : i32
    return %c0_i32, %c0_i32_0 : i32, i32
  }
  func.func @transform_19(%arg0: i32) -> (i32, i32) {
    %c0_i32 = arith.constant 0 : i32
    %c0_i32_0 = arith.constant 0 : i32
    return %arg0, %c0_i32 : i32, i32
  }
  func.func @transform_20(%arg0: i32) -> (i32, i32) {
    %c0_i32 = arith.constant 0 : i32
    %c0_i32_0 = arith.constant 0 : i32
    return %arg0, %c0_i32 : i32, i32
  }
}

</mosaic_0001>

<llo_original>
// kernel: multi_decoder_forward.1
$region0: #{multi_decoder_forward.1}
  #allocation0 [shape = 'u32[]', space=smem, size = 0x4, offset = 0x4, fixed_abs, tag = 'smem constant byte address 0x4 - core index']
  #allocation1 [shape = 'u32[144,128]{1,0:T(1,128)}', space=vmem, size = 0x12000, scoped, tag = 'internal scratch']
  %s0 = inlined_call_operand.vmem [shape: f32[8,32], index: 0, kind: input, shape index: {}]
  %s1 = inlined_call_operand.vmem [shape: bf16[32,512], index: 1, kind: input, shape index: {}]
  %s2 = inlined_call_operand.vmem [shape: f32[1,512], index: 2, kind: input, shape index: {}]
  %s3 = inlined_call_operand.vmem [shape: bf16[512,1024], index: 3, kind: input, shape index: {}]
  %s4 = inlined_call_operand.vmem [shape: bf16[512,64], index: 4, kind: input, shape index: {}]
  %s5 = inlined_call_operand.vmem [shape: bf16[1024,64], index: 5, kind: input, shape index: {}]
  %s6 = inlined_call_operand.vmem [shape: bf16[64,1024], index: 6, kind: input, shape index: {}]
  %s7 = inlined_call_operand.vmem [shape: f32[1,1024], index: 7, kind: input, shape index: {}]
  %s8 = inlined_call_operand.vmem [shape: f32[1,1024], index: 8, kind: input, shape index: {}]
  %s9 = inlined_call_operand.vmem [shape: bf16[1024,768], index: 9, kind: input, shape index: {}]
  %s10 = inlined_call_operand.vmem [shape: f32[1,768], index: 10, kind: input, shape index: {}]
  %s11 = inlined_call_operand.vmem [shape: f32[32,32], index: 11, kind: input, shape index: {}]
  %s12 = inlined_call_operand.vmem [shape: f32[1,32], index: 12, kind: input, shape index: {}, may-alias: {12,15}]
  %s13 = inlined_call_operand.vmem [shape: f32[1,32], index: 13, kind: input, shape index: {}, may-alias: {13,16}]
  %s14 = inlined_call_operand.vmem [shape: f32[32,32], index: 14, kind: input, shape index: {}]
  %s15 = inlined_call_operand.vmem [shape: f32[1,32], index: 15, kind: input, shape index: {}, may-alias: {12,15}]
  %s16 = inlined_call_operand.vmem [shape: f32[1,32], index: 16, kind: input, shape index: {}, may-alias: {13,16}]
  %s17 = inlined_call_operand.vmem [shape: f32[32,128], index: 17, kind: input, shape index: {}]
  %s18 = inlined_call_operand.vmem [shape: f32[1,128], index: 18, kind: input, shape index: {}]
  %s19 = inlined_call_operand.vmem [shape: f32[8,768], index: 19, kind: output, shape index: {0}]
  %s20 = inlined_call_operand.vmem [shape: f32[8,128], index: 20, kind: output, shape index: {1}]
  %21 = xla_tuple %s19, %s20
  %s22 = sld [smem:[#allocation0]]
  $region94: #{multi_decoder_forward.1} parent=0
    _
  %s24 = ssub.s32 1, %s22
  %s25 = scalar_select 0, %s24, %s22
  // Predicated region
  $region2: #{multi_decoder_forward.1} parent=0 // pred_check
    _
  $region3: #{multi_decoder_forward.1} parent=0 // pred_check_branch
    %27 = sbr.rel (0) target = $region5
  $region4: #{multi_decoder_forward.1} parent=0 // pred_region
    _
  $region5: #{multi_decoder_forward.1} parent=0 // pred_fallthru
    _
  // Predicated region
  $region6: #{multi_decoder_forward.1} parent=0 // pred_check
    _
  $region7: #{multi_decoder_forward.1} parent=0 // pred_check_branch
    %29 = sbr.rel (0) target = $region9
  $region8: #{multi_decoder_forward.1} parent=0 // pred_region
    _
  $region9: #{multi_decoder_forward.1} parent=0 // pred_fallthru
    _
  // Predicated region
  $region10: #{multi_decoder_forward.1} parent=0 // pred_check
    _
  $region11: #{multi_decoder_forward.1} parent=0 // pred_check_branch
    %31 = sbr.rel (0) target = $region13
  $region12: #{multi_decoder_forward.1} parent=0 // pred_region
    _
  $region13: #{multi_decoder_forward.1} parent=0 // pred_fallthru
    _
  // Predicated region
  $region14: #{multi_decoder_forward.1} parent=0 // pred_check
    _
  $region15: #{multi_decoder_forward.1} parent=0 // pred_check_branch
    %33 = sbr.rel (0) target = $region17
  $region16: #{multi_decoder_forward.1} parent=0 // pred_region
    _
  $region17: #{multi_decoder_forward.1} parent=0 // pred_fallthru
    _
  // Predicated region
  $region18: #{multi_decoder_forward.1} parent=0 // pred_check
    _
  $region19: #{multi_decoder_forward.1} parent=0 // pred_check_branch
    %35 = sbr.rel (0) target = $region21
  $region20: #{multi_decoder_forward.1} parent=0 // pred_region
    _
  $region21: #{multi_decoder_forward.1} parent=0 // pred_fallthru
    _
  // Predicated region
  $region22: #{multi_decoder_forward.1} parent=0 // pred_check
    _
  $region23: #{multi_decoder_forward.1} parent=0 // pred_check_branch
    %37 = sbr.rel (0) target = $region25
  $region24: #{multi_decoder_forward.1} parent=0 // pred_region
    _
  $region25: #{multi_decoder_forward.1} parent=0 // pred_fallthru
    _
  // Predicated region
  $region26: #{multi_decoder_forward.1} parent=0 // pred_check
    _
  $region27: #{multi_decoder_forward.1} parent=0 // pred_check_branch
    %39 = sbr.rel (0) target = $region29
  $region28: #{multi_decoder_forward.1} parent=0 // pred_region
    _
  $region29: #{multi_decoder_forward.1} parent=0 // pred_fallthru
    _
  // Predicated region
  $region30: #{multi_decoder_forward.1} parent=0 // pred_check
    _
  $region31: #{multi_decoder_forward.1} parent=0 // pred_check_branch
    %41 = sbr.rel (0) target = $region33
  $region32: #{multi_decoder_forward.1} parent=0 // pred_region
    _
  $region33: #{multi_decoder_forward.1} parent=0 // pred_fallthru
    _
  // Predicated region
  $region34: #{multi_decoder_forward.1} parent=0 // pred_check
    _
  $region35: #{multi_decoder_forward.1} parent=0 // pred_check_branch
    %43 = sbr.rel (0) target = $region37
  $region36: #{multi_decoder_forward.1} parent=0 // pred_region
    _
  $region37: #{multi_decoder_forward.1} parent=0 // pred_fallthru
    _
  // Predicated region
  $region38: #{multi_decoder_forward.1} parent=0 // pred_check
    _
  $region39: #{multi_decoder_forward.1} parent=0 // pred_check_branch
    %45 = sbr.rel (0) target = $region41
  $region40: #{multi_decoder_forward.1} parent=0 // pred_region
    _
  $region41: #{multi_decoder_forward.1} parent=0 // pred_fallthru
    _
  // Predicated region
  $region42: #{multi_decoder_forward.1} parent=0 // pred_check
    _
  $region43: #{multi_decoder_forward.1} parent=0 // pred_check_branch
    %47 = sbr.rel (0) target = $region45
  $region44: #{multi_decoder_forward.1} parent=0 // pred_region
    _
  $region45: #{multi_decoder_forward.1} parent=0 // pred_fallthru
    _
  // Predicated region
  $region46: #{multi_decoder_forward.1} parent=0 // pred_check
    _
  $region47: #{multi_decoder_forward.1} parent=0 // pred_check_branch
    %49 = sbr.rel (0) target = $region49
  $region48: #{multi_decoder_forward.1} parent=0 // pred_region
    _
  $region49: #{multi_decoder_forward.1} parent=0 // pred_fallthru
    _
  // Predicated region
  $region50: #{multi_decoder_forward.1} parent=0 // pred_check
    _
  $region51: #{multi_decoder_forward.1} parent=0 // pred_check_branch
    %51 = sbr.rel (0) target = $region53
  $region52: #{multi_decoder_forward.1} parent=0 // pred_region
    _
  $region53: #{multi_decoder_forward.1} parent=0 // pred_fallthru
    _
  // Predicated region
  $region54: #{multi_decoder_forward.1} parent=0 // pred_check
    _
  $region55: #{multi_decoder_forward.1} parent=0 // pred_check_branch
    %53 = sbr.rel (0) target = $region57
  $region56: #{multi_decoder_forward.1} parent=0 // pred_region
    _
  $region57: #{multi_decoder_forward.1} parent=0 // pred_fallthru
    _
  // Predicated region
  $region58: #{multi_decoder_forward.1} parent=0 // pred_check
    _
  $region59: #{multi_decoder_forward.1} parent=0 // pred_check_branch
    %55 = sbr.rel (0) target = $region61
  $region60: #{multi_decoder_forward.1} parent=0 // pred_region
    _
  $region61: #{multi_decoder_forward.1} parent=0 // pred_fallthru
    _
  // Predicated region
  $region62: #{multi_decoder_forward.1} parent=0 // pred_check
    _
  $region63: #{multi_decoder_forward.1} parent=0 // pred_check_branch
    %57 = sbr.rel (0) target = $region65
  $region64: #{multi_decoder_forward.1} parent=0 // pred_region
    _
  $region65: #{multi_decoder_forward.1} parent=0 // pred_fallthru
    _
  // Predicated region
  $region66: #{multi_decoder_forward.1} parent=0 // pred_check
    _
  $region67: #{multi_decoder_forward.1} parent=0 // pred_check_branch
    %59 = sbr.rel (0) target = $region69
  $region68: #{multi_decoder_forward.1} parent=0 // pred_region
    _
  $region69: #{multi_decoder_forward.1} parent=0 // pred_fallthru
    _
  // Predicated region
  $region70: #{multi_decoder_forward.1} parent=0 // pred_check
    _
  $region71: #{multi_decoder_forward.1} parent=0 // pred_check_branch
    %61 = sbr.rel (0) target = $region73
  $region72: #{multi_decoder_forward.1} parent=0 // pred_region
    _
  $region73: #{multi_decoder_forward.1} parent=0 // pred_fallthru
    _
  // Predicated region
  $region74: #{multi_decoder_forward.1} parent=0 // pred_check
    _
  $region75: #{multi_decoder_forward.1} parent=0 // pred_check_branch
    %63 = sbr.rel (0) target = $region77
  $region76: #{multi_decoder_forward.1} parent=0 // pred_region
    _
  $region77: #{multi_decoder_forward.1} parent=0 // pred_fallthru
    _
  %v65 = vld [vmem:[%s0] sm:$0xff]
  %v66 = vpack.c.bf16 %v65, %v65
  %v67 = vld [vmem:[%s1] sm:$0xff]
  %v68 = vld [vmem:[%s1 + $0x8] sm:$0xff]
  %v69 = vld [vmem:[%s1 + $0x10] sm:$0xff]
  %v70 = vld [vmem:[%s1 + $0x18] sm:$0xff]
  %v71 = vld [vmem:[%s1 + $0x20] sm:$0xff]
  %v72 = vld [vmem:[%s1 + $0x28] sm:$0xff]
  %v73 = vld [vmem:[%s1 + $0x30] sm:$0xff]
  %v74 = vld [vmem:[%s1 + $0x38] sm:$0xff]
  %v75 = vld [vmem:[%s2] sm:$0xf]
  %v77 = vlaneseq
  %v78 = vshrl.u32 %v77, 7
  %v79 = vsub.s32 0, %v78
  %v80 = vrot.slane %v75, %v79
  %v81 = vlaneseq
  %v82 = vshrl.u32 %v81, 7
  %v83 = vsub.s32 1, %v82
  %v84 = vrot.slane %v75, %v83
  %v85 = vlaneseq
  %v86 = vshrl.u32 %v85, 7
  %v87 = vsub.s32 2, %v86
  %v88 = vrot.slane %v75, %v87
  %v89 = vlaneseq
  %v90 = vshrl.u32 %v89, 7
  %v91 = vsub.s32 3, %v90
  %v92 = vrot.slane %v75, %v91
  %v105 = vunpack.c.l.b16 %v67
  %v106 = vunpack.c.h.b16 %v67
  %v107 = vunpack.c.l.b16 %v68
  %v108 = vunpack.c.h.b16 %v68
  %v109 = vunpack.c.l.b16 %v69
  %v110 = vunpack.c.h.b16 %v69
  %v111 = vunpack.c.l.b16 %v70
  %v112 = vunpack.c.h.b16 %v70
  %v113 = vunpack.c.l.b16 %v71
  %v114 = vunpack.c.h.b16 %v71
  %v115 = vunpack.c.l.b16 %v72
  %v116 = vunpack.c.h.b16 %v72
  %v117 = vunpack.c.l.b16 %v73
  %v118 = vunpack.c.h.b16 %v73
  %v119 = vunpack.c.l.b16 %v74
  %v120 = vunpack.c.h.b16 %v74
  %v121 = vpack.c.b16 %v109, %v105
  %v122 = vpack.c.b16 %v110, %v106
  %v123 = vpack.c.b16 %v111, %v107
  %v124 = vpack.c.b16 %v112, %v108
  %v125 = vpack.c.b16 %v117, %v113
  %v126 = vpack.c.b16 %v118, %v114
  %v127 = vpack.c.b16 %v119, %v115
  %v128 = vpack.c.b16 %v120, %v116
  %vm137 = vcmask 261120
  %v139 = vsel %vm137, %v66, 0
  %141 = vmatprep.subr.bf16.mxu0 %v122
  %142 = vmatpush1.bf16.msra.mxu0 %v121
  %143 = vmatprep.subr.bf16.mxu0 %v126
  %144 = vmatpush1.bf16.msra.mxu0 %v125
  %145 = vmatprep.subr.bf16.mxu0 0
  %146 = vmatpush1.bf16.msra.mxu0 0
  %147 = vmatprep.subr.bf16.mxu0 0
  %148 = vmatpush1.bf16.msra.mxu0 0
  %149 = vmatprep.subr.bf16.mxu0 0
  %150 = vmatpush1.bf16.msra.mxu0 0
  %151 = vmatprep.subr.bf16.mxu0 0
  %152 = vmatpush1.bf16.msra.mxu0 0
  %153 = vmatprep.subr.bf16.mxu0 0
  %154 = vmatpush1.bf16.msra.mxu0 0
  %155 = vmatprep.subr.bf16.mxu0 0
  %156 = vmatpush1.bf16.msra.mxu0 0
  %157 = vmatprep.subr.bf16.mxu0 0
  %158 = vmatpush1.bf16.msra.mxu0 0
  %159 = vmatprep.subr.bf16.mxu0 0
  %160 = vmatpush1.bf16.msra.mxu0 0
  %161 = vmatprep.subr.bf16.mxu0 0
  %162 = vmatpush1.bf16.msra.mxu0 0
  %163 = vmatprep.subr.bf16.mxu0 0
  %164 = vmatpush1.bf16.msra.mxu0 0
  %165 = vmatprep.subr.bf16.mxu0 0
  %166 = vmatpush1.bf16.msra.mxu0 0
  %167 = vmatprep.subr.bf16.mxu0 0
  %168 = vmatpush1.bf16.msra.mxu0 0
  %169 = vmatprep.subr.bf16.mxu0 0
  %170 = vmatpush1.bf16.msra.mxu0 0
  %171 = vmatprep.subr.bf16.mxu0 0
  %172 = vmatpush1.bf16.msra.mxu0 0
  %173 = vmatprep.mubr.bf16.mxu0 0
  %174 = vmatmul.mubr.bf16.gmra.mrb[0].mxu0 %v139
  %v175 = vpop.f32.mrb[0].mxu0
  %v176 = vadd.f32 %v80, %v175
  %v177 = vpop.f32.mrb[0].mxu0
  %v178 = vadd.f32 %v84, %v177
  %v179 = vpop.f32.mrb[0].mxu0
  %v180 = vpop.f32.mrb[0].mxu0
  %181 = vdwg.mxu0
  %182 = vmatprep.subr.bf16.mxu0 %v124
  %183 = vmatpush1.bf16.msra.mxu0 %v123
  %184 = vmatprep.subr.bf16.mxu0 %v128
  %185 = vmatpush1.bf16.msra.mxu0 %v127
  %186 = vmatprep.subr.bf16.mxu0 0
  %187 = vmatpush1.bf16.msra.mxu0 0
  %188 = vmatprep.subr.bf16.mxu0 0
  %189 = vmatpush1.bf16.msra.mxu0 0
  %190 = vmatprep.subr.bf16.mxu0 0
  %191 = vmatpush1.bf16.msra.mxu0 0
  %192 = vmatprep.subr.bf16.mxu0 0
  %193 = vmatpush1.bf16.msra.mxu0 0
  %194 = vmatprep.subr.bf16.mxu0 0
  %195 = vmatpush1.bf16.msra.mxu0 0
  %196 = vmatprep.subr.bf16.mxu0 0
  %197 = vmatpush1.bf16.msra.mxu0 0
  %198 = vmatprep.subr.bf16.mxu0 0
  %199 = vmatpush1.bf16.msra.mxu0 0
  %200 = vmatprep.subr.bf16.mxu0 0
  %201 = vmatpush1.bf16.msra.mxu0 0
  %202 = vmatprep.subr.bf16.mxu0 0
  %203 = vmatpush1.bf16.msra.mxu0 0
  %204 = vmatprep.subr.bf16.mxu0 0
  %205 = vmatpush1.bf16.msra.mxu0 0
  %206 = vmatprep.subr.bf16.mxu0 0
  %207 = vmatpush1.bf16.msra.mxu0 0
  %208 = vmatprep.subr.bf16.mxu0 0
  %209 = vmatpush1.bf16.msra.mxu0 0
  %210 = vmatprep.subr.bf16.mxu0 0
  %211 = vmatpush1.bf16.msra.mxu0 0
  %212 = vmatprep.subr.bf16.mxu0 0
  %213 = vmatpush1.bf16.msra.mxu0 0
  %214 = vmatprep.mubr.bf16.mxu0 0
  %215 = vmatmul.mubr.bf16.gmra.mrb[0].mxu0 %v139
  %v216 = vpop.f32.mrb[0].mxu0
  %v217 = vadd.f32 %v88, %v216
  %v218 = vpop.f32.mrb[0].mxu0
  %v219 = vadd.f32 %v92, %v218
  %v220 = vpop.f32.mrb[0].mxu0
  %v221 = vpop.f32.mrb[0].mxu0
  %222 = vdwg.mxu0
  %v223 = vpack.c.bf16 %v176, %v176
  %v224 = vpack.c.bf16 %v178, %v178
  %v225 = vpack.c.bf16 %v217, %v217
  %v226 = vpack.c.bf16 %v219, %v219
  %v227 = vld [vmem:[%s3] sm:$0xff]
  %v228 = vld [vmem:[%s3 + $0x8] sm:$0xff]
  %v229 = vld [vmem:[%s3 + $0x10] sm:$0xff]
  %v230 = vld [vmem:[%s3 + $0x18] sm:$0xff]
  %v231 = vld [vmem:[%s3 + $0x20] sm:$0xff]
  %v232 = vld [vmem:[%s3 + $0x28] sm:$0xff]
  %v233 = vld [vmem:[%s3 + $0x30] sm:$0xff]
  %v234 = vld [vmem:[%s3 + $0x38] sm:$0xff]
  %v235 = vld [vmem:[%s3 + $0x40] sm:$0xff]
  %v236 = vld [vmem:[%s3 + $0x48] sm:$0xff]
  %v237 = vld [vmem:[%s3 + $0x50] sm:$0xff]
  %v238 = vld [vmem:[%s3 + $0x58] sm:$0xff]
  %v239 = vld [vmem:[%s3 + $0x60] sm:$0xff]
  %v240 = vld [vmem:[%s3 + $0x68] sm:$0xff]
  %v241 = vld [vmem:[%s3 + $0x70] sm:$0xff]
  %v242 = vld [vmem:[%s3 + $0x78] sm:$0xff]
  %v243 = vld [vmem:[%s3 + $0x80] sm:$0xff]
  %v244 = vld [vmem:[%s3 + $0x88] sm:$0xff]
  %v245 = vld [vmem:[%s3 + $0x90] sm:$0xff]
  %v246 = vld [vmem:[%s3 + $0x98] sm:$0xff]
  %v247 = vld [vmem:[%s3 + $0xa0] sm:$0xff]
  %v248 = vld [vmem:[%s3 + $0xa8] sm:$0xff]
  %v249 = vld [vmem:[%s3 + $0xb0] sm:$0xff]
  %v250 = vld [vmem:[%s3 + $0xb8] sm:$0xff]
  %v251 = vld [vmem:[%s3 + $0xc0] sm:$0xff]
  %v252 = vld [vmem:[%s3 + $0xc8] sm:$0xff]
  %v253 = vld [vmem:[%s3 + $0xd0] sm:$0xff]
  %v254 = vld [vmem:[%s3 + $0xd8] sm:$0xff]
  %v255 = vld [vmem:[%s3 + $0xe0] sm:$0xff]
  %v256 = vld [vmem:[%s3 + $0xe8] sm:$0xff]
  %v257 = vld [vmem:[%s3 + $0xf0] sm:$0xff]
  %v258 = vld [vmem:[%s3 + $0xf8] sm:$0xff]
  %v259 = vld [vmem:[%s3 + $0x100] sm:$0xff]
  %v260 = vld [vmem:[%s3 + $0x108] sm:$0xff]
  %v261 = vld [vmem:[%s3 + $0x110] sm:$0xff]
  %v262 = vld [vmem:[%s3 + $0x118] sm:$0xff]
  %v263 = vld [vmem:[%s3 + $0x120] sm:$0xff]
  %v264 = vld [vmem:[%s3 + $0x128] sm:$0xff]
  %v265 = vld [vmem:[%s3 + $0x130] sm:$0xff]
  %v266 = vld [vmem:[%s3 + $0x138] sm:$0xff]
  %v267 = vld [vmem:[%s3 + $0x140] sm:$0xff]
  %v268 = vld [vmem:[%s3 + $0x148] sm:$0xff]
  %v269 = vld [vmem:[%s3 + $0x150] sm:$0xff]
  %v270 = vld [vmem:[%s3 + $0x158] sm:$0xff]
  %v271 = vld [vmem:[%s3 + $0x160] sm:$0xff]
  %v272 = vld [vmem:[%s3 + $0x168] sm:$0xff]
  %v273 = vld [vmem:[%s3 + $0x170] sm:$0xff]
  %v274 = vld [vmem:[%s3 + $0x178] sm:$0xff]
  %v275 = vld [vmem:[%s3 + $0x180] sm:$0xff]
  %v276 = vld [vmem:[%s3 + $0x188] sm:$0xff]
  %v277 = vld [vmem:[%s3 + $0x190] sm:$0xff]
  %v278 = vld [vmem:[%s3 + $0x198] sm:$0xff]
  %v279 = vld [vmem:[%s3 + $0x1a0] sm:$0xff]
  %v280 = vld [vmem:[%s3 + $0x1a8] sm:$0xff]
  %v281 = vld [vmem:[%s3 + $0x1b0] sm:$0xff]
  %v282 = vld [vmem:[%s3 + $0x1b8] sm:$0xff]
  %v283 = vld [vmem:[%s3 + $0x1c0] sm:$0xff]
  %v284 = vld [vmem:[%s3 + $0x1c8] sm:$0xff]
  %v285 = vld [vmem:[%s3 + $0x1d0] sm:$0xff]
  %v286 = vld [vmem:[%s3 + $0x1d8] sm:$0xff]
  %v287 = vld [vmem:[%s3 + $0x1e0] sm:$0xff]
  %v288 = vld [vmem:[%s3 + $0x1e8] sm:$0xff]
  %v289 = vld [vmem:[%s3 + $0x1f0] sm:$0xff]
  %v290 = vld [vmem:[%s3 + $0x1f8] sm:$0xff]
  %v291 = vld [vmem:[%s3 + $0x200] sm:$0xff]
  %v292 = vld [vmem:[%s3 + $0x208] sm:$0xff]
  %v293 = vld [vmem:[%s3 + $0x210] sm:$0xff]
  %v294 = vld [vmem:[%s3 + $0x218] sm:$0xff]
  %v295 = vld [vmem:[%s3 + $0x220] sm:$0xff]
  %v296 = vld [vmem:[%s3 + $0x228] sm:$0xff]
  %v297 = vld [vmem:[%s3 + $0x230] sm:$0xff]
  %v298 = vld [vmem:[%s3 + $0x238] sm:$0xff]
  %v299 = vld [vmem:[%s3 + $0x240] sm:$0xff]
  %v300 = vld [vmem:[%s3 + $0x248] sm:$0xff]
  %v301 = vld [vmem:[%s3 + $0x250] sm:$0xff]
  %v302 = vld [vmem:[%s3 + $0x258] sm:$0xff]
  %v303 = vld [vmem:[%s3 + $0x260] sm:$0xff]
  %v304 = vld [vmem:[%s3 + $0x268] sm:$0xff]
  %v305 = vld [vmem:[%s3 + $0x270] sm:$0xff]
  %v306 = vld [vmem:[%s3 + $0x278] sm:$0xff]
  %v307 = vld [vmem:[%s3 + $0x280] sm:$0xff]
  %v308 = vld [vmem:[%s3 + $0x288] sm:$0xff]
  %v309 = vld [vmem:[%s3 + $0x290] sm:$0xff]
  %v310 = vld [vmem:[%s3 + $0x298] sm:$0xff]
  %v311 = vld [vmem:[%s3 + $0x2a0] sm:$0xff]
  %v312 = vld [vmem:[%s3 + $0x2a8] sm:$0xff]
  %v313 = vld [vmem:[%s3 + $0x2b0] sm:$0xff]
  %v314 = vld [vmem:[%s3 + $0x2b8] sm:$0xff]
  %v315 = vld [vmem:[%s3 + $0x2c0] sm:$0xff]
  %v316 = vld [vmem:[%s3 + $0x2c8] sm:$0xff]
  %v317 = vld [vmem:[%s3 + $0x2d0] sm:$0xff]
  %v318 = vld [vmem:[%s3 + $0x2d8] sm:$0xff]
  %v319 = vld [vmem:[%s3 + $0x2e0] sm:$0xff]
  %v320 = vld [vmem:[%s3 + $0x2e8] sm:$0xff]
  %v321 = vld [vmem:[%s3 + $0x2f0] sm:$0xff]
  %v322 = vld [vmem:[%s3 + $0x2f8] sm:$0xff]
  %v323 = vld [vmem:[%s3 + $0x300] sm:$0xff]
  %v324 = vld [vmem:[%s3 + $0x308] sm:$0xff]
  %v325 = vld [vmem:[%s3 + $0x310] sm:$0xff]
  %v326 = vld [vmem:[%s3 + $0x318] sm:$0xff]
  %v327 = vld [vmem:[%s3 + $0x320] sm:$0xff]
  %v328 = vld [vmem:[%s3 + $0x328] sm:$0xff]
  %v329 = vld [vmem:[%s3 + $0x330] sm:$0xff]
  %v330 = vld [vmem:[%s3 + $0x338] sm:$0xff]
  %v331 = vld [vmem:[%s3 + $0x340] sm:$0xff]
  %v332 = vld [vmem:[%s3 + $0x348] sm:$0xff]
  %v333 = vld [vmem:[%s3 + $0x350] sm:$0xff]
  %v334 = vld [vmem:[%s3 + $0x358] sm:$0xff]
  %v335 = vld [vmem:[%s3 + $0x360] sm:$0xff]
  %v336 = vld [vmem:[%s3 + $0x368] sm:$0xff]
  %v337 = vld [vmem:[%s3 + $0x370] sm:$0xff]
  %v338 = vld [vmem:[%s3 + $0x378] sm:$0xff]
  %v339 = vld [vmem:[%s3 + $0x380] sm:$0xff]
  %v340 = vld [vmem:[%s3 + $0x388] sm:$0xff]
  %v341 = vld [vmem:[%s3 + $0x390] sm:$0xff]
  %v342 = vld [vmem:[%s3 + $0x398] sm:$0xff]
  %v343 = vld [vmem:[%s3 + $0x3a0] sm:$0xff]
  %v344 = vld [vmem:[%s3 + $0x3a8] sm:$0xff]
  %v345 = vld [vmem:[%s3 + $0x3b0] sm:$0xff]
  %v346 = vld [vmem:[%s3 + $0x3b8] sm:$0xff]
  %v347 = vld [vmem:[%s3 + $0x3c0] sm:$0xff]
  %v348 = vld [vmem:[%s3 + $0x3c8] sm:$0xff]
  %v349 = vld [vmem:[%s3 + $0x3d0] sm:$0xff]
  %v350 = vld [vmem:[%s3 + $0x3d8] sm:$0xff]
  %v351 = vld [vmem:[%s3 + $0x3e0] sm:$0xff]
  %v352 = vld [vmem:[%s3 + $0x3e8] sm:$0xff]
  %v353 = vld [vmem:[%s3 + $0x3f0] sm:$0xff]
  %v354 = vld [vmem:[%s3 + $0x3f8] sm:$0xff]
  %v355 = vld [vmem:[%s3 + $0x400] sm:$0xff]
  %v356 = vld [vmem:[%s3 + $0x408] sm:$0xff]
  %v357 = vld [vmem:[%s3 + $0x410] sm:$0xff]
  %v358 = vld [vmem:[%s3 + $0x418] sm:$0xff]
  %v359 = vld [vmem:[%s3 + $0x420] sm:$0xff]
  %v360 = vld [vmem:[%s3 + $0x428] sm:$0xff]
  %v361 = vld [vmem:[%s3 + $0x430] sm:$0xff]
  %v362 = vld [vmem:[%s3 + $0x438] sm:$0xff]
  %v363 = vld [vmem:[%s3 + $0x440] sm:$0xff]
  %v364 = vld [vmem:[%s3 + $0x448] sm:$0xff]
  %v365 = vld [vmem:[%s3 + $0x450] sm:$0xff]
  %v366 = vld [vmem:[%s3 + $0x458] sm:$0xff]
  %v367 = vld [vmem:[%s3 + $0x460] sm:$0xff]
  %v368 = vld [vmem:[%s3 + $0x468] sm:$0xff]
  %v369 = vld [vmem:[%s3 + $0x470] sm:$0xff]
  %v370 = vld [vmem:[%s3 + $0x478] sm:$0xff]
  %v371 = vld [vmem:[%s3 + $0x480] sm:$0xff]
  %v372 = vld [vmem:[%s3 + $0x488] sm:$0xff]
  %v373 = vld [vmem:[%s3 + $0x490] sm:$0xff]
  %v374 = vld [vmem:[%s3 + $0x498] sm:$0xff]
  %v375 = vld [vmem:[%s3 + $0x4a0] sm:$0xff]
  %v376 = vld [vmem:[%s3 + $0x4a8] sm:$0xff]
  %v377 = vld [vmem:[%s3 + $0x4b0] sm:$0xff]
  %v378 = vld [vmem:[%s3 + $0x4b8] sm:$0xff]
  %v379 = vld [vmem:[%s3 + $0x4c0] sm:$0xff]
  %v380 = vld [vmem:[%s3 + $0x4c8] sm:$0xff]
  %v381 = vld [vmem:[%s3 + $0x4d0] sm:$0xff]
  %v382 = vld [vmem:[%s3 + $0x4d8] sm:$0xff]
  %v383 = vld [vmem:[%s3 + $0x4e0] sm:$0xff]
  %v384 = vld [vmem:[%s3 + $0x4e8] sm:$0xff]
  %v385 = vld [vmem:[%s3 + $0x4f0] sm:$0xff]
  %v386 = vld [vmem:[%s3 + $0x4f8] sm:$0xff]
  %v387 = vld [vmem:[%s3 + $0x500] sm:$0xff]
  %v388 = vld [vmem:[%s3 + $0x508] sm:$0xff]
  %v389 = vld [vmem:[%s3 + $0x510] sm:$0xff]
  %v390 = vld [vmem:[%s3 + $0x518] sm:$0xff]
  %v391 = vld [vmem:[%s3 + $0x520] sm:$0xff]
  %v392 = vld [vmem:[%s3 + $0x528] sm:$0xff]
  %v393 = vld [vmem:[%s3 + $0x530] sm:$0xff]
  %v394 = vld [vmem:[%s3 + $0x538] sm:$0xff]
  %v395 = vld [vmem:[%s3 + $0x540] sm:$0xff]
  %v396 = vld [vmem:[%s3 + $0x548] sm:$0xff]
  %v397 = vld [vmem:[%s3 + $0x550] sm:$0xff]
  %v398 = vld [vmem:[%s3 + $0x558] sm:$0xff]
  %v399 = vld [vmem:[%s3 + $0x560] sm:$0xff]
  %v400 = vld [vmem:[%s3 + $0x568] sm:$0xff]
  %v401 = vld [vmem:[%s3 + $0x570] sm:$0xff]
  %v402 = vld [vmem:[%s3 + $0x578] sm:$0xff]
  %v403 = vld [vmem:[%s3 + $0x580] sm:$0xff]
  %v404 = vld [vmem:[%s3 + $0x588] sm:$0xff]
  %v405 = vld [vmem:[%s3 + $0x590] sm:$0xff]
  %v406 = vld [vmem:[%s3 + $0x598] sm:$0xff]
  %v407 = vld [vmem:[%s3 + $0x5a0] sm:$0xff]
  %v408 = vld [vmem:[%s3 + $0x5a8] sm:$0xff]
  %v409 = vld [vmem:[%s3 + $0x5b0] sm:$0xff]
  %v410 = vld [vmem:[%s3 + $0x5b8] sm:$0xff]
  %v411 = vld [vmem:[%s3 + $0x5c0] sm:$0xff]
  %v412 = vld [vmem:[%s3 + $0x5c8] sm:$0xff]
  %v413 = vld [vmem:[%s3 + $0x5d0] sm:$0xff]
  %v414 = vld [vmem:[%s3 + $0x5d8] sm:$0xff]
  %v415 = vld [vmem:[%s3 + $0x5e0] sm:$0xff]
  %v416 = vld [vmem:[%s3 + $0x5e8] sm:$0xff]
  %v417 = vld [vmem:[%s3 + $0x5f0] sm:$0xff]
  %v418 = vld [vmem:[%s3 + $0x5f8] sm:$0xff]
  %v419 = vld [vmem:[%s3 + $0x600] sm:$0xff]
  %v420 = vld [vmem:[%s3 + $0x608] sm:$0xff]
  %v421 = vld [vmem:[%s3 + $0x610] sm:$0xff]
  %v422 = vld [vmem:[%s3 + $0x618] sm:$0xff]
  %v423 = vld [vmem:[%s3 + $0x620] sm:$0xff]
  %v424 = vld [vmem:[%s3 + $0x628] sm:$0xff]
  %v425 = vld [vmem:[%s3 + $0x630] sm:$0xff]
  %v426 = vld [vmem:[%s3 + $0x638] sm:$0xff]
  %v427 = vld [vmem:[%s3 + $0x640] sm:$0xff]
  %v428 = vld [vmem:[%s3 + $0x648] sm:$0xff]
  %v429 = vld [vmem:[%s3 + $0x650] sm:$0xff]
  %v430 = vld [vmem:[%s3 + $0x658] sm:$0xff]
  %v431 = vld [vmem:[%s3 + $0x660] sm:$0xff]
  %v432 = vld [vmem:[%s3 + $0x668] sm:$0xff]
  %v433 = vld [vmem:[%s3 + $0x670] sm:$0xff]
  %v434 = vld [vmem:[%s3 + $0x678] sm:$0xff]
  %v435 = vld [vmem:[%s3 + $0x680] sm:$0xff]
  %v436 = vld [vmem:[%s3 + $0x688] sm:$0xff]
  %v437 = vld [vmem:[%s3 + $0x690] sm:$0xff]
  %v438 = vld [vmem:[%s3 + $0x698] sm:$0xff]
  %v439 = vld [vmem:[%s3 + $0x6a0] sm:$0xff]
  %v440 = vld [vmem:[%s3 + $0x6a8] sm:$0xff]
  %v441 = vld [vmem:[%s3 + $0x6b0] sm:$0xff]
  %v442 = vld [vmem:[%s3 + $0x6b8] sm:$0xff]
  %v443 = vld [vmem:[%s3 + $0x6c0] sm:$0xff]
  %v444 = vld [vmem:[%s3 + $0x6c8] sm:$0xff]
  %v445 = vld [vmem:[%s3 + $0x6d0] sm:$0xff]
  %v446 = vld [vmem:[%s3 + $0x6d8] sm:$0xff]
  %v447 = vld [vmem:[%s3 + $0x6e0] sm:$0xff]
  %v448 = vld [vmem:[%s3 + $0x6e8] sm:$0xff]
  %v449 = vld [vmem:[%s3 + $0x6f0] sm:$0xff]
  %v450 = vld [vmem:[%s3 + $0x6f8] sm:$0xff]
  %v451 = vld [vmem:[%s3 + $0x700] sm:$0xff]
  %v452 = vld [vmem:[%s3 + $0x708] sm:$0xff]
  %v453 = vld [vmem:[%s3 + $0x710] sm:$0xff]
  %v454 = vld [vmem:[%s3 + $0x718] sm:$0xff]
  %v455 = vld [vmem:[%s3 + $0x720] sm:$0xff]
  %v456 = vld [vmem:[%s3 + $0x728] sm:$0xff]
  %v457 = vld [vmem:[%s3 + $0x730] sm:$0xff]
  %v458 = vld [vmem:[%s3 + $0x738] sm:$0xff]
  %v459 = vld [vmem:[%s3 + $0x740] sm:$0xff]
  %v460 = vld [vmem:[%s3 + $0x748] sm:$0xff]
  %v461 = vld [vmem:[%s3 + $0x750] sm:$0xff]
  %v462 = vld [vmem:[%s3 + $0x758] sm:$0xff]
  %v463 = vld [vmem:[%s3 + $0x760] sm:$0xff]
  %v464 = vld [vmem:[%s3 + $0x768] sm:$0xff]
  %v465 = vld [vmem:[%s3 + $0x770] sm:$0xff]
  %v466 = vld [vmem:[%s3 + $0x778] sm:$0xff]
  %v467 = vld [vmem:[%s3 + $0x780] sm:$0xff]
  %v468 = vld [vmem:[%s3 + $0x788] sm:$0xff]
  %v469 = vld [vmem:[%s3 + $0x790] sm:$0xff]
  %v470 = vld [vmem:[%s3 + $0x798] sm:$0xff]
  %v471 = vld [vmem:[%s3 + $0x7a0] sm:$0xff]
  %v472 = vld [vmem:[%s3 + $0x7a8] sm:$0xff]
  %v473 = vld [vmem:[%s3 + $0x7b0] sm:$0xff]
  %v474 = vld [vmem:[%s3 + $0x7b8] sm:$0xff]
  %v475 = vld [vmem:[%s3 + $0x7c0] sm:$0xff]
  %v476 = vld [vmem:[%s3 + $0x7c8] sm:$0xff]
  %v477 = vld [vmem:[%s3 + $0x7d0] sm:$0xff]
  %v478 = vld [vmem:[%s3 + $0x7d8] sm:$0xff]
  %v479 = vld [vmem:[%s3 + $0x7e0] sm:$0xff]
  %v480 = vld [vmem:[%s3 + $0x7e8] sm:$0xff]
  %v481 = vld [vmem:[%s3 + $0x7f0] sm:$0xff]
  %v482 = vld [vmem:[%s3 + $0x7f8] sm:$0xff]
  %v739 = vunpack.c.l.b16 %v227
  %v740 = vunpack.c.h.b16 %v227
  %v741 = vunpack.c.l.b16 %v228
  %v742 = vunpack.c.h.b16 %v228
  %v743 = vunpack.c.l.b16 %v229
  %v744 = vunpack.c.h.b16 %v229
  %v745 = vunpack.c.l.b16 %v230
  %v746 = vunpack.c.h.b16 %v230
  %v747 = vunpack.c.l.b16 %v231
  %v748 = vunpack.c.h.b16 %v231
  %v749 = vunpack.c.l.b16 %v232
  %v750 = vunpack.c.h.b16 %v232
  %v751 = vunpack.c.l.b16 %v233
  %v752 = vunpack.c.h.b16 %v233
  %v753 = vunpack.c.l.b16 %v234
  %v754 = vunpack.c.h.b16 %v234
  %v755 = vunpack.c.l.b16 %v235
  %v756 = vunpack.c.h.b16 %v235
  %v757 = vunpack.c.l.b16 %v236
  %v758 = vunpack.c.h.b16 %v236
  %v759 = vunpack.c.l.b16 %v237
  %v760 = vunpack.c.h.b16 %v237
  %v761 = vunpack.c.l.b16 %v238
  %v762 = vunpack.c.h.b16 %v238
  %v763 = vunpack.c.l.b16 %v239
  %v764 = vunpack.c.h.b16 %v239
  %v765 = vunpack.c.l.b16 %v240
  %v766 = vunpack.c.h.b16 %v240
  %v767 = vunpack.c.l.b16 %v241
  %v768 = vunpack.c.h.b16 %v241
  %v769 = vunpack.c.l.b16 %v242
  %v770 = vunpack.c.h.b16 %v242
  %v771 = vunpack.c.l.b16 %v243
  %v772 = vunpack.c.h.b16 %v243
  %v773 = vunpack.c.l.b16 %v244
  %v774 = vunpack.c.h.b16 %v244
  %v775 = vunpack.c.l.b16 %v245
  %v776 = vunpack.c.h.b16 %v245
  %v777 = vunpack.c.l.b16 %v246
  %v778 = vunpack.c.h.b16 %v246
  %v779 = vunpack.c.l.b16 %v247
  %v780 = vunpack.c.h.b16 %v247
  %v781 = vunpack.c.l.b16 %v248
  %v782 = vunpack.c.h.b16 %v248
  %v783 = vunpack.c.l.b16 %v249
  %v784 = vunpack.c.h.b16 %v249
  %v785 = vunpack.c.l.b16 %v250
  %v786 = vunpack.c.h.b16 %v250
  %v787 = vunpack.c.l.b16 %v251
  %v788 = vunpack.c.h.b16 %v251
  %v789 = vunpack.c.l.b16 %v252
  %v790 = vunpack.c.h.b16 %v252
  %v791 = vunpack.c.l.b16 %v253
  %v792 = vunpack.c.h.b16 %v253
  %v793 = vunpack.c.l.b16 %v254
  %v794 = vunpack.c.h.b16 %v254
  %v795 = vunpack.c.l.b16 %v255
  %v796 = vunpack.c.h.b16 %v255
  %v797 = vunpack.c.l.b16 %v256
  %v798 = vunpack.c.h.b16 %v256
  %v799 = vunpack.c.l.b16 %v257
  %v800 = vunpack.c.h.b16 %v257
  %v801 = vunpack.c.l.b16 %v258
  %v802 = vunpack.c.h.b16 %v258
  %v803 = vunpack.c.l.b16 %v259
  %v804 = vunpack.c.h.b16 %v259
  %v805 = vunpack.c.l.b16 %v260
  %v806 = vunpack.c.h.b16 %v260
  %v807 = vunpack.c.l.b16 %v261
  %v808 = vunpack.c.h.b16 %v261
  %v809 = vunpack.c.l.b16 %v262
  %v810 = vunpack.c.h.b16 %v262
  %v811 = vunpack.c.l.b16 %v263
  %v812 = vunpack.c.h.b16 %v263
  %v813 = vunpack.c.l.b16 %v264
  %v814 = vunpack.c.h.b16 %v264
  %v815 = vunpack.c.l.b16 %v265
  %v816 = vunpack.c.h.b16 %v265
  %v817 = vunpack.c.l.b16 %v266
  %v818 = vunpack.c.h.b16 %v266
  %v819 = vunpack.c.l.b16 %v267
  %v820 = vunpack.c.h.b16 %v267
  %v821 = vunpack.c.l.b16 %v268
  %v822 = vunpack.c.h.b16 %v268
  %v823 = vunpack.c.l.b16 %v269
  %v824 = vunpack.c.h.b16 %v269
  %v825 = vunpack.c.l.b16 %v270
  %v826 = vunpack.c.h.b16 %v270
  %v827 = vunpack.c.l.b16 %v271
  %v828 = vunpack.c.h.b16 %v271
  %v829 = vunpack.c.l.b16 %v272
  %v830 = vunpack.c.h.b16 %v272
  %v831 = vunpack.c.l.b16 %v273
  %v832 = vunpack.c.h.b16 %v273
  %v833 = vunpack.c.l.b16 %v274
  %v834 = vunpack.c.h.b16 %v274
  %v835 = vunpack.c.l.b16 %v275
  %v836 = vunpack.c.h.b16 %v275
  %v837 = vunpack.c.l.b16 %v276
  %v838 = vunpack.c.h.b16 %v276
  %v839 = vunpack.c.l.b16 %v277
  %v840 = vunpack.c.h.b16 %v277
  %v841 = vunpack.c.l.b16 %v278
  %v842 = vunpack.c.h.b16 %v278
  %v843 = vunpack.c.l.b16 %v279
  %v844 = vunpack.c.h.b16 %v279
  %v845 = vunpack.c.l.b16 %v280
  %v846 = vunpack.c.h.b16 %v280
  %v847 = vunpack.c.l.b16 %v281
  %v848 = vunpack.c.h.b16 %v281
  %v849 = vunpack.c.l.b16 %v282
  %v850 = vunpack.c.h.b16 %v282
  %v851 = vunpack.c.l.b16 %v283
  %v852 = vunpack.c.h.b16 %v283
  %v853 = vunpack.c.l.b16 %v284
  %v854 = vunpack.c.h.b16 %v284
  %v855 = vunpack.c.l.b16 %v285
  %v856 = vunpack.c.h.b16 %v285
  %v857 = vunpack.c.l.b16 %v286
  %v858 = vunpack.c.h.b16 %v286
  %v859 = vunpack.c.l.b16 %v287
  %v860 = vunpack.c.h.b16 %v287
  %v861 = vunpack.c.l.b16 %v288
  %v862 = vunpack.c.h.b16 %v288
  %v863 = vunpack.c.l.b16 %v289
  %v864 = vunpack.c.h.b16 %v289
  %v865 = vunpack.c.l.b16 %v290
  %v866 = vunpack.c.h.b16 %v290
  %v867 = vunpack.c.l.b16 %v291
  %v868 = vunpack.c.h.b16 %v291
  %v869 = vunpack.c.l.b16 %v292
  %v870 = vunpack.c.h.b16 %v292
  %v871 = vunpack.c.l.b16 %v293
  %v872 = vunpack.c.h.b16 %v293
  %v873 = vunpack.c.l.b16 %v294
  %v874 = vunpack.c.h.b16 %v294
  %v875 = vunpack.c.l.b16 %v295
  %v876 = vunpack.c.h.b16 %v295
  %v877 = vunpack.c.l.b16 %v296
  %v878 = vunpack.c.h.b16 %v296
  %v879 = vunpack.c.l.b16 %v297
  %v880 = vunpack.c.h.b16 %v297
  %v881 = vunpack.c.l.b16 %v298
  %v882 = vunpack.c.h.b16 %v298
  %v883 = vunpack.c.l.b16 %v299
  %v884 = vunpack.c.h.b16 %v299
  %v885 = vunpack.c.l.b16 %v300
  %v886 = vunpack.c.h.b16 %v300
  %v887 = vunpack.c.l.b16 %v301
  %v888 = vunpack.c.h.b16 %v301
  %v889 = vunpack.c.l.b16 %v302
  %v890 = vunpack.c.h.b16 %v302
  %v891 = vunpack.c.l.b16 %v303
  %v892 = vunpack.c.h.b16 %v303
  %v893 = vunpack.c.l.b16 %v304
  %v894 = vunpack.c.h.b16 %v304
  %v895 = vunpack.c.l.b16 %v305
  %v896 = vunpack.c.h.b16 %v305
  %v897 = vunpack.c.l.b16 %v306
  %v898 = vunpack.c.h.b16 %v306
  %v899 = vunpack.c.l.b16 %v307
  %v900 = vunpack.c.h.b16 %v307
  %v901 = vunpack.c.l.b16 %v308
  %v902 = vunpack.c.h.b16 %v308
  %v903 = vunpack.c.l.b16 %v309
  %v904 = vunpack.c.h.b16 %v309
  %v905 = vunpack.c.l.b16 %v310
  %v906 = vunpack.c.h.b16 %v310
  %v907 = vunpack.c.l.b16 %v311
  %v908 = vunpack.c.h.b16 %v311
  %v909 = vunpack.c.l.b16 %v312
  %v910 = vunpack.c.h.b16 %v312
  %v911 = vunpack.c.l.b16 %v313
  %v912 = vunpack.c.h.b16 %v313
  %v913 = vunpack.c.l.b16 %v314
  %v914 = vunpack.c.h.b16 %v314
  %v915 = vunpack.c.l.b16 %v315
  %v916 = vunpack.c.h.b16 %v315
  %v917 = vunpack.c.l.b16 %v316
  %v918 = vunpack.c.h.b16 %v316
  %v919 = vunpack.c.l.b16 %v317
  %v920 = vunpack.c.h.b16 %v317
  %v921 = vunpack.c.l.b16 %v318
  %v922 = vunpack.c.h.b16 %v318
  %v923 = vunpack.c.l.b16 %v319
  %v924 = vunpack.c.h.b16 %v319
  %v925 = vunpack.c.l.b16 %v320
  %v926 = vunpack.c.h.b16 %v320
  %v927 = vunpack.c.l.b16 %v321
  %v928 = vunpack.c.h.b16 %v321
  %v929 = vunpack.c.l.b16 %v322
  %v930 = vunpack.c.h.b16 %v322
  %v931 = vunpack.c.l.b16 %v323
  %v932 = vunpack.c.h.b16 %v323
  %v933 = vunpack.c.l.b16 %v324
  %v934 = vunpack.c.h.b16 %v324
  %v935 = vunpack.c.l.b16 %v325
  %v936 = vunpack.c.h.b16 %v325
  %v937 = vunpack.c.l.b16 %v326
  %v938 = vunpack.c.h.b16 %v326
  %v939 = vunpack.c.l.b16 %v327
  %v940 = vunpack.c.h.b16 %v327
  %v941 = vunpack.c.l.b16 %v328
  %v942 = vunpack.c.h.b16 %v328
  %v943 = vunpack.c.l.b16 %v329
  %v944 = vunpack.c.h.b16 %v329
  %v945 = vunpack.c.l.b16 %v330
  %v946 = vunpack.c.h.b16 %v330
  %v947 = vunpack.c.l.b16 %v331
  %v948 = vunpack.c.h.b16 %v331
  %v949 = vunpack.c.l.b16 %v332
  %v950 = vunpack.c.h.b16 %v332
  %v951 = vunpack.c.l.b16 %v333
  %v952 = vunpack.c.h.b16 %v333
  %v953 = vunpack.c.l.b16 %v334
  %v954 = vunpack.c.h.b16 %v334
  %v955 = vunpack.c.l.b16 %v335
  %v956 = vunpack.c.h.b16 %v335
  %v957 = vunpack.c.l.b16 %v336
  %v958 = vunpack.c.h.b16 %v336
  %v959 = vunpack.c.l.b16 %v337
  %v960 = vunpack.c.h.b16 %v337
  %v961 = vunpack.c.l.b16 %v338
  %v962 = vunpack.c.h.b16 %v338
  %v963 = vunpack.c.l.b16 %v339
  %v964 = vunpack.c.h.b16 %v339
  %v965 = vunpack.c.l.b16 %v340
  %v966 = vunpack.c.h.b16 %v340
  %v967 = vunpack.c.l.b16 %v341
  %v968 = vunpack.c.h.b16 %v341
  %v969 = vunpack.c.l.b16 %v342
  %v970 = vunpack.c.h.b16 %v342
  %v971 = vunpack.c.l.b16 %v343
  %v972 = vunpack.c.h.b16 %v343
  %v973 = vunpack.c.l.b16 %v344
  %v974 = vunpack.c.h.b16 %v344
  %v975 = vunpack.c.l.b16 %v345
  %v976 = vunpack.c.h.b16 %v345
  %v977 = vunpack.c.l.b16 %v346
  %v978 = vunpack.c.h.b16 %v346
  %v979 = vunpack.c.l.b16 %v347
  %v980 = vunpack.c.h.b16 %v347
  %v981 = vunpack.c.l.b16 %v348
  %v982 = vunpack.c.h.b16 %v348
  %v983 = vunpack.c.l.b16 %v349
  %v984 = vunpack.c.h.b16 %v349
  %v985 = vunpack.c.l.b16 %v350
  %v986 = vunpack.c.h.b16 %v350
  %v987 = vunpack.c.l.b16 %v351
  %v988 = vunpack.c.h.b16 %v351
  %v989 = vunpack.c.l.b16 %v352
  %v990 = vunpack.c.h.b16 %v352
  %v991 = vunpack.c.l.b16 %v353
  %v992 = vunpack.c.h.b16 %v353
  %v993 = vunpack.c.l.b16 %v354
  %v994 = vunpack.c.h.b16 %v354
  %v995 = vunpack.c.l.b16 %v355
  %v996 = vunpack.c.h.b16 %v355
  %v997 = vunpack.c.l.b16 %v356
  %v998 = vunpack.c.h.b16 %v356
  %v999 = vunpack.c.l.b16 %v357
  %v1000 = vunpack.c.h.b16 %v357
  %v1001 = vunpack.c.l.b16 %v358
  %v1002 = vunpack.c.h.b16 %v358
  %v1003 = vunpack.c.l.b16 %v359
  %v1004 = vunpack.c.h.b16 %v359
  %v1005 = vunpack.c.l.b16 %v360
  %v1006 = vunpack.c.h.b16 %v360
  %v1007 = vunpack.c.l.b16 %v361
  %v1008 = vunpack.c.h.b16 %v361
  %v1009 = vunpack.c.l.b16 %v362
  %v1010 = vunpack.c.h.b16 %v362
  %v1011 = vunpack.c.l.b16 %v363
  %v1012 = vunpack.c.h.b16 %v363
  %v1013 = vunpack.c.l.b16 %v364
  %v1014 = vunpack.c.h.b16 %v364
  %v1015 = vunpack.c.l.b16 %v365
  %v1016 = vunpack.c.h.b16 %v365
  %v1017 = vunpack.c.l.b16 %v366
  %v1018 = vunpack.c.h.b16 %v366
  %v1019 = vunpack.c.l.b16 %v367
  %v1020 = vunpack.c.h.b16 %v367
  %v1021 = vunpack.c.l.b16 %v368
  %v1022 = vunpack.c.h.b16 %v368
  %v1023 = vunpack.c.l.b16 %v369
  %v1024 = vunpack.c.h.b16 %v369
  %v1025 = vunpack.c.l.b16 %v370
  %v1026 = vunpack.c.h.b16 %v370
  %v1027 = vunpack.c.l.b16 %v371
  %v1028 = vunpack.c.h.b16 %v371
  %v1029 = vunpack.c.l.b16 %v372
  %v1030 = vunpack.c.h.b16 %v372
  %v1031 = vunpack.c.l.b16 %v373
  %v1032 = vunpack.c.h.b16 %v373
  %v1033 = vunpack.c.l.b16 %v374
  %v1034 = vunpack.c.h.b16 %v374
  %v1035 = vunpack.c.l.b16 %v375
  %v1036 = vunpack.c.h.b16 %v375
  %v1037 = vunpack.c.l.b16 %v376
  %v1038 = vunpack.c.h.b16 %v376
  %v1039 = vunpack.c.l.b16 %v377
  %v1040 = vunpack.c.h.b16 %v377
  %v1041 = vunpack.c.l.b16 %v378
  %v1042 = vunpack.c.h.b16 %v378
  %v1043 = vunpack.c.l.b16 %v379
  %v1044 = vunpack.c.h.b16 %v379
  %v1045 = vunpack.c.l.b16 %v380
  %v1046 = vunpack.c.h.b16 %v380
  %v1047 = vunpack.c.l.b16 %v381
  %v1048 = vunpack.c.h.b16 %v381
  %v1049 = vunpack.c.l.b16 %v382
  %v1050 = vunpack.c.h.b16 %v382
  %v1051 = vunpack.c.l.b16 %v383
  %v1052 = vunpack.c.h.b16 %v383
  %v1053 = vunpack.c.l.b16 %v384
  %v1054 = vunpack.c.h.b16 %v384
  %v1055 = vunpack.c.l.b16 %v385
  %v1056 = vunpack.c.h.b16 %v385
  %v1057 = vunpack.c.l.b16 %v386
  %v1058 = vunpack.c.h.b16 %v386
  %v1059 = vunpack.c.l.b16 %v387
  %v1060 = vunpack.c.h.b16 %v387
  %v1061 = vunpack.c.l.b16 %v388
  %v1062 = vunpack.c.h.b16 %v388
  %v1063 = vunpack.c.l.b16 %v389
  %v1064 = vunpack.c.h.b16 %v389
  %v1065 = vunpack.c.l.b16 %v390
  %v1066 = vunpack.c.h.b16 %v390
  %v1067 = vunpack.c.l.b16 %v391
  %v1068 = vunpack.c.h.b16 %v391
  %v1069 = vunpack.c.l.b16 %v392
  %v1070 = vunpack.c.h.b16 %v392
  %v1071 = vunpack.c.l.b16 %v393
  %v1072 = vunpack.c.h.b16 %v393
  %v1073 = vunpack.c.l.b16 %v394
  %v1074 = vunpack.c.h.b16 %v394
  %v1075 = vunpack.c.l.b16 %v395
  %v1076 = vunpack.c.h.b16 %v395
  %v1077 = vunpack.c.l.b16 %v396
  %v1078 = vunpack.c.h.b16 %v396
  %v1079 = vunpack.c.l.b16 %v397
  %v1080 = vunpack.c.h.b16 %v397
  %v1081 = vunpack.c.l.b16 %v398
  %v1082 = vunpack.c.h.b16 %v398
  %v1083 = vunpack.c.l.b16 %v399
  %v1084 = vunpack.c.h.b16 %v399
  %v1085 = vunpack.c.l.b16 %v400
  %v1086 = vunpack.c.h.b16 %v400
  %v1087 = vunpack.c.l.b16 %v401
  %v1088 = vunpack.c.h.b16 %v401
  %v1089 = vunpack.c.l.b16 %v402
  %v1090 = vunpack.c.h.b16 %v402
  %v1091 = vunpack.c.l.b16 %v403
  %v1092 = vunpack.c.h.b16 %v403
  %v1093 = vunpack.c.l.b16 %v404
  %v1094 = vunpack.c.h.b16 %v404
  %v1095 = vunpack.c.l.b16 %v405
  %v1096 = vunpack.c.h.b16 %v405
  %v1097 = vunpack.c.l.b16 %v406
  %v1098 = vunpack.c.h.b16 %v406
  %v1099 = vunpack.c.l.b16 %v407
  %v1100 = vunpack.c.h.b16 %v407
  %v1101 = vunpack.c.l.b16 %v408
  %v1102 = vunpack.c.h.b16 %v408
  %v1103 = vunpack.c.l.b16 %v409
  %v1104 = vunpack.c.h.b16 %v409
  %v1105 = vunpack.c.l.b16 %v410
  %v1106 = vunpack.c.h.b16 %v410
  %v1107 = vunpack.c.l.b16 %v411
  %v1108 = vunpack.c.h.b16 %v411
  %v1109 = vunpack.c.l.b16 %v412
  %v1110 = vunpack.c.h.b16 %v412
  %v1111 = vunpack.c.l.b16 %v413
  %v1112 = vunpack.c.h.b16 %v413
  %v1113 = vunpack.c.l.b16 %v414
  %v1114 = vunpack.c.h.b16 %v414
  %v1115 = vunpack.c.l.b16 %v415
  %v1116 = vunpack.c.h.b16 %v415
  %v1117 = vunpack.c.l.b16 %v416
  %v1118 = vunpack.c.h.b16 %v416
  %v1119 = vunpack.c.l.b16 %v417
  %v1120 = vunpack.c.h.b16 %v417
  %v1121 = vunpack.c.l.b16 %v418
  %v1122 = vunpack.c.h.b16 %v418
  %v1123 = vunpack.c.l.b16 %v419
  %v1124 = vunpack.c.h.b16 %v419
  %v1125 = vunpack.c.l.b16 %v420
  %v1126 = vunpack.c.h.b16 %v420
  %v1127 = vunpack.c.l.b16 %v421
  %v1128 = vunpack.c.h.b16 %v421
  %v1129 = vunpack.c.l.b16 %v422
  %v1130 = vunpack.c.h.b16 %v422
  %v1131 = vunpack.c.l.b16 %v423
  %v1132 = vunpack.c.h.b16 %v423
  %v1133 = vunpack.c.l.b16 %v424
  %v1134 = vunpack.c.h.b16 %v424
  %v1135 = vunpack.c.l.b16 %v425
  %v1136 = vunpack.c.h.b16 %v425
  %v1137 = vunpack.c.l.b16 %v426
  %v1138 = vunpack.c.h.b16 %v426
  %v1139 = vunpack.c.l.b16 %v427
  %v1140 = vunpack.c.h.b16 %v427
  %v1141 = vunpack.c.l.b16 %v428
  %v1142 = vunpack.c.h.b16 %v428
  %v1143 = vunpack.c.l.b16 %v429
  %v1144 = vunpack.c.h.b16 %v429
  %v1145 = vunpack.c.l.b16 %v430
  %v1146 = vunpack.c.h.b16 %v430
  %v1147 = vunpack.c.l.b16 %v431
  %v1148 = vunpack.c.h.b16 %v431
  %v1149 = vunpack.c.l.b16 %v432
  %v1150 = vunpack.c.h.b16 %v432
  %v1151 = vunpack.c.l.b16 %v433
  %v1152 = vunpack.c.h.b16 %v433
  %v1153 = vunpack.c.l.b16 %v434
  %v1154 = vunpack.c.h.b16 %v434
  %v1155 = vunpack.c.l.b16 %v435
  %v1156 = vunpack.c.h.b16 %v435
  %v1157 = vunpack.c.l.b16 %v436
  %v1158 = vunpack.c.h.b16 %v436
  %v1159 = vunpack.c.l.b16 %v437
  %v1160 = vunpack.c.h.b16 %v437
  %v1161 = vunpack.c.l.b16 %v438
  %v1162 = vunpack.c.h.b16 %v438
  %v1163 = vunpack.c.l.b16 %v439
  %v1164 = vunpack.c.h.b16 %v439
  %v1165 = vunpack.c.l.b16 %v440
  %v1166 = vunpack.c.h.b16 %v440
  %v1167 = vunpack.c.l.b16 %v441
  %v1168 = vunpack.c.h.b16 %v441
  %v1169 = vunpack.c.l.b16 %v442
  %v1170 = vunpack.c.h.b16 %v442
  %v1171 = vunpack.c.l.b16 %v443
  %v1172 = vunpack.c.h.b16 %v443
  %v1173 = vunpack.c.l.b16 %v444
  %v1174 = vunpack.c.h.b16 %v444
  %v1175 = vunpack.c.l.b16 %v445
  %v1176 = vunpack.c.h.b16 %v445
  %v1177 = vunpack.c.l.b16 %v446
  %v1178 = vunpack.c.h.b16 %v446
  %v1179 = vunpack.c.l.b16 %v447
  %v1180 = vunpack.c.h.b16 %v447
  %v1181 = vunpack.c.l.b16 %v448
  %v1182 = vunpack.c.h.b16 %v448
  %v1183 = vunpack.c.l.b16 %v449
  %v1184 = vunpack.c.h.b16 %v449
  %v1185 = vunpack.c.l.b16 %v450
  %v1186 = vunpack.c.h.b16 %v450
  %v1187 = vunpack.c.l.b16 %v451
  %v1188 = vunpack.c.h.b16 %v451
  %v1189 = vunpack.c.l.b16 %v452
  %v1190 = vunpack.c.h.b16 %v452
  %v1191 = vunpack.c.l.b16 %v453
  %v1192 = vunpack.c.h.b16 %v453
  %v1193 = vunpack.c.l.b16 %v454
  %v1194 = vunpack.c.h.b16 %v454
  %v1195 = vunpack.c.l.b16 %v455
  %v1196 = vunpack.c.h.b16 %v455
  %v1197 = vunpack.c.l.b16 %v456
  %v1198 = vunpack.c.h.b16 %v456
  %v1199 = vunpack.c.l.b16 %v457
  %v1200 = vunpack.c.h.b16 %v457
  %v1201 = vunpack.c.l.b16 %v458
  %v1202 = vunpack.c.h.b16 %v458
  %v1203 = vunpack.c.l.b16 %v459
  %v1204 = vunpack.c.h.b16 %v459
  %v1205 = vunpack.c.l.b16 %v460
  %v1206 = vunpack.c.h.b16 %v460
  %v1207 = vunpack.c.l.b16 %v461
  %v1208 = vunpack.c.h.b16 %v461
  %v1209 = vunpack.c.l.b16 %v462
  %v1210 = vunpack.c.h.b16 %v462
  %v1211 = vunpack.c.l.b16 %v463
  %v1212 = vunpack.c.h.b16 %v463
  %v1213 = vunpack.c.l.b16 %v464
  %v1214 = vunpack.c.h.b16 %v464
  %v1215 = vunpack.c.l.b16 %v465
  %v1216 = vunpack.c.h.b16 %v465
  %v1217 = vunpack.c.l.b16 %v466
  %v1218 = vunpack.c.h.b16 %v466
  %v1219 = vunpack.c.l.b16 %v467
  %v1220 = vunpack.c.h.b16 %v467
  %v1221 = vunpack.c.l.b16 %v468
  %v1222 = vunpack.c.h.b16 %v468
  %v1223 = vunpack.c.l.b16 %v469
  %v1224 = vunpack.c.h.b16 %v469
  %v1225 = vunpack.c.l.b16 %v470
  %v1226 = vunpack.c.h.b16 %v470
  %v1227 = vunpack.c.l.b16 %v471
  %v1228 = vunpack.c.h.b16 %v471
  %v1229 = vunpack.c.l.b16 %v472
  %v1230 = vunpack.c.h.b16 %v472
  %v1231 = vunpack.c.l.b16 %v473
  %v1232 = vunpack.c.h.b16 %v473
  %v1233 = vunpack.c.l.b16 %v474
  %v1234 = vunpack.c.h.b16 %v474
  %v1235 = vunpack.c.l.b16 %v475
  %v1236 = vunpack.c.h.b16 %v475
  %v1237 = vunpack.c.l.b16 %v476
  %v1238 = vunpack.c.h.b16 %v476
  %v1239 = vunpack.c.l.b16 %v477
  %v1240 = vunpack.c.h.b16 %v477
  %v1241 = vunpack.c.l.b16 %v478
  %v1242 = vunpack.c.h.b16 %v478
  %v1243 = vunpack.c.l.b16 %v479
  %v1244 = vunpack.c.h.b16 %v479
  %v1245 = vunpack.c.l.b16 %v480
  %v1246 = vunpack.c.h.b16 %v480
  %v1247 = vunpack.c.l.b16 %v481
  %v1248 = vunpack.c.h.b16 %v481
  %v1249 = vunpack.c.l.b16 %v482
  %v1250 = vunpack.c.h.b16 %v482
  %v1251 = vpack.c.b16 %v747, %v739
  %v1252 = vpack.c.b16 %v748, %v740
  %v1253 = vpack.c.b16 %v749, %v741
  %v1254 = vpack.c.b16 %v750, %v742
  %v1255 = vpack.c.b16 %v751, %v743
  %v1256 = vpack.c.b16 %v752, %v744
  %v1257 = vpack.c.b16 %v753, %v745
  %v1258 = vpack.c.b16 %v754, %v746
  %v1259 = vpack.c.b16 %v763, %v755
  %v1260 = vpack.c.b16 %v764, %v756
  %v1261 = vpack.c.b16 %v765, %v757
  %v1262 = vpack.c.b16 %v766, %v758
  %v1263 = vpack.c.b16 %v767, %v759
  %v1264 = vpack.c.b16 %v768, %v760
  %v1265 = vpack.c.b16 %v769, %v761
  %v1266 = vpack.c.b16 %v770, %v762
  %v1267 = vpack.c.b16 %v779, %v771
  %v1268 = vpack.c.b16 %v780, %v772
  %v1269 = vpack.c.b16 %v781, %v773
  %v1270 = vpack.c.b16 %v782, %v774
  %v1271 = vpack.c.b16 %v783, %v775
  %v1272 = vpack.c.b16 %v784, %v776
  %v1273 = vpack.c.b16 %v785, %v777
  %v1274 = vpack.c.b16 %v786, %v778
  %v1275 = vpack.c.b16 %v795, %v787
  %v1276 = vpack.c.b16 %v796, %v788
  %v1277 = vpack.c.b16 %v797, %v789
  %v1278 = vpack.c.b16 %v798, %v790
  %v1279 = vpack.c.b16 %v799, %v791
  %v1280 = vpack.c.b16 %v800, %v792
  %v1281 = vpack.c.b16 %v801, %v793
  %v1282 = vpack.c.b16 %v802, %v794
  %v1283 = vpack.c.b16 %v811, %v803
  %v1284 = vpack.c.b16 %v812, %v804
  %v1285 = vpack.c.b16 %v813, %v805
  %v1286 = vpack.c.b16 %v814, %v806
  %v1287 = vpack.c.b16 %v815, %v807
  %v1288 = vpack.c.b16 %v816, %v808
  %v1289 = vpack.c.b16 %v817, %v809
  %v1290 = vpack.c.b16 %v818, %v810
  %v1291 = vpack.c.b16 %v827, %v819
  %v1292 = vpack.c.b16 %v828, %v820
  %v1293 = vpack.c.b16 %v829, %v821
  %v1294 = vpack.c.b16 %v830, %v822
  %v1295 = vpack.c.b16 %v831, %v823
  %v1296 = vpack.c.b16 %v832, %v824
  %v1297 = vpack.c.b16 %v833, %v825
  %v1298 = vpack.c.b16 %v834, %v826
  %v1299 = vpack.c.b16 %v843, %v835
  %v1300 = vpack.c.b16 %v844, %v836
  %v1301 = vpack.c.b16 %v845, %v837
  %v1302 = vpack.c.b16 %v846, %v838
  %v1303 = vpack.c.b16 %v847, %v839
  %v1304 = vpack.c.b16 %v848, %v840
  %v1305 = vpack.c.b16 %v849, %v841
  %v1306 = vpack.c.b16 %v850, %v842
  %v1307 = vpack.c.b16 %v859, %v851
  %v1308 = vpack.c.b16 %v860, %v852
  %v1309 = vpack.c.b16 %v861, %v853
  %v1310 = vpack.c.b16 %v862, %v854
  %v1311 = vpack.c.b16 %v863, %v855
  %v1312 = vpack.c.b16 %v864, %v856
  %v1313 = vpack.c.b16 %v865, %v857
  %v1314 = vpack.c.b16 %v866, %v858
  %v1315 = vpack.c.b16 %v875, %v867
  %v1316 = vpack.c.b16 %v876, %v868
  %v1317 = vpack.c.b16 %v877, %v869
  %v1318 = vpack.c.b16 %v878, %v870
  %v1319 = vpack.c.b16 %v879, %v871
  %v1320 = vpack.c.b16 %v880, %v872
  %v1321 = vpack.c.b16 %v881, %v873
  %v1322 = vpack.c.b16 %v882, %v874
  %v1323 = vpack.c.b16 %v891, %v883
  %v1324 = vpack.c.b16 %v892, %v884
  %v1325 = vpack.c.b16 %v893, %v885
  %v1326 = vpack.c.b16 %v894, %v886
  %v1327 = vpack.c.b16 %v895, %v887
  %v1328 = vpack.c.b16 %v896, %v888
  %v1329 = vpack.c.b16 %v897, %v889
  %v1330 = vpack.c.b16 %v898, %v890
  %v1331 = vpack.c.b16 %v907, %v899
  %v1332 = vpack.c.b16 %v908, %v900
  %v1333 = vpack.c.b16 %v909, %v901
  %v1334 = vpack.c.b16 %v910, %v902
  %v1335 = vpack.c.b16 %v911, %v903
  %v1336 = vpack.c.b16 %v912, %v904
  %v1337 = vpack.c.b16 %v913, %v905
  %v1338 = vpack.c.b16 %v914, %v906
  %v1339 = vpack.c.b16 %v923, %v915
  %v1340 = vpack.c.b16 %v924, %v916
  %v1341 = vpack.c.b16 %v925, %v917
  %v1342 = vpack.c.b16 %v926, %v918
  %v1343 = vpack.c.b16 %v927, %v919
  %v1344 = vpack.c.b16 %v928, %v920
  %v1345 = vpack.c.b16 %v929, %v921
  %v1346 = vpack.c.b16 %v930, %v922
  %v1347 = vpack.c.b16 %v939, %v931
  %v1348 = vpack.c.b16 %v940, %v932
  %v1349 = vpack.c.b16 %v941, %v933
  %v1350 = vpack.c.b16 %v942, %v934
  %v1351 = vpack.c.b16 %v943, %v935
  %v1352 = vpack.c.b16 %v944, %v936
  %v1353 = vpack.c.b16 %v945, %v937
  %v1354 = vpack.c.b16 %v946, %v938
  %v1355 = vpack.c.b16 %v955, %v947
  %v1356 = vpack.c.b16 %v956, %v948
  %v1357 = vpack.c.b16 %v957, %v949
  %v1358 = vpack.c.b16 %v958, %v950
  %v1359 = vpack.c.b16 %v959, %v951
  %v1360 = vpack.c.b16 %v960, %v952
  %v1361 = vpack.c.b16 %v961, %v953
  %v1362 = vpack.c.b16 %v962, %v954
  %v1363 = vpack.c.b16 %v971, %v963
  %v1364 = vpack.c.b16 %v972, %v964
  %v1365 = vpack.c.b16 %v973, %v965
  %v1366 = vpack.c.b16 %v974, %v966
  %v1367 = vpack.c.b16 %v975, %v967
  %v1368 = vpack.c.b16 %v976, %v968
  %v1369 = vpack.c.b16 %v977, %v969
  %v1370 = vpack.c.b16 %v978, %v970
  %v1371 = vpack.c.b16 %v987, %v979
  %v1372 = vpack.c.b16 %v988, %v980
  %v1373 = vpack.c.b16 %v989, %v981
  %v1374 = vpack.c.b16 %v990, %v982
  %v1375 = vpack.c.b16 %v991, %v983
  %v1376 = vpack.c.b16 %v992, %v984
  %v1377 = vpack.c.b16 %v993, %v985
  %v1378 = vpack.c.b16 %v994, %v986
  %v1379 = vpack.c.b16 %v1003, %v995
  %v1380 = vpack.c.b16 %v1004, %v996
  %v1381 = vpack.c.b16 %v1005, %v997
  %v1382 = vpack.c.b16 %v1006, %v998
  %v1383 = vpack.c.b16 %v1007, %v999
  %v1384 = vpack.c.b16 %v1008, %v1000
  %v1385 = vpack.c.b16 %v1009, %v1001
  %v1386 = vpack.c.b16 %v1010, %v1002
  %v1387 = vpack.c.b16 %v1019, %v1011
  %v1388 = vpack.c.b16 %v1020, %v1012
  %v1389 = vpack.c.b16 %v1021, %v1013
  %v1390 = vpack.c.b16 %v1022, %v1014
  %v1391 = vpack.c.b16 %v1023, %v1015
  %v1392 = vpack.c.b16 %v1024, %v1016
  %v1393 = vpack.c.b16 %v1025, %v1017
  %v1394 = vpack.c.b16 %v1026, %v1018
  %v1395 = vpack.c.b16 %v1035, %v1027
  %v1396 = vpack.c.b16 %v1036, %v1028
  %v1397 = vpack.c.b16 %v1037, %v1029
  %v1398 = vpack.c.b16 %v1038, %v1030
  %v1399 = vpack.c.b16 %v1039, %v1031
  %v1400 = vpack.c.b16 %v1040, %v1032
  %v1401 = vpack.c.b16 %v1041, %v1033
  %v1402 = vpack.c.b16 %v1042, %v1034
  %v1403 = vpack.c.b16 %v1051, %v1043
  %v1404 = vpack.c.b16 %v1052, %v1044
  %v1405 = vpack.c.b16 %v1053, %v1045
  %v1406 = vpack.c.b16 %v1054, %v1046
  %v1407 = vpack.c.b16 %v1055, %v1047
  %v1408 = vpack.c.b16 %v1056, %v1048
  %v1409 = vpack.c.b16 %v1057, %v1049
  %v1410 = vpack.c.b16 %v1058, %v1050
  %v1411 = vpack.c.b16 %v1067, %v1059
  %v1412 = vpack.c.b16 %v1068, %v1060
  %v1413 = vpack.c.b16 %v1069, %v1061
  %v1414 = vpack.c.b16 %v1070, %v1062
  %v1415 = vpack.c.b16 %v1071, %v1063
  %v1416 = vpack.c.b16 %v1072, %v1064
  %v1417 = vpack.c.b16 %v1073, %v1065
  %v1418 = vpack.c.b16 %v1074, %v1066
  %v1419 = vpack.c.b16 %v1083, %v1075
  %v1420 = vpack.c.b16 %v1084, %v1076
  %v1421 = vpack.c.b16 %v1085, %v1077
  %v1422 = vpack.c.b16 %v1086, %v1078
  %v1423 = vpack.c.b16 %v1087, %v1079
  %v1424 = vpack.c.b16 %v1088, %v1080
  %v1425 = vpack.c.b16 %v1089, %v1081
  %v1426 = vpack.c.b16 %v1090, %v1082
  %v1427 = vpack.c.b16 %v1099, %v1091
  %v1428 = vpack.c.b16 %v1100, %v1092
  %v1429 = vpack.c.b16 %v1101, %v1093
  %v1430 = vpack.c.b16 %v1102, %v1094
  %v1431 = vpack.c.b16 %v1103, %v1095
  %v1432 = vpack.c.b16 %v1104, %v1096
  %v1433 = vpack.c.b16 %v1105, %v1097
  %v1434 = vpack.c.b16 %v1106, %v1098
  %v1435 = vpack.c.b16 %v1115, %v1107
  %v1436 = vpack.c.b16 %v1116, %v1108
  %v1437 = vpack.c.b16 %v1117, %v1109
  %v1438 = vpack.c.b16 %v1118, %v1110
  %v1439 = vpack.c.b16 %v1119, %v1111
  %v1440 = vpack.c.b16 %v1120, %v1112
  %v1441 = vpack.c.b16 %v1121, %v1113
  %v1442 = vpack.c.b16 %v1122, %v1114
  %v1443 = vpack.c.b16 %v1131, %v1123
  %v1444 = vpack.c.b16 %v1132, %v1124
  %v1445 = vpack.c.b16 %v1133, %v1125
  %v1446 = vpack.c.b16 %v1134, %v1126
  %v1447 = vpack.c.b16 %v1135, %v1127
  %v1448 = vpack.c.b16 %v1136, %v1128
  %v1449 = vpack.c.b16 %v1137, %v1129
  %v1450 = vpack.c.b16 %v1138, %v1130
  %v1451 = vpack.c.b16 %v1147, %v1139
  %v1452 = vpack.c.b16 %v1148, %v1140
  %v1453 = vpack.c.b16 %v1149, %v1141
  %v1454 = vpack.c.b16 %v1150, %v1142
  %v1455 = vpack.c.b16 %v1151, %v1143
  %v1456 = vpack.c.b16 %v1152, %v1144
  %v1457 = vpack.c.b16 %v1153, %v1145
  %v1458 = vpack.c.b16 %v1154, %v1146
  %v1459 = vpack.c.b16 %v1163, %v1155
  %v1460 = vpack.c.b16 %v1164, %v1156
  %v1461 = vpack.c.b16 %v1165, %v1157
  %v1462 = vpack.c.b16 %v1166, %v1158
  %v1463 = vpack.c.b16 %v1167, %v1159
  %v1464 = vpack.c.b16 %v1168, %v1160
  %v1465 = vpack.c.b16 %v1169, %v1161
  %v1466 = vpack.c.b16 %v1170, %v1162
  %v1467 = vpack.c.b16 %v1179, %v1171
  %v1468 = vpack.c.b16 %v1180, %v1172
  %v1469 = vpack.c.b16 %v1181, %v1173
  %v1470 = vpack.c.b16 %v1182, %v1174
  %v1471 = vpack.c.b16 %v1183, %v1175
  %v1472 = vpack.c.b16 %v1184, %v1176
  %v1473 = vpack.c.b16 %v1185, %v1177
  %v1474 = vpack.c.b16 %v1186, %v1178
  %v1475 = vpack.c.b16 %v1195, %v1187
  %v1476 = vpack.c.b16 %v1196, %v1188
  %v1477 = vpack.c.b16 %v1197, %v1189
  %v1478 = vpack.c.b16 %v1198, %v1190
  %v1479 = vpack.c.b16 %v1199, %v1191
  %v1480 = vpack.c.b16 %v1200, %v1192
  %v1481 = vpack.c.b16 %v1201, %v1193
  %v1482 = vpack.c.b16 %v1202, %v1194
  %v1483 = vpack.c.b16 %v1211, %v1203
  %v1484 = vpack.c.b16 %v1212, %v1204
  %v1485 = vpack.c.b16 %v1213, %v1205
  %v1486 = vpack.c.b16 %v1214, %v1206
  %v1487 = vpack.c.b16 %v1215, %v1207
  %v1488 = vpack.c.b16 %v1216, %v1208
  %v1489 = vpack.c.b16 %v1217, %v1209
  %v1490 = vpack.c.b16 %v1218, %v1210
  %v1491 = vpack.c.b16 %v1227, %v1219
  %v1492 = vpack.c.b16 %v1228, %v1220
  %v1493 = vpack.c.b16 %v1229, %v1221
  %v1494 = vpack.c.b16 %v1230, %v1222
  %v1495 = vpack.c.b16 %v1231, %v1223
  %v1496 = vpack.c.b16 %v1232, %v1224
  %v1497 = vpack.c.b16 %v1233, %v1225
  %v1498 = vpack.c.b16 %v1234, %v1226
  %v1499 = vpack.c.b16 %v1243, %v1235
  %v1500 = vpack.c.b16 %v1244, %v1236
  %v1501 = vpack.c.b16 %v1245, %v1237
  %v1502 = vpack.c.b16 %v1246, %v1238
  %v1503 = vpack.c.b16 %v1247, %v1239
  %v1504 = vpack.c.b16 %v1248, %v1240
  %v1505 = vpack.c.b16 %v1249, %v1241
  %v1506 = vpack.c.b16 %v1250, %v1242
  %1763 = vmatprep.subr.bf16.mxu0 %v1252
  %1764 = vmatpush1.bf16.msra.mxu0 %v1251
  %1765 = vmatprep.subr.bf16.mxu0 %v1260
  %1766 = vmatpush1.bf16.msra.mxu0 %v1259
  %1767 = vmatprep.subr.bf16.mxu0 %v1268
  %1768 = vmatpush1.bf16.msra.mxu0 %v1267
  %1769 = vmatprep.subr.bf16.mxu0 %v1276
  %1770 = vmatpush1.bf16.msra.mxu0 %v1275
  %1771 = vmatprep.subr.bf16.mxu0 %v1284
  %1772 = vmatpush1.bf16.msra.mxu0 %v1283
  %1773 = vmatprep.subr.bf16.mxu0 %v1292
  %1774 = vmatpush1.bf16.msra.mxu0 %v1291
  %1775 = vmatprep.subr.bf16.mxu0 %v1300
  %1776 = vmatpush1.bf16.msra.mxu0 %v1299
  %1777 = vmatprep.subr.bf16.mxu0 %v1308
  %1778 = vmatpush1.bf16.msra.mxu0 %v1307
  %1779 = vmatprep.subr.bf16.mxu0 %v1316
  %1780 = vmatpush1.bf16.msra.mxu0 %v1315
  %1781 = vmatprep.subr.bf16.mxu0 %v1324
  %1782 = vmatpush1.bf16.msra.mxu0 %v1323
  %1783 = vmatprep.subr.bf16.mxu0 %v1332
  %1784 = vmatpush1.bf16.msra.mxu0 %v1331
  %1785 = vmatprep.subr.bf16.mxu0 %v1340
  %1786 = vmatpush1.bf16.msra.mxu0 %v1339
  %1787 = vmatprep.subr.bf16.mxu0 %v1348
  %1788 = vmatpush1.bf16.msra.mxu0 %v1347
  %1789 = vmatprep.subr.bf16.mxu0 %v1356
  %1790 = vmatpush1.bf16.msra.mxu0 %v1355
  %1791 = vmatprep.subr.bf16.mxu0 %v1364
  %1792 = vmatpush1.bf16.msra.mxu0 %v1363
  %1793 = vmatprep.subr.bf16.mxu0 %v1372
  %1794 = vmatpush1.bf16.msra.mxu0 %v1371
  %1795 = vmatprep.mubr.bf16.mxu0 %v224
  %1796 = vmatmul.mubr.bf16.gmra.mrb[0].mxu0 %v223
  %v1797 = vpop.f32.mrb[0].mxu0
  %v1798 = vadd.f32 0.0, %v1797
  %v1799 = vpop.f32.mrb[0].mxu0
  %v1800 = vadd.f32 0.0, %v1799
  %v1801 = vpop.f32.mrb[0].mxu0
  %v1802 = vpop.f32.mrb[0].mxu0
  %1803 = vdwg.mxu0
  %1804 = vmatprep.subr.bf16.mxu0 %v1380
  %1805 = vmatpush1.bf16.msra.mxu0 %v1379
  %1806 = vmatprep.subr.bf16.mxu0 %v1388
  %1807 = vmatpush1.bf16.msra.mxu0 %v1387
  %1808 = vmatprep.subr.bf16.mxu0 %v1396
  %1809 = vmatpush1.bf16.msra.mxu0 %v1395
  %1810 = vmatprep.subr.bf16.mxu0 %v1404
  %1811 = vmatpush1.bf16.msra.mxu0 %v1403
  %1812 = vmatprep.subr.bf16.mxu0 %v1412
  %1813 = vmatpush1.bf16.msra.mxu0 %v1411
  %1814 = vmatprep.subr.bf16.mxu0 %v1420
  %1815 = vmatpush1.bf16.msra.mxu0 %v1419
  %1816 = vmatprep.subr.bf16.mxu0 %v1428
  %1817 = vmatpush1.bf16.msra.mxu0 %v1427
  %1818 = vmatprep.subr.bf16.mxu0 %v1436
  %1819 = vmatpush1.bf16.msra.mxu0 %v1435
  %1820 = vmatprep.subr.bf16.mxu0 %v1444
  %1821 = vmatpush1.bf16.msra.mxu0 %v1443
  %1822 = vmatprep.subr.bf16.mxu0 %v1452
  %1823 = vmatpush1.bf16.msra.mxu0 %v1451
  %1824 = vmatprep.subr.bf16.mxu0 %v1460
  %1825 = vmatpush1.bf16.msra.mxu0 %v1459
  %1826 = vmatprep.subr.bf16.mxu0 %v1468
  %1827 = vmatpush1.bf16.msra.mxu0 %v1467
  %1828 = vmatprep.subr.bf16.mxu0 %v1476
  %1829 = vmatpush1.bf16.msra.mxu0 %v1475
  %1830 = vmatprep.subr.bf16.mxu0 %v1484
  %1831 = vmatpush1.bf16.msra.mxu0 %v1483
  %1832 = vmatprep.subr.bf16.mxu0 %v1492
  %1833 = vmatpush1.bf16.msra.mxu0 %v1491
  %1834 = vmatprep.subr.bf16.mxu0 %v1500
  %1835 = vmatpush1.bf16.msra.mxu0 %v1499
  %1836 = vmatprep.mubr.bf16.mxu0 %v226
  %1837 = vmatmul.mubr.bf16.gmra.mrb[0].mxu0 %v225
  %v1838 = vpop.f32.mrb[0].mxu0
  %v1839 = vadd.f32 %v1798, %v1838
  %v1840 = vpop.f32.mrb[0].mxu0
  %v1841 = vadd.f32 %v1800, %v1840
  %v1842 = vpop.f32.mrb[0].mxu0
  %v1843 = vpop.f32.mrb[0].mxu0
  %1844 = vdwg.mxu0
  %1845 = vmatprep.subr.bf16.mxu0 %v1254
  %1846 = vmatpush1.bf16.msra.mxu0 %v1253
  %1847 = vmatprep.subr.bf16.mxu0 %v1262
  %1848 = vmatpush1.bf16.msra.mxu0 %v1261
  %1849 = vmatprep.subr.bf16.mxu0 %v1270
  %1850 = vmatpush1.bf16.msra.mxu0 %v1269
  %1851 = vmatprep.subr.bf16.mxu0 %v1278
  %1852 = vmatpush1.bf16.msra.mxu0 %v1277
  %1853 = vmatprep.subr.bf16.mxu0 %v1286
  %1854 = vmatpush1.bf16.msra.mxu0 %v1285
  %1855 = vmatprep.subr.bf16.mxu0 %v1294
  %1856 = vmatpush1.bf16.msra.mxu0 %v1293
  %1857 = vmatprep.subr.bf16.mxu0 %v1302
  %1858 = vmatpush1.bf16.msra.mxu0 %v1301
  %1859 = vmatprep.subr.bf16.mxu0 %v1310
  %1860 = vmatpush1.bf16.msra.mxu0 %v1309
  %1861 = vmatprep.subr.bf16.mxu0 %v1318
  %1862 = vmatpush1.bf16.msra.mxu0 %v1317
  %1863 = vmatprep.subr.bf16.mxu0 %v1326
  %1864 = vmatpush1.bf16.msra.mxu0 %v1325
  %1865 = vmatprep.subr.bf16.mxu0 %v1334
  %1866 = vmatpush1.bf16.msra.mxu0 %v1333
  %1867 = vmatprep.subr.bf16.mxu0 %v1342
  %1868 = vmatpush1.bf16.msra.mxu0 %v1341
  %1869 = vmatprep.subr.bf16.mxu0 %v1350
  %1870 = vmatpush1.bf16.msra.mxu0 %v1349
  %1871 = vmatprep.subr.bf16.mxu0 %v1358
  %1872 = vmatpush1.bf16.msra.mxu0 %v1357
  %1873 = vmatprep.subr.bf16.mxu0 %v1366
  %1874 = vmatpush1.bf16.msra.mxu0 %v1365
  %1875 = vmatprep.subr.bf16.mxu0 %v1374
  %1876 = vmatpush1.bf16.msra.mxu0 %v1373
  %1877 = vmatprep.mubr.bf16.mxu0 %v224
  %1878 = vmatmul.mubr.bf16.gmra.mrb[0].mxu0 %v223
  %v1879 = vpop.f32.mrb[0].mxu0
  %v1880 = vadd.f32 0.0, %v1879
  %v1881 = vpop.f32.mrb[0].mxu0
  %v1882 = vadd.f32 0.0, %v1881
  %v1883 = vpop.f32.mrb[0].mxu0
  %v1884 = vpop.f32.mrb[0].mxu0
  %1885 = vdwg.mxu0
  %1886 = vmatprep.subr.bf16.mxu0 %v1382
  %1887 = vmatpush1.bf16.msra.mxu0 %v1381
  %1888 = vmatprep.subr.bf16.mxu0 %v1390
  %1889 = vmatpush1.bf16.msra.mxu0 %v1389
  %1890 = vmatprep.subr.bf16.mxu0 %v1398
  %1891 = vmatpush1.bf16.msra.mxu0 %v1397
  %1892 = vmatprep.subr.bf16.mxu0 %v1406
  %1893 = vmatpush1.bf16.msra.mxu0 %v1405
  %1894 = vmatprep.subr.bf16.mxu0 %v1414
  %1895 = vmatpush1.bf16.msra.mxu0 %v1413
  %1896 = vmatprep.subr.bf16.mxu0 %v1422
  %1897 = vmatpush1.bf16.msra.mxu0 %v1421
  %1898 = vmatprep.subr.bf16.mxu0 %v1430
  %1899 = vmatpush1.bf16.msra.mxu0 %v1429
  %1900 = vmatprep.subr.bf16.mxu0 %v1438
  %1901 = vmatpush1.bf16.msra.mxu0 %v1437
  %1902 = vmatprep.subr.bf16.mxu0 %v1446
  %1903 = vmatpush1.bf16.msra.mxu0 %v1445
  %1904 = vmatprep.subr.bf16.mxu0 %v1454
  %1905 = vmatpush1.bf16.msra.mxu0 %v1453
  %1906 = vmatprep.subr.bf16.mxu0 %v1462
  %1907 = vmatpush1.bf16.msra.mxu0 %v1461
  %1908 = vmatprep.subr.bf16.mxu0 %v1470
  %1909 = vmatpush1.bf16.msra.mxu0 %v1469
  %1910 = vmatprep.subr.bf16.mxu0 %v1478
  %1911 = vmatpush1.bf16.msra.mxu0 %v1477
  %1912 = vmatprep.subr.bf16.mxu0 %v1486
  %1913 = vmatpush1.bf16.msra.mxu0 %v1485
  %1914 = vmatprep.subr.bf16.mxu0 %v1494
  %1915 = vmatpush1.bf16.msra.mxu0 %v1493
  %1916 = vmatprep.subr.bf16.mxu0 %v1502
  %1917 = vmatpush1.bf16.msra.mxu0 %v1501
  %1918 = vmatprep.mubr.bf16.mxu0 %v226
  %1919 = vmatmul.mubr.bf16.gmra.mrb[0].mxu0 %v225
  %v1920 = vpop.f32.mrb[0].mxu0
  %v1921 = vadd.f32 %v1880, %v1920
  %v1922 = vpop.f32.mrb[0].mxu0
  %v1923 = vadd.f32 %v1882, %v1922
  %v1924 = vpop.f32.mrb[0].mxu0
  %v1925 = vpop.f32.mrb[0].mxu0
  %1926 = vdwg.mxu0
  %1927 = vmatprep.subr.bf16.mxu0 %v1256
  %1928 = vmatpush1.bf16.msra.mxu0 %v1255
  %1929 = vmatprep.subr.bf16.mxu0 %v1264
  %1930 = vmatpush1.bf16.msra.mxu0 %v1263
  %1931 = vmatprep.subr.bf16.mxu0 %v1272
  %1932 = vmatpush1.bf16.msra.mxu0 %v1271
  %1933 = vmatprep.subr.bf16.mxu0 %v1280
  %1934 = vmatpush1.bf16.msra.mxu0 %v1279
  %1935 = vmatprep.subr.bf16.mxu0 %v1288
  %1936 = vmatpush1.bf16.msra.mxu0 %v1287
  %1937 = vmatprep.subr.bf16.mxu0 %v1296
  %1938 = vmatpush1.bf16.msra.mxu0 %v1295
  %1939 = vmatprep.subr.bf16.mxu0 %v1304
  %1940 = vmatpush1.bf16.msra.mxu0 %v1303
  %1941 = vmatprep.subr.bf16.mxu0 %v1312
  %1942 = vmatpush1.bf16.msra.mxu0 %v1311
  %1943 = vmatprep.subr.bf16.mxu0 %v1320
  %1944 = vmatpush1.bf16.msra.mxu0 %v1319
  %1945 = vmatprep.subr.bf16.mxu0 %v1328
  %1946 = vmatpush1.bf16.msra.mxu0 %v1327
  %1947 = vmatprep.subr.bf16.mxu0 %v1336
  %1948 = vmatpush1.bf16.msra.mxu0 %v1335
  %1949 = vmatprep.subr.bf16.mxu0 %v1344
  %1950 = vmatpush1.bf16.msra.mxu0 %v1343
  %1951 = vmatprep.subr.bf16.mxu0 %v1352
  %1952 = vmatpush1.bf16.msra.mxu0 %v1351
  %1953 = vmatprep.subr.bf16.mxu0 %v1360
  %1954 = vmatpush1.bf16.msra.mxu0 %v1359
  %1955 = vmatprep.subr.bf16.mxu0 %v1368
  %1956 = vmatpush1.bf16.msra.mxu0 %v1367
  %1957 = vmatprep.subr.bf16.mxu0 %v1376
  %1958 = vmatpush1.bf16.msra.mxu0 %v1375
  %1959 = vmatprep.mubr.bf16.mxu0 %v224
  %1960 = vmatmul.mubr.bf16.gmra.mrb[0].mxu0 %v223
  %v1961 = vpop.f32.mrb[0].mxu0
  %v1962 = vadd.f32 0.0, %v1961
  %v1963 = vpop.f32.mrb[0].mxu0
  %v1964 = vadd.f32 0.0, %v1963
  %v1965 = vpop.f32.mrb[0].mxu0
  %v1966 = vpop.f32.mrb[0].mxu0
  %1967 = vdwg.mxu0
  %1968 = vmatprep.subr.bf16.mxu0 %v1384
  %1969 = vmatpush1.bf16.msra.mxu0 %v1383
  %1970 = vmatprep.subr.bf16.mxu0 %v1392
  %1971 = vmatpush1.bf16.msra.mxu0 %v1391
  %1972 = vmatprep.subr.bf16.mxu0 %v1400
  %1973 = vmatpush1.bf16.msra.mxu0 %v1399
  %1974 = vmatprep.subr.bf16.mxu0 %v1408
  %1975 = vmatpush1.bf16.msra.mxu0 %v1407
  %1976 = vmatprep.subr.bf16.mxu0 %v1416
  %1977 = vmatpush1.bf16.msra.mxu0 %v1415
  %1978 = vmatprep.subr.bf16.mxu0 %v1424
  %1979 = vmatpush1.bf16.msra.mxu0 %v1423
  %1980 = vmatprep.subr.bf16.mxu0 %v1432
  %1981 = vmatpush1.bf16.msra.mxu0 %v1431
  %1982 = vmatprep.subr.bf16.mxu0 %v1440
  %1983 = vmatpush1.bf16.msra.mxu0 %v1439
  %1984 = vmatprep.subr.bf16.mxu0 %v1448
  %1985 = vmatpush1.bf16.msra.mxu0 %v1447
  %1986 = vmatprep.subr.bf16.mxu0 %v1456
  %1987 = vmatpush1.bf16.msra.mxu0 %v1455
  %1988 = vmatprep.subr.bf16.mxu0 %v1464
  %1989 = vmatpush1.bf16.msra.mxu0 %v1463
  %1990 = vmatprep.subr.bf16.mxu0 %v1472
  %1991 = vmatpush1.bf16.msra.mxu0 %v1471
  %1992 = vmatprep.subr.bf16.mxu0 %v1480
  %1993 = vmatpush1.bf16.msra.mxu0 %v1479
  %1994 = vmatprep.subr.bf16.mxu0 %v1488
  %1995 = vmatpush1.bf16.msra.mxu0 %v1487
  %1996 = vmatprep.subr.bf16.mxu0 %v1496
  %1997 = vmatpush1.bf16.msra.mxu0 %v1495
  %1998 = vmatprep.subr.bf16.mxu0 %v1504
  %1999 = vmatpush1.bf16.msra.mxu0 %v1503
  %2000 = vmatprep.mubr.bf16.mxu0 %v226
  %2001 = vmatmul.mubr.bf16.gmra.mrb[0].mxu0 %v225
  %v2002 = vpop.f32.mrb[0].mxu0
  %v2003 = vadd.f32 %v1962, %v2002
  %v2004 = vpop.f32.mrb[0].mxu0
  %v2005 = vadd.f32 %v1964, %v2004
  %v2006 = vpop.f32.mrb[0].mxu0
  %v2007 = vpop.f32.mrb[0].mxu0
  %2008 = vdwg.mxu0
  %2009 = vmatprep.subr.bf16.mxu0 %v1258
  %2010 = vmatpush1.bf16.msra.mxu0 %v1257
  %2011 = vmatprep.subr.bf16.mxu0 %v1266
  %2012 = vmatpush1.bf16.msra.mxu0 %v1265
  %2013 = vmatprep.subr.bf16.mxu0 %v1274
  %2014 = vmatpush1.bf16.msra.mxu0 %v1273
  %2015 = vmatprep.subr.bf16.mxu0 %v1282
  %2016 = vmatpush1.bf16.msra.mxu0 %v1281
  %2017 = vmatprep.subr.bf16.mxu0 %v1290
  %2018 = vmatpush1.bf16.msra.mxu0 %v1289
  %2019 = vmatprep.subr.bf16.mxu0 %v1298
  %2020 = vmatpush1.bf16.msra.mxu0 %v1297
  %2021 = vmatprep.subr.bf16.mxu0 %v1306
  %2022 = vmatpush1.bf16.msra.mxu0 %v1305
  %2023 = vmatprep.subr.bf16.mxu0 %v1314
  %2024 = vmatpush1.bf16.msra.mxu0 %v1313
  %2025 = vmatprep.subr.bf16.mxu0 %v1322
  %2026 = vmatpush1.bf16.msra.mxu0 %v1321
  %2027 = vmatprep.subr.bf16.mxu0 %v1330
  %2028 = vmatpush1.bf16.msra.mxu0 %v1329
  %2029 = vmatprep.subr.bf16.mxu0 %v1338
  %2030 = vmatpush1.bf16.msra.mxu0 %v1337
  %2031 = vmatprep.subr.bf16.mxu0 %v1346
  %2032 = vmatpush1.bf16.msra.mxu0 %v1345
  %2033 = vmatprep.subr.bf16.mxu0 %v1354
  %2034 = vmatpush1.bf16.msra.mxu0 %v1353
  %2035 = vmatprep.subr.bf16.mxu0 %v1362
  %2036 = vmatpush1.bf16.msra.mxu0 %v1361
  %2037 = vmatprep.subr.bf16.mxu0 %v1370
  %2038 = vmatpush1.bf16.msra.mxu0 %v1369
  %2039 = vmatprep.subr.bf16.mxu0 %v1378
  %2040 = vmatpush1.bf16.msra.mxu0 %v1377
  %2041 = vmatprep.mubr.bf16.mxu0 %v224
  %2042 = vmatmul.mubr.bf16.gmra.mrb[0].mxu0 %v223
  %v2043 = vpop.f32.mrb[0].mxu0
  %v2044 = vadd.f32 0.0, %v2043
  %v2045 = vpop.f32.mrb[0].mxu0
  %v2046 = vadd.f32 0.0, %v2045
  %v2047 = vpop.f32.mrb[0].mxu0
  %v2048 = vpop.f32.mrb[0].mxu0
  %2049 = vdwg.mxu0
  %2050 = vmatprep.subr.bf16.mxu0 %v1386
  %2051 = vmatpush1.bf16.msra.mxu0 %v1385
  %2052 = vmatprep.subr.bf16.mxu0 %v1394
  %2053 = vmatpush1.bf16.msra.mxu0 %v1393
  %2054 = vmatprep.subr.bf16.mxu0 %v1402
  %2055 = vmatpush1.bf16.msra.mxu0 %v1401
  %2056 = vmatprep.subr.bf16.mxu0 %v1410
  %2057 = vmatpush1.bf16.msra.mxu0 %v1409
  %2058 = vmatprep.subr.bf16.mxu0 %v1418
  %2059 = vmatpush1.bf16.msra.mxu0 %v1417
  %2060 = vmatprep.subr.bf16.mxu0 %v1426
  %2061 = vmatpush1.bf16.msra.mxu0 %v1425
  %2062 = vmatprep.subr.bf16.mxu0 %v1434
  %2063 = vmatpush1.bf16.msra.mxu0 %v1433
  %2064 = vmatprep.subr.bf16.mxu0 %v1442
  %2065 = vmatpush1.bf16.msra.mxu0 %v1441
  %2066 = vmatprep.subr.bf16.mxu0 %v1450
  %2067 = vmatpush1.bf16.msra.mxu0 %v1449
  %2068 = vmatprep.subr.bf16.mxu0 %v1458
  %2069 = vmatpush1.bf16.msra.mxu0 %v1457
  %2070 = vmatprep.subr.bf16.mxu0 %v1466
  %2071 = vmatpush1.bf16.msra.mxu0 %v1465
  %2072 = vmatprep.subr.bf16.mxu0 %v1474
  %2073 = vmatpush1.bf16.msra.mxu0 %v1473
  %2074 = vmatprep.subr.bf16.mxu0 %v1482
  %2075 = vmatpush1.bf16.msra.mxu0 %v1481
  %2076 = vmatprep.subr.bf16.mxu0 %v1490
  %2077 = vmatpush1.bf16.msra.mxu0 %v1489
  %2078 = vmatprep.subr.bf16.mxu0 %v1498
  %2079 = vmatpush1.bf16.msra.mxu0 %v1497
  %2080 = vmatprep.subr.bf16.mxu0 %v1506
  %2081 = vmatpush1.bf16.msra.mxu0 %v1505
  %2082 = vmatprep.mubr.bf16.mxu0 %v226
  %2083 = vmatmul.mubr.bf16.gmra.mrb[0].mxu0 %v225
  %v2084 = vpop.f32.mrb[0].mxu0
  %v2085 = vadd.f32 %v2044, %v2084
  %v2086 = vpop.f32.mrb[0].mxu0
  %v2087 = vadd.f32 %v2046, %v2086
  %v2088 = vpop.f32.mrb[0].mxu0
  %v2089 = vpop.f32.mrb[0].mxu0
  %2090 = vdwg.mxu0
  %v2091 = vld [vmem:[%s4] sm:$0xf]
  %v2092 = vld [vmem:[%s4 + $0x4] sm:$0xf]
  %v2093 = vld [vmem:[%s4 + $0x8] sm:$0xf]
  %v2094 = vld [vmem:[%s4 + $0xc] sm:$0xf]
  %v2095 = vld [vmem:[%s4 + $0x10] sm:$0xf]
  %v2096 = vld [vmem:[%s4 + $0x14] sm:$0xf]
  %v2097 = vld [vmem:[%s4 + $0x18] sm:$0xf]
  %v2098 = vld [vmem:[%s4 + $0x1c] sm:$0xf]
  %v2099 = vld [vmem:[%s4 + $0x20] sm:$0xf]
  %v2100 = vld [vmem:[%s4 + $0x24] sm:$0xf]
  %v2101 = vld [vmem:[%s4 + $0x28] sm:$0xf]
  %v2102 = vld [vmem:[%s4 + $0x2c] sm:$0xf]
  %v2103 = vld [vmem:[%s4 + $0x30] sm:$0xf]
  %v2104 = vld [vmem:[%s4 + $0x34] sm:$0xf]
  %v2105 = vld [vmem:[%s4 + $0x38] sm:$0xf]
  %v2106 = vld [vmem:[%s4 + $0x3c] sm:$0xf]
  %v2107 = vld [vmem:[%s4 + $0x40] sm:$0xf]
  %v2108 = vld [vmem:[%s4 + $0x44] sm:$0xf]
  %v2109 = vld [vmem:[%s4 + $0x48] sm:$0xf]
  %v2110 = vld [vmem:[%s4 + $0x4c] sm:$0xf]
  %v2111 = vld [vmem:[%s4 + $0x50] sm:$0xf]
  %v2112 = vld [vmem:[%s4 + $0x54] sm:$0xf]
  %v2113 = vld [vmem:[%s4 + $0x58] sm:$0xf]
  %v2114 = vld [vmem:[%s4 + $0x5c] sm:$0xf]
  %v2115 = vld [vmem:[%s4 + $0x60] sm:$0xf]
  %v2116 = vld [vmem:[%s4 + $0x64] sm:$0xf]
  %v2117 = vld [vmem:[%s4 + $0x68] sm:$0xf]
  %v2118 = vld [vmem:[%s4 + $0x6c] sm:$0xf]
  %v2119 = vld [vmem:[%s4 + $0x70] sm:$0xf]
  %v2120 = vld [vmem:[%s4 + $0x74] sm:$0xf]
  %v2121 = vld [vmem:[%s4 + $0x78] sm:$0xf]
  %v2122 = vld [vmem:[%s4 + $0x7c] sm:$0xf]
  %v2123 = vld [vmem:[%s4 + $0x80] sm:$0xf]
  %v2124 = vld [vmem:[%s4 + $0x84] sm:$0xf]
  %v2125 = vld [vmem:[%s4 + $0x88] sm:$0xf]
  %v2126 = vld [vmem:[%s4 + $0x8c] sm:$0xf]
  %v2127 = vld [vmem:[%s4 + $0x90] sm:$0xf]
  %v2128 = vld [vmem:[%s4 + $0x94] sm:$0xf]
  %v2129 = vld [vmem:[%s4 + $0x98] sm:$0xf]
  %v2130 = vld [vmem:[%s4 + $0x9c] sm:$0xf]
  %v2131 = vld [vmem:[%s4 + $0xa0] sm:$0xf]
  %v2132 = vld [vmem:[%s4 + $0xa4] sm:$0xf]
  %v2133 = vld [vmem:[%s4 + $0xa8] sm:$0xf]
  %v2134 = vld [vmem:[%s4 + $0xac] sm:$0xf]
  %v2135 = vld [vmem:[%s4 + $0xb0] sm:$0xf]
  %v2136 = vld [vmem:[%s4 + $0xb4] sm:$0xf]
  %v2137 = vld [vmem:[%s4 + $0xb8] sm:$0xf]
  %v2138 = vld [vmem:[%s4 + $0xbc] sm:$0xf]
  %v2139 = vld [vmem:[%s4 + $0xc0] sm:$0xf]
  %v2140 = vld [vmem:[%s4 + $0xc4] sm:$0xf]
  %v2141 = vld [vmem:[%s4 + $0xc8] sm:$0xf]
  %v2142 = vld [vmem:[%s4 + $0xcc] sm:$0xf]
  %v2143 = vld [vmem:[%s4 + $0xd0] sm:$0xf]
  %v2144 = vld [vmem:[%s4 + $0xd4] sm:$0xf]
  %v2145 = vld [vmem:[%s4 + $0xd8] sm:$0xf]
  %v2146 = vld [vmem:[%s4 + $0xdc] sm:$0xf]
  %v2147 = vld [vmem:[%s4 + $0xe0] sm:$0xf]
  %v2148 = vld [vmem:[%s4 + $0xe4] sm:$0xf]
  %v2149 = vld [vmem:[%s4 + $0xe8] sm:$0xf]
  %v2150 = vld [vmem:[%s4 + $0xec] sm:$0xf]
  %v2151 = vld [vmem:[%s4 + $0xf0] sm:$0xf]
  %v2152 = vld [vmem:[%s4 + $0xf4] sm:$0xf]
  %v2153 = vld [vmem:[%s4 + $0xf8] sm:$0xf]
  %v2154 = vld [vmem:[%s4 + $0xfc] sm:$0xf]
  %v2219 = vunpack.c.l.b16 %v2091
  %v2220 = vunpack.c.l.b16 %v2092
  %v2221 = vunpack.c.l.b16 %v2093
  %v2222 = vunpack.c.l.b16 %v2094
  %v2223 = vunpack.c.l.b16 %v2095
  %v2224 = vunpack.c.l.b16 %v2096
  %v2225 = vunpack.c.l.b16 %v2097
  %v2226 = vunpack.c.l.b16 %v2098
  %v2227 = vunpack.c.l.b16 %v2099
  %v2228 = vunpack.c.l.b16 %v2100
  %v2229 = vunpack.c.l.b16 %v2101
  %v2230 = vunpack.c.l.b16 %v2102
  %v2231 = vunpack.c.l.b16 %v2103
  %v2232 = vunpack.c.l.b16 %v2104
  %v2233 = vunpack.c.l.b16 %v2105
  %v2234 = vunpack.c.l.b16 %v2106
  %v2235 = vunpack.c.l.b16 %v2107
  %v2236 = vunpack.c.l.b16 %v2108
  %v2237 = vunpack.c.l.b16 %v2109
  %v2238 = vunpack.c.l.b16 %v2110
  %v2239 = vunpack.c.l.b16 %v2111
  %v2240 = vunpack.c.l.b16 %v2112
  %v2241 = vunpack.c.l.b16 %v2113
  %v2242 = vunpack.c.l.b16 %v2114
  %v2243 = vunpack.c.l.b16 %v2115
  %v2244 = vunpack.c.l.b16 %v2116
  %v2245 = vunpack.c.l.b16 %v2117
  %v2246 = vunpack.c.l.b16 %v2118
  %v2247 = vunpack.c.l.b16 %v2119
  %v2248 = vunpack.c.l.b16 %v2120
  %v2249 = vunpack.c.l.b16 %v2121
  %v2250 = vunpack.c.l.b16 %v2122
  %v2251 = vunpack.c.l.b16 %v2123
  %v2252 = vunpack.c.l.b16 %v2124
  %v2253 = vunpack.c.l.b16 %v2125
  %v2254 = vunpack.c.l.b16 %v2126
  %v2255 = vunpack.c.l.b16 %v2127
  %v2256 = vunpack.c.l.b16 %v2128
  %v2257 = vunpack.c.l.b16 %v2129
  %v2258 = vunpack.c.l.b16 %v2130
  %v2259 = vunpack.c.l.b16 %v2131
  %v2260 = vunpack.c.l.b16 %v2132
  %v2261 = vunpack.c.l.b16 %v2133
  %v2262 = vunpack.c.l.b16 %v2134
  %v2263 = vunpack.c.l.b16 %v2135
  %v2264 = vunpack.c.l.b16 %v2136
  %v2265 = vunpack.c.l.b16 %v2137
  %v2266 = vunpack.c.l.b16 %v2138
  %v2267 = vunpack.c.l.b16 %v2139
  %v2268 = vunpack.c.l.b16 %v2140
  %v2269 = vunpack.c.l.b16 %v2141
  %v2270 = vunpack.c.l.b16 %v2142
  %v2271 = vunpack.c.l.b16 %v2143
  %v2272 = vunpack.c.l.b16 %v2144
  %v2273 = vunpack.c.l.b16 %v2145
  %v2274 = vunpack.c.l.b16 %v2146
  %v2275 = vunpack.c.l.b16 %v2147
  %v2276 = vunpack.c.l.b16 %v2148
  %v2277 = vunpack.c.l.b16 %v2149
  %v2278 = vunpack.c.l.b16 %v2150
  %v2279 = vunpack.c.l.b16 %v2151
  %v2280 = vunpack.c.l.b16 %v2152
  %v2281 = vunpack.c.l.b16 %v2153
  %v2282 = vunpack.c.l.b16 %v2154
  %v2283 = vpack.c.b16 %v2220, %v2219
  %v2284 = vpack.c.b16 %v2222, %v2221
  %v2285 = vpack.c.b16 %v2224, %v2223
  %v2286 = vpack.c.b16 %v2226, %v2225
  %v2287 = vpack.c.b16 %v2228, %v2227
  %v2288 = vpack.c.b16 %v2230, %v2229
  %v2289 = vpack.c.b16 %v2232, %v2231
  %v2290 = vpack.c.b16 %v2234, %v2233
  %v2291 = vpack.c.b16 %v2236, %v2235
  %v2292 = vpack.c.b16 %v2238, %v2237
  %v2293 = vpack.c.b16 %v2240, %v2239
  %v2294 = vpack.c.b16 %v2242, %v2241
  %v2295 = vpack.c.b16 %v2244, %v2243
  %v2296 = vpack.c.b16 %v2246, %v2245
  %v2297 = vpack.c.b16 %v2248, %v2247
  %v2298 = vpack.c.b16 %v2250, %v2249
  %v2299 = vpack.c.b16 %v2252, %v2251
  %v2300 = vpack.c.b16 %v2254, %v2253
  %v2301 = vpack.c.b16 %v2256, %v2255
  %v2302 = vpack.c.b16 %v2258, %v2257
  %v2303 = vpack.c.b16 %v2260, %v2259
  %v2304 = vpack.c.b16 %v2262, %v2261
  %v2305 = vpack.c.b16 %v2264, %v2263
  %v2306 = vpack.c.b16 %v2266, %v2265
  %v2307 = vpack.c.b16 %v2268, %v2267
  %v2308 = vpack.c.b16 %v2270, %v2269
  %v2309 = vpack.c.b16 %v2272, %v2271
  %v2310 = vpack.c.b16 %v2274, %v2273
  %v2311 = vpack.c.b16 %v2276, %v2275
  %v2312 = vpack.c.b16 %v2278, %v2277
  %v2313 = vpack.c.b16 %v2280, %v2279
  %v2314 = vpack.c.b16 %v2282, %v2281
  %2347 = vmatprep.subr.bf16.mxu0 0
  %2348 = vmatpush1.bf16.msra.mxu0 %v2283
  %2349 = vmatprep.subr.bf16.mxu0 0
  %2350 = vmatpush1.bf16.msra.mxu0 %v2284
  %2351 = vmatprep.subr.bf16.mxu0 0
  %2352 = vmatpush1.bf16.msra.mxu0 %v2285
  %2353 = vmatprep.subr.bf16.mxu0 0
  %2354 = vmatpush1.bf16.msra.mxu0 %v2286
  %2355 = vmatprep.subr.bf16.mxu0 0
  %2356 = vmatpush1.bf16.msra.mxu0 %v2287
  %2357 = vmatprep.subr.bf16.mxu0 0
  %2358 = vmatpush1.bf16.msra.mxu0 %v2288
  %2359 = vmatprep.subr.bf16.mxu0 0
  %2360 = vmatpush1.bf16.msra.mxu0 %v2289
  %2361 = vmatprep.subr.bf16.mxu0 0
  %2362 = vmatpush1.bf16.msra.mxu0 %v2290
  %2363 = vmatprep.subr.bf16.mxu0 0
  %2364 = vmatpush1.bf16.msra.mxu0 %v2291
  %2365 = vmatprep.subr.bf16.mxu0 0
  %2366 = vmatpush1.bf16.msra.mxu0 %v2292
  %2367 = vmatprep.subr.bf16.mxu0 0
  %2368 = vmatpush1.bf16.msra.mxu0 %v2293
  %2369 = vmatprep.subr.bf16.mxu0 0
  %2370 = vmatpush1.bf16.msra.mxu0 %v2294
  %2371 = vmatprep.subr.bf16.mxu0 0
  %2372 = vmatpush1.bf16.msra.mxu0 %v2295
  %2373 = vmatprep.subr.bf16.mxu0 0
  %2374 = vmatpush1.bf16.msra.mxu0 %v2296
  %2375 = vmatprep.subr.bf16.mxu0 0
  %2376 = vmatpush1.bf16.msra.mxu0 %v2297
  %2377 = vmatprep.subr.bf16.mxu0 0
  %2378 = vmatpush1.bf16.msra.mxu0 %v2298
  %2379 = vmatprep.mubr.bf16.mxu0 %v224
  %2380 = vmatmul.mubr.bf16.gmra.mrb[0].mxu0 %v223
  %v2381 = vpop.f32.mrb[0].mxu0
  %v2382 = vadd.f32 0.0, %v2381
  %v2383 = vpop.f32.mrb[0].mxu0
  %v2384 = vpop.f32.mrb[0].mxu0
  %v2385 = vpop.f32.mrb[0].mxu0
  %2386 = vdwg.mxu0
  %2387 = vmatprep.subr.bf16.mxu0 0
  %2388 = vmatpush1.bf16.msra.mxu0 %v2299
  %2389 = vmatprep.subr.bf16.mxu0 0
  %2390 = vmatpush1.bf16.msra.mxu0 %v2300
  %2391 = vmatprep.subr.bf16.mxu0 0
  %2392 = vmatpush1.bf16.msra.mxu0 %v2301
  %2393 = vmatprep.subr.bf16.mxu0 0
  %2394 = vmatpush1.bf16.msra.mxu0 %v2302
  %2395 = vmatprep.subr.bf16.mxu0 0
  %2396 = vmatpush1.bf16.msra.mxu0 %v2303
  %2397 = vmatprep.subr.bf16.mxu0 0
  %2398 = vmatpush1.bf16.msra.mxu0 %v2304
  %2399 = vmatprep.subr.bf16.mxu0 0
  %2400 = vmatpush1.bf16.msra.mxu0 %v2305
  %2401 = vmatprep.subr.bf16.mxu0 0
  %2402 = vmatpush1.bf16.msra.mxu0 %v2306
  %2403 = vmatprep.subr.bf16.mxu0 0
  %2404 = vmatpush1.bf16.msra.mxu0 %v2307
  %2405 = vmatprep.subr.bf16.mxu0 0
  %2406 = vmatpush1.bf16.msra.mxu0 %v2308
  %2407 = vmatprep.subr.bf16.mxu0 0
  %2408 = vmatpush1.bf16.msra.mxu0 %v2309
  %2409 = vmatprep.subr.bf16.mxu0 0
  %2410 = vmatpush1.bf16.msra.mxu0 %v2310
  %2411 = vmatprep.subr.bf16.mxu0 0
  %2412 = vmatpush1.bf16.msra.mxu0 %v2311
  %2413 = vmatprep.subr.bf16.mxu0 0
  %2414 = vmatpush1.bf16.msra.mxu0 %v2312
  %2415 = vmatprep.subr.bf16.mxu0 0
  %2416 = vmatpush1.bf16.msra.mxu0 %v2313
  %2417 = vmatprep.subr.bf16.mxu0 0
  %2418 = vmatpush1.bf16.msra.mxu0 %v2314
  %2419 = vmatprep.mubr.bf16.mxu0 %v226
  %2420 = vmatmul.mubr.bf16.gmra.mrb[0].mxu0 %v225
  %v2421 = vpop.f32.mrb[0].mxu0
  %v2422 = vadd.f32 %v2382, %v2421
  %v2423 = vpop.f32.mrb[0].mxu0
  %v2424 = vpop.f32.mrb[0].mxu0
  %v2425 = vpop.f32.mrb[0].mxu0
  %2426 = vdwg.mxu0
  %v2427 = vpack.c.bf16 %v2422, %v2422
  %v2428 = vld [vmem:[%s6] sm:$0xff]
  %v2429 = vld [vmem:[%s6 + $0x8] sm:$0xff]
  %v2430 = vld [vmem:[%s6 + $0x10] sm:$0xff]
  %v2431 = vld [vmem:[%s6 + $0x18] sm:$0xff]
  %v2432 = vld [vmem:[%s6 + $0x20] sm:$0xff]
  %v2433 = vld [vmem:[%s6 + $0x28] sm:$0xff]
  %v2434 = vld [vmem:[%s6 + $0x30] sm:$0xff]
  %v2435 = vld [vmem:[%s6 + $0x38] sm:$0xff]
  %v2436 = vld [vmem:[%s6 + $0x40] sm:$0xff]
  %v2437 = vld [vmem:[%s6 + $0x48] sm:$0xff]
  %v2438 = vld [vmem:[%s6 + $0x50] sm:$0xff]
  %v2439 = vld [vmem:[%s6 + $0x58] sm:$0xff]
  %v2440 = vld [vmem:[%s6 + $0x60] sm:$0xff]
  %v2441 = vld [vmem:[%s6 + $0x68] sm:$0xff]
  %v2442 = vld [vmem:[%s6 + $0x70] sm:$0xff]
  %v2443 = vld [vmem:[%s6 + $0x78] sm:$0xff]
  %v2444 = vld [vmem:[%s6 + $0x80] sm:$0xff]
  %v2445 = vld [vmem:[%s6 + $0x88] sm:$0xff]
  %v2446 = vld [vmem:[%s6 + $0x90] sm:$0xff]
  %v2447 = vld [vmem:[%s6 + $0x98] sm:$0xff]
  %v2448 = vld [vmem:[%s6 + $0xa0] sm:$0xff]
  %v2449 = vld [vmem:[%s6 + $0xa8] sm:$0xff]
  %v2450 = vld [vmem:[%s6 + $0xb0] sm:$0xff]
  %v2451 = vld [vmem:[%s6 + $0xb8] sm:$0xff]
  %v2452 = vld [vmem:[%s6 + $0xc0] sm:$0xff]
  %v2453 = vld [vmem:[%s6 + $0xc8] sm:$0xff]
  %v2454 = vld [vmem:[%s6 + $0xd0] sm:$0xff]
  %v2455 = vld [vmem:[%s6 + $0xd8] sm:$0xff]
  %v2456 = vld [vmem:[%s6 + $0xe0] sm:$0xff]
  %v2457 = vld [vmem:[%s6 + $0xe8] sm:$0xff]
  %v2458 = vld [vmem:[%s6 + $0xf0] sm:$0xff]
  %v2459 = vld [vmem:[%s6 + $0xf8] sm:$0xff]
  %v2492 = vunpack.c.l.b16 %v2428
  %v2493 = vunpack.c.h.b16 %v2428
  %v2494 = vunpack.c.l.b16 %v2429
  %v2495 = vunpack.c.h.b16 %v2429
  %v2496 = vunpack.c.l.b16 %v2430
  %v2497 = vunpack.c.h.b16 %v2430
  %v2498 = vunpack.c.l.b16 %v2431
  %v2499 = vunpack.c.h.b16 %v2431
  %v2500 = vunpack.c.l.b16 %v2432
  %v2501 = vunpack.c.h.b16 %v2432
  %v2502 = vunpack.c.l.b16 %v2433
  %v2503 = vunpack.c.h.b16 %v2433
  %v2504 = vunpack.c.l.b16 %v2434
  %v2505 = vunpack.c.h.b16 %v2434
  %v2506 = vunpack.c.l.b16 %v2435
  %v2507 = vunpack.c.h.b16 %v2435
  %v2508 = vunpack.c.l.b16 %v2436
  %v2509 = vunpack.c.h.b16 %v2436
  %v2510 = vunpack.c.l.b16 %v2437
  %v2511 = vunpack.c.h.b16 %v2437
  %v2512 = vunpack.c.l.b16 %v2438
  %v2513 = vunpack.c.h.b16 %v2438
  %v2514 = vunpack.c.l.b16 %v2439
  %v2515 = vunpack.c.h.b16 %v2439
  %v2516 = vunpack.c.l.b16 %v2440
  %v2517 = vunpack.c.h.b16 %v2440
  %v2518 = vunpack.c.l.b16 %v2441
  %v2519 = vunpack.c.h.b16 %v2441
  %v2520 = vunpack.c.l.b16 %v2442
  %v2521 = vunpack.c.h.b16 %v2442
  %v2522 = vunpack.c.l.b16 %v2443
  %v2523 = vunpack.c.h.b16 %v2443
  %v2524 = vunpack.c.l.b16 %v2444
  %v2525 = vunpack.c.h.b16 %v2444
  %v2526 = vunpack.c.l.b16 %v2445
  %v2527 = vunpack.c.h.b16 %v2445
  %v2528 = vunpack.c.l.b16 %v2446
  %v2529 = vunpack.c.h.b16 %v2446
  %v2530 = vunpack.c.l.b16 %v2447
  %v2531 = vunpack.c.h.b16 %v2447
  %v2532 = vunpack.c.l.b16 %v2448
  %v2533 = vunpack.c.h.b16 %v2448
  %v2534 = vunpack.c.l.b16 %v2449
  %v2535 = vunpack.c.h.b16 %v2449
  %v2536 = vunpack.c.l.b16 %v2450
  %v2537 = vunpack.c.h.b16 %v2450
  %v2538 = vunpack.c.l.b16 %v2451
  %v2539 = vunpack.c.h.b16 %v2451
  %v2540 = vunpack.c.l.b16 %v2452
  %v2541 = vunpack.c.h.b16 %v2452
  %v2542 = vunpack.c.l.b16 %v2453
  %v2543 = vunpack.c.h.b16 %v2453
  %v2544 = vunpack.c.l.b16 %v2454
  %v2545 = vunpack.c.h.b16 %v2454
  %v2546 = vunpack.c.l.b16 %v2455
  %v2547 = vunpack.c.h.b16 %v2455
  %v2548 = vunpack.c.l.b16 %v2456
  %v2549 = vunpack.c.h.b16 %v2456
  %v2550 = vunpack.c.l.b16 %v2457
  %v2551 = vunpack.c.h.b16 %v2457
  %v2552 = vunpack.c.l.b16 %v2458
  %v2553 = vunpack.c.h.b16 %v2458
  %v2554 = vunpack.c.l.b16 %v2459
  %v2555 = vunpack.c.h.b16 %v2459
  %v2556 = vpack.c.b16 %v2500, %v2492
  %v2557 = vpack.c.b16 %v2501, %v2493
  %v2558 = vpack.c.b16 %v2502, %v2494
  %v2559 = vpack.c.b16 %v2503, %v2495
  %v2560 = vpack.c.b16 %v2504, %v2496
  %v2561 = vpack.c.b16 %v2505, %v2497
  %v2562 = vpack.c.b16 %v2506, %v2498
  %v2563 = vpack.c.b16 %v2507, %v2499
  %v2564 = vpack.c.b16 %v2516, %v2508
  %v2565 = vpack.c.b16 %v2517, %v2509
  %v2566 = vpack.c.b16 %v2518, %v2510
  %v2567 = vpack.c.b16 %v2519, %v2511
  %v2568 = vpack.c.b16 %v2520, %v2512
  %v2569 = vpack.c.b16 %v2521, %v2513
  %v2570 = vpack.c.b16 %v2522, %v2514
  %v2571 = vpack.c.b16 %v2523, %v2515
  %v2572 = vpack.c.b16 %v2532, %v2524
  %v2573 = vpack.c.b16 %v2533, %v2525
  %v2574 = vpack.c.b16 %v2534, %v2526
  %v2575 = vpack.c.b16 %v2535, %v2527
  %v2576 = vpack.c.b16 %v2536, %v2528
  %v2577 = vpack.c.b16 %v2537, %v2529
  %v2578 = vpack.c.b16 %v2538, %v2530
  %v2579 = vpack.c.b16 %v2539, %v2531
  %v2580 = vpack.c.b16 %v2548, %v2540
  %v2581 = vpack.c.b16 %v2549, %v2541
  %v2582 = vpack.c.b16 %v2550, %v2542
  %v2583 = vpack.c.b16 %v2551, %v2543
  %v2584 = vpack.c.b16 %v2552, %v2544
  %v2585 = vpack.c.b16 %v2553, %v2545
  %v2586 = vpack.c.b16 %v2554, %v2546
  %v2587 = vpack.c.b16 %v2555, %v2547
  %vm2620 = vcmask 523264
  %v2622 = vsel %vm2620, %v2427, 0
  %2624 = vmatprep.subr.bf16.mxu0 %v2557
  %2625 = vmatpush1.bf16.msra.mxu0 %v2556
  %2626 = vmatprep.subr.bf16.mxu0 %v2565
  %2627 = vmatpush1.bf16.msra.mxu0 %v2564
  %2628 = vmatprep.subr.bf16.mxu0 %v2573
  %2629 = vmatpush1.bf16.msra.mxu0 %v2572
  %2630 = vmatprep.subr.bf16.mxu0 %v2581
  %2631 = vmatpush1.bf16.msra.mxu0 %v2580
  %2632 = vmatprep.subr.bf16.mxu0 0
  %2633 = vmatpush1.bf16.msra.mxu0 0
  %2634 = vmatprep.subr.bf16.mxu0 0
  %2635 = vmatpush1.bf16.msra.mxu0 0
  %2636 = vmatprep.subr.bf16.mxu0 0
  %2637 = vmatpush1.bf16.msra.mxu0 0
  %2638 = vmatprep.subr.bf16.mxu0 0
  %2639 = vmatpush1.bf16.msra.mxu0 0
  %2640 = vmatprep.subr.bf16.mxu0 0
  %2641 = vmatpush1.bf16.msra.mxu0 0
  %2642 = vmatprep.subr.bf16.mxu0 0
  %2643 = vmatpush1.bf16.msra.mxu0 0
  %2644 = vmatprep.subr.bf16.mxu0 0
  %2645 = vmatpush1.bf16.msra.mxu0 0
  %2646 = vmatprep.subr.bf16.mxu0 0
  %2647 = vmatpush1.bf16.msra.mxu0 0
  %2648 = vmatprep.subr.bf16.mxu0 0
  %2649 = vmatpush1.bf16.msra.mxu0 0
  %2650 = vmatprep.subr.bf16.mxu0 0
  %2651 = vmatpush1.bf16.msra.mxu0 0
  %2652 = vmatprep.subr.bf16.mxu0 0
  %2653 = vmatpush1.bf16.msra.mxu0 0
  %2654 = vmatprep.subr.bf16.mxu0 0
  %2655 = vmatpush1.bf16.msra.mxu0 0
  %2656 = vmatprep.mubr.bf16.mxu0 0
  %2657 = vmatmul.mubr.bf16.gmra.mrb[0].mxu0 %v2622
  %v2658 = vpop.f32.mrb[0].mxu0
  %v2659 = vadd.f32 0.0, %v2658
  %v2660 = vpop.f32.mrb[0].mxu0
  %v2661 = vadd.f32 0.0, %v2660
  %v2662 = vpop.f32.mrb[0].mxu0
  %v2663 = vpop.f32.mrb[0].mxu0
  %2664 = vdwg.mxu0
  %2665 = vmatprep.subr.bf16.mxu0 %v2559
  %2666 = vmatpush1.bf16.msra.mxu0 %v2558
  %2667 = vmatprep.subr.bf16.mxu0 %v2567
  %2668 = vmatpush1.bf16.msra.mxu0 %v2566
  %2669 = vmatprep.subr.bf16.mxu0 %v2575
  %2670 = vmatpush1.bf16.msra.mxu0 %v2574
  %2671 = vmatprep.subr.bf16.mxu0 %v2583
  %2672 = vmatpush1.bf16.msra.mxu0 %v2582
  %2673 = vmatprep.subr.bf16.mxu0 0
  %2674 = vmatpush1.bf16.msra.mxu0 0
  %2675 = vmatprep.subr.bf16.mxu0 0
  %2676 = vmatpush1.bf16.msra.mxu0 0
  %2677 = vmatprep.subr.bf16.mxu0 0
  %2678 = vmatpush1.bf16.msra.mxu0 0
  %2679 = vmatprep.subr.bf16.mxu0 0
  %2680 = vmatpush1.bf16.msra.mxu0 0
  %2681 = vmatprep.subr.bf16.mxu0 0
  %2682 = vmatpush1.bf16.msra.mxu0 0
  %2683 = vmatprep.subr.bf16.mxu0 0
  %2684 = vmatpush1.bf16.msra.mxu0 0
  %2685 = vmatprep.subr.bf16.mxu0 0
  %2686 = vmatpush1.bf16.msra.mxu0 0
  %2687 = vmatprep.subr.bf16.mxu0 0
  %2688 = vmatpush1.bf16.msra.mxu0 0
  %2689 = vmatprep.subr.bf16.mxu0 0
  %2690 = vmatpush1.bf16.msra.mxu0 0
  %2691 = vmatprep.subr.bf16.mxu0 0
  %2692 = vmatpush1.bf16.msra.mxu0 0
  %2693 = vmatprep.subr.bf16.mxu0 0
  %2694 = vmatpush1.bf16.msra.mxu0 0
  %2695 = vmatprep.subr.bf16.mxu0 0
  %2696 = vmatpush1.bf16.msra.mxu0 0
  %2697 = vmatprep.mubr.bf16.mxu0 0
  %2698 = vmatmul.mubr.bf16.gmra.mrb[0].mxu0 %v2622
  %v2699 = vpop.f32.mrb[0].mxu0
  %v2700 = vadd.f32 0.0, %v2699
  %v2701 = vpop.f32.mrb[0].mxu0
  %v2702 = vadd.f32 0.0, %v2701
  %v2703 = vpop.f32.mrb[0].mxu0
  %v2704 = vpop.f32.mrb[0].mxu0
  %2705 = vdwg.mxu0
  %2706 = vmatprep.subr.bf16.mxu0 %v2561
  %2707 = vmatpush1.bf16.msra.mxu0 %v2560
  %2708 = vmatprep.subr.bf16.mxu0 %v2569
  %2709 = vmatpush1.bf16.msra.mxu0 %v2568
  %2710 = vmatprep.subr.bf16.mxu0 %v2577
  %2711 = vmatpush1.bf16.msra.mxu0 %v2576
  %2712 = vmatprep.subr.bf16.mxu0 %v2585
  %2713 = vmatpush1.bf16.msra.mxu0 %v2584
  %2714 = vmatprep.subr.bf16.mxu0 0
  %2715 = vmatpush1.bf16.msra.mxu0 0
  %2716 = vmatprep.subr.bf16.mxu0 0
  %2717 = vmatpush1.bf16.msra.mxu0 0
  %2718 = vmatprep.subr.bf16.mxu0 0
  %2719 = vmatpush1.bf16.msra.mxu0 0
  %2720 = vmatprep.subr.bf16.mxu0 0
  %2721 = vmatpush1.bf16.msra.mxu0 0
  %2722 = vmatprep.subr.bf16.mxu0 0
  %2723 = vmatpush1.bf16.msra.mxu0 0
  %2724 = vmatprep.subr.bf16.mxu0 0
  %2725 = vmatpush1.bf16.msra.mxu0 0
  %2726 = vmatprep.subr.bf16.mxu0 0
  %2727 = vmatpush1.bf16.msra.mxu0 0
  %2728 = vmatprep.subr.bf16.mxu0 0
  %2729 = vmatpush1.bf16.msra.mxu0 0
  %2730 = vmatprep.subr.bf16.mxu0 0
  %2731 = vmatpush1.bf16.msra.mxu0 0
  %2732 = vmatprep.subr.bf16.mxu0 0
  %2733 = vmatpush1.bf16.msra.mxu0 0
  %2734 = vmatprep.subr.bf16.mxu0 0
  %2735 = vmatpush1.bf16.msra.mxu0 0
  %2736 = vmatprep.subr.bf16.mxu0 0
  %2737 = vmatpush1.bf16.msra.mxu0 0
  %2738 = vmatprep.mubr.bf16.mxu0 0
  %2739 = vmatmul.mubr.bf16.gmra.mrb[0].mxu0 %v2622
  %v2740 = vpop.f32.mrb[0].mxu0
  %v2741 = vadd.f32 0.0, %v2740
  %v2742 = vpop.f32.mrb[0].mxu0
  %v2743 = vadd.f32 0.0, %v2742
  %v2744 = vpop.f32.mrb[0].mxu0
  %v2745 = vpop.f32.mrb[0].mxu0
  %2746 = vdwg.mxu0
  %2747 = vmatprep.subr.bf16.mxu0 %v2563
  %2748 = vmatpush1.bf16.msra.mxu0 %v2562
  %2749 = vmatprep.subr.bf16.mxu0 %v2571
  %2750 = vmatpush1.bf16.msra.mxu0 %v2570
  %2751 = vmatprep.subr.bf16.mxu0 %v2579
  %2752 = vmatpush1.bf16.msra.mxu0 %v2578
  %2753 = vmatprep.subr.bf16.mxu0 %v2587
  %2754 = vmatpush1.bf16.msra.mxu0 %v2586
  %2755 = vmatprep.subr.bf16.mxu0 0
  %2756 = vmatpush1.bf16.msra.mxu0 0
  %2757 = vmatprep.subr.bf16.mxu0 0
  %2758 = vmatpush1.bf16.msra.mxu0 0
  %2759 = vmatprep.subr.bf16.mxu0 0
  %2760 = vmatpush1.bf16.msra.mxu0 0
  %2761 = vmatprep.subr.bf16.mxu0 0
  %2762 = vmatpush1.bf16.msra.mxu0 0
  %2763 = vmatprep.subr.bf16.mxu0 0
  %2764 = vmatpush1.bf16.msra.mxu0 0
  %2765 = vmatprep.subr.bf16.mxu0 0
  %2766 = vmatpush1.bf16.msra.mxu0 0
  %2767 = vmatprep.subr.bf16.mxu0 0
  %2768 = vmatpush1.bf16.msra.mxu0 0
  %2769 = vmatprep.subr.bf16.mxu0 0
  %2770 = vmatpush1.bf16.msra.mxu0 0
  %2771 = vmatprep.subr.bf16.mxu0 0
  %2772 = vmatpush1.bf16.msra.mxu0 0
  %2773 = vmatprep.subr.bf16.mxu0 0
  %2774 = vmatpush1.bf16.msra.mxu0 0
  %2775 = vmatprep.subr.bf16.mxu0 0
  %2776 = vmatpush1.bf16.msra.mxu0 0
  %2777 = vmatprep.subr.bf16.mxu0 0
  %2778 = vmatpush1.bf16.msra.mxu0 0
  %2779 = vmatprep.mubr.bf16.mxu0 0
  %2780 = vmatmul.mubr.bf16.gmra.mrb[0].mxu0 %v2622
  %v2781 = vpop.f32.mrb[0].mxu0
  %v2782 = vadd.f32 0.0, %v2781
  %v2783 = vpop.f32.mrb[0].mxu0
  %v2784 = vadd.f32 0.0, %v2783
  %v2785 = vpop.f32.mrb[0].mxu0
  %v2786 = vpop.f32.mrb[0].mxu0
  %2787 = vdwg.mxu0
  %v2788 = vsub.f32 %v1839, %v2659
  %v2789 = vsub.f32 %v1841, %v2661
  %v2790 = vsub.f32 %v1921, %v2700
  %v2791 = vsub.f32 %v1923, %v2702
  %v2792 = vsub.f32 %v2003, %v2741
  %v2793 = vsub.f32 %v2005, %v2743
  %v2794 = vsub.f32 %v2085, %v2782
  %v2795 = vsub.f32 %v2087, %v2784
  %v2796 = vmul.f32 %v2788, %v2788
  %v2797 = vmul.f32 %v2789, %v2789
  %v2798 = vmul.f32 %v2790, %v2790
  %v2799 = vmul.f32 %v2791, %v2791
  %v2800 = vmul.f32 %v2792, %v2792
  %v2801 = vmul.f32 %v2793, %v2793
  %v2802 = vmul.f32 %v2794, %v2794
  %v2803 = vmul.f32 %v2795, %v2795
  %v2804 = vpack.c.bf16 %v2796, %v2796
  %v2805 = vpack.c.bf16 %v2797, %v2797
  %v2806 = vpack.c.bf16 %v2798, %v2798
  %v2807 = vpack.c.bf16 %v2799, %v2799
  %v2808 = vpack.c.bf16 %v2800, %v2800
  %v2809 = vpack.c.bf16 %v2801, %v2801
  %v2810 = vpack.c.bf16 %v2802, %v2802
  %v2811 = vpack.c.bf16 %v2803, %v2803
  %v2812 = vld [vmem:[%s5] sm:$0xf]
  %v2813 = vld [vmem:[%s5 + $0x4] sm:$0xf]
  %v2814 = vld [vmem:[%s5 + $0x8] sm:$0xf]
  %v2815 = vld [vmem:[%s5 + $0xc] sm:$0xf]
  %v2816 = vld [vmem:[%s5 + $0x10] sm:$0xf]
  %v2817 = vld [vmem:[%s5 + $0x14] sm:$0xf]
  %v2818 = vld [vmem:[%s5 + $0x18] sm:$0xf]
  %v2819 = vld [vmem:[%s5 + $0x1c] sm:$0xf]
  %v2820 = vld [vmem:[%s5 + $0x20] sm:$0xf]
  %v2821 = vld [vmem:[%s5 + $0x24] sm:$0xf]
  %v2822 = vld [vmem:[%s5 + $0x28] sm:$0xf]
  %v2823 = vld [vmem:[%s5 + $0x2c] sm:$0xf]
  %v2824 = vld [vmem:[%s5 + $0x30] sm:$0xf]
  %v2825 = vld [vmem:[%s5 + $0x34] sm:$0xf]
  %v2826 = vld [vmem:[%s5 + $0x38] sm:$0xf]
  %v2827 = vld [vmem:[%s5 + $0x3c] sm:$0xf]
  %v2828 = vld [vmem:[%s5 + $0x40] sm:$0xf]
  %v2829 = vld [vmem:[%s5 + $0x44] sm:$0xf]
  %v2830 = vld [vmem:[%s5 + $0x48] sm:$0xf]
  %v2831 = vld [vmem:[%s5 + $0x4c] sm:$0xf]
  %v2832 = vld [vmem:[%s5 + $0x50] sm:$0xf]
  %v2833 = vld [vmem:[%s5 + $0x54] sm:$0xf]
  %v2834 = vld [vmem:[%s5 + $0x58] sm:$0xf]
  %v2835 = vld [vmem:[%s5 + $0x5c] sm:$0xf]
  %v2836 = vld [vmem:[%s5 + $0x60] sm:$0xf]
  %v2837 = vld [vmem:[%s5 + $0x64] sm:$0xf]
  %v2838 = vld [vmem:[%s5 + $0x68] sm:$0xf]
  %v2839 = vld [vmem:[%s5 + $0x6c] sm:$0xf]
  %v2840 = vld [vmem:[%s5 + $0x70] sm:$0xf]
  %v2841 = vld [vmem:[%s5 + $0x74] sm:$0xf]
  %v2842 = vld [vmem:[%s5 + $0x78] sm:$0xf]
  %v2843 = vld [vmem:[%s5 + $0x7c] sm:$0xf]
  %v2844 = vld [vmem:[%s5 + $0x80] sm:$0xf]
  %v2845 = vld [vmem:[%s5 + $0x84] sm:$0xf]
  %v2846 = vld [vmem:[%s5 + $0x88] sm:$0xf]
  %v2847 = vld [vmem:[%s5 + $0x8c] sm:$0xf]
  %v2848 = vld [vmem:[%s5 + $0x90] sm:$0xf]
  %v2849 = vld [vmem:[%s5 + $0x94] sm:$0xf]
  %v2850 = vld [vmem:[%s5 + $0x98] sm:$0xf]
  %v2851 = vld [vmem:[%s5 + $0x9c] sm:$0xf]
  %v2852 = vld [vmem:[%s5 + $0xa0] sm:$0xf]
  %v2853 = vld [vmem:[%s5 + $0xa4] sm:$0xf]
  %v2854 = vld [vmem:[%s5 + $0xa8] sm:$0xf]
  %v2855 = vld [vmem:[%s5 + $0xac] sm:$0xf]
  %v2856 = vld [vmem:[%s5 + $0xb0] sm:$0xf]
  %v2857 = vld [vmem:[%s5 + $0xb4] sm:$0xf]
  %v2858 = vld [vmem:[%s5 + $0xb8] sm:$0xf]
  %v2859 = vld [vmem:[%s5 + $0xbc] sm:$0xf]
  %v2860 = vld [vmem:[%s5 + $0xc0] sm:$0xf]
  %v2861 = vld [vmem:[%s5 + $0xc4] sm:$0xf]
  %v2862 = vld [vmem:[%s5 + $0xc8] sm:$0xf]
  %v2863 = vld [vmem:[%s5 + $0xcc] sm:$0xf]
  %v2864 = vld [vmem:[%s5 + $0xd0] sm:$0xf]
  %v2865 = vld [vmem:[%s5 + $0xd4] sm:$0xf]
  %v2866 = vld [vmem:[%s5 + $0xd8] sm:$0xf]
  %v2867 = vld [vmem:[%s5 + $0xdc] sm:$0xf]
  %v2868 = vld [vmem:[%s5 + $0xe0] sm:$0xf]
  %v2869 = vld [vmem:[%s5 + $0xe4] sm:$0xf]
  %v2870 = vld [vmem:[%s5 + $0xe8] sm:$0xf]
  %v2871 = vld [vmem:[%s5 + $0xec] sm:$0xf]
  %v2872 = vld [vmem:[%s5 + $0xf0] sm:$0xf]
  %v2873 = vld [vmem:[%s5 + $0xf4] sm:$0xf]
  %v2874 = vld [vmem:[%s5 + $0xf8] sm:$0xf]
  %v2875 = vld [vmem:[%s5 + $0xfc] sm:$0xf]
  %v2876 = vld [vmem:[%s5 + $0x100] sm:$0xf]
  %v2877 = vld [vmem:[%s5 + $0x104] sm:$0xf]
  %v2878 = vld [vmem:[%s5 + $0x108] sm:$0xf]
  %v2879 = vld [vmem:[%s5 + $0x10c] sm:$0xf]
  %v2880 = vld [vmem:[%s5 + $0x110] sm:$0xf]
  %v2881 = vld [vmem:[%s5 + $0x114] sm:$0xf]
  %v2882 = vld [vmem:[%s5 + $0x118] sm:$0xf]
  %v2883 = vld [vmem:[%s5 + $0x11c] sm:$0xf]
  %v2884 = vld [vmem:[%s5 + $0x120] sm:$0xf]
  %v2885 = vld [vmem:[%s5 + $0x124] sm:$0xf]
  %v2886 = vld [vmem:[%s5 + $0x128] sm:$0xf]
  %v2887 = vld [vmem:[%s5 + $0x12c] sm:$0xf]
  %v2888 = vld [vmem:[%s5 + $0x130] sm:$0xf]
  %v2889 = vld [vmem:[%s5 + $0x134] sm:$0xf]
  %v2890 = vld [vmem:[%s5 + $0x138] sm:$0xf]
  %v2891 = vld [vmem:[%s5 + $0x13c] sm:$0xf]
  %v2892 = vld [vmem:[%s5 + $0x140] sm:$0xf]
  %v2893 = vld [vmem:[%s5 + $0x144] sm:$0xf]
  %v2894 = vld [vmem:[%s5 + $0x148] sm:$0xf]
  %v2895 = vld [vmem:[%s5 + $0x14c] sm:$0xf]
  %v2896 = vld [vmem:[%s5 + $0x150] sm:$0xf]
  %v2897 = vld [vmem:[%s5 + $0x154] sm:$0xf]
  %v2898 = vld [vmem:[%s5 + $0x158] sm:$0xf]
  %v2899 = vld [vmem:[%s5 + $0x15c] sm:$0xf]
  %v2900 = vld [vmem:[%s5 + $0x160] sm:$0xf]
  %v2901 = vld [vmem:[%s5 + $0x164] sm:$0xf]
  %v2902 = vld [vmem:[%s5 + $0x168] sm:$0xf]
  %v2903 = vld [vmem:[%s5 + $0x16c] sm:$0xf]
  %v2904 = vld [vmem:[%s5 + $0x170] sm:$0xf]
  %v2905 = vld [vmem:[%s5 + $0x174] sm:$0xf]
  %v2906 = vld [vmem:[%s5 + $0x178] sm:$0xf]
  %v2907 = vld [vmem:[%s5 + $0x17c] sm:$0xf]
  %v2908 = vld [vmem:[%s5 + $0x180] sm:$0xf]
  %v2909 = vld [vmem:[%s5 + $0x184] sm:$0xf]
  %v2910 = vld [vmem:[%s5 + $0x188] sm:$0xf]
  %v2911 = vld [vmem:[%s5 + $0x18c] sm:$0xf]
  %v2912 = vld [vmem:[%s5 + $0x190] sm:$0xf]
  %v2913 = vld [vmem:[%s5 + $0x194] sm:$0xf]
  %v2914 = vld [vmem:[%s5 + $0x198] sm:$0xf]
  %v2915 = vld [vmem:[%s5 + $0x19c] sm:$0xf]
  %v2916 = vld [vmem:[%s5 + $0x1a0] sm:$0xf]
  %v2917 = vld [vmem:[%s5 + $0x1a4] sm:$0xf]
  %v2918 = vld [vmem:[%s5 + $0x1a8] sm:$0xf]
  %v2919 = vld [vmem:[%s5 + $0x1ac] sm:$0xf]
  %v2920 = vld [vmem:[%s5 + $0x1b0] sm:$0xf]
  %v2921 = vld [vmem:[%s5 + $0x1b4] sm:$0xf]
  %v2922 = vld [vmem:[%s5 + $0x1b8] sm:$0xf]
  %v2923 = vld [vmem:[%s5 + $0x1bc] sm:$0xf]
  %v2924 = vld [vmem:[%s5 + $0x1c0] sm:$0xf]
  %v2925 = vld [vmem:[%s5 + $0x1c4] sm:$0xf]
  %v2926 = vld [vmem:[%s5 + $0x1c8] sm:$0xf]
  %v2927 = vld [vmem:[%s5 + $0x1cc] sm:$0xf]
  %v2928 = vld [vmem:[%s5 + $0x1d0] sm:$0xf]
  %v2929 = vld [vmem:[%s5 + $0x1d4] sm:$0xf]
  %v2930 = vld [vmem:[%s5 + $0x1d8] sm:$0xf]
  %v2931 = vld [vmem:[%s5 + $0x1dc] sm:$0xf]
  %v2932 = vld [vmem:[%s5 + $0x1e0] sm:$0xf]
  %v2933 = vld [vmem:[%s5 + $0x1e4] sm:$0xf]
  %v2934 = vld [vmem:[%s5 + $0x1e8] sm:$0xf]
  %v2935 = vld [vmem:[%s5 + $0x1ec] sm:$0xf]
  %v2936 = vld [vmem:[%s5 + $0x1f0] sm:$0xf]
  %v2937 = vld [vmem:[%s5 + $0x1f4] sm:$0xf]
  %v2938 = vld [vmem:[%s5 + $0x1f8] sm:$0xf]
  %v2939 = vld [vmem:[%s5 + $0x1fc] sm:$0xf]
  %v3068 = vunpack.c.l.b16 %v2812
  %v3069 = vunpack.c.l.b16 %v2813
  %v3070 = vunpack.c.l.b16 %v2814
  %v3071 = vunpack.c.l.b16 %v2815
  %v3072 = vunpack.c.l.b16 %v2816
  %v3073 = vunpack.c.l.b16 %v2817
  %v3074 = vunpack.c.l.b16 %v2818
  %v3075 = vunpack.c.l.b16 %v2819
  %v3076 = vunpack.c.l.b16 %v2820
  %v3077 = vunpack.c.l.b16 %v2821
  %v3078 = vunpack.c.l.b16 %v2822
  %v3079 = vunpack.c.l.b16 %v2823
  %v3080 = vunpack.c.l.b16 %v2824
  %v3081 = vunpack.c.l.b16 %v2825
  %v3082 = vunpack.c.l.b16 %v2826
  %v3083 = vunpack.c.l.b16 %v2827
  %v3084 = vunpack.c.l.b16 %v2828
  %v3085 = vunpack.c.l.b16 %v2829
  %v3086 = vunpack.c.l.b16 %v2830
  %v3087 = vunpack.c.l.b16 %v2831
  %v3088 = vunpack.c.l.b16 %v2832
  %v3089 = vunpack.c.l.b16 %v2833
  %v3090 = vunpack.c.l.b16 %v2834
  %v3091 = vunpack.c.l.b16 %v2835
  %v3092 = vunpack.c.l.b16 %v2836
  %v3093 = vunpack.c.l.b16 %v2837
  %v3094 = vunpack.c.l.b16 %v2838
  %v3095 = vunpack.c.l.b16 %v2839
  %v3096 = vunpack.c.l.b16 %v2840
  %v3097 = vunpack.c.l.b16 %v2841
  %v3098 = vunpack.c.l.b16 %v2842
  %v3099 = vunpack.c.l.b16 %v2843
  %v3100 = vunpack.c.l.b16 %v2844
  %v3101 = vunpack.c.l.b16 %v2845
  %v3102 = vunpack.c.l.b16 %v2846
  %v3103 = vunpack.c.l.b16 %v2847
  %v3104 = vunpack.c.l.b16 %v2848
  %v3105 = vunpack.c.l.b16 %v2849
  %v3106 = vunpack.c.l.b16 %v2850
  %v3107 = vunpack.c.l.b16 %v2851
  %v3108 = vunpack.c.l.b16 %v2852
  %v3109 = vunpack.c.l.b16 %v2853
  %v3110 = vunpack.c.l.b16 %v2854
  %v3111 = vunpack.c.l.b16 %v2855
  %v3112 = vunpack.c.l.b16 %v2856
  %v3113 = vunpack.c.l.b16 %v2857
  %v3114 = vunpack.c.l.b16 %v2858
  %v3115 = vunpack.c.l.b16 %v2859
  %v3116 = vunpack.c.l.b16 %v2860
  %v3117 = vunpack.c.l.b16 %v2861
  %v3118 = vunpack.c.l.b16 %v2862
  %v3119 = vunpack.c.l.b16 %v2863
  %v3120 = vunpack.c.l.b16 %v2864
  %v3121 = vunpack.c.l.b16 %v2865
  %v3122 = vunpack.c.l.b16 %v2866
  %v3123 = vunpack.c.l.b16 %v2867
  %v3124 = vunpack.c.l.b16 %v2868
  %v3125 = vunpack.c.l.b16 %v2869
  %v3126 = vunpack.c.l.b16 %v2870
  %v3127 = vunpack.c.l.b16 %v2871
  %v3128 = vunpack.c.l.b16 %v2872
  %v3129 = vunpack.c.l.b16 %v2873
  %v3130 = vunpack.c.l.b16 %v2874
  %v3131 = vunpack.c.l.b16 %v2875
  %v3132 = vunpack.c.l.b16 %v2876
  %v3133 = vunpack.c.l.b16 %v2877
  %v3134 = vunpack.c.l.b16 %v2878
  %v3135 = vunpack.c.l.b16 %v2879
  %v3136 = vunpack.c.l.b16 %v2880
  %v3137 = vunpack.c.l.b16 %v2881
  %v3138 = vunpack.c.l.b16 %v2882
  %v3139 = vunpack.c.l.b16 %v2883
  %v3140 = vunpack.c.l.b16 %v2884
  %v3141 = vunpack.c.l.b16 %v2885
  %v3142 = vunpack.c.l.b16 %v2886
  %v3143 = vunpack.c.l.b16 %v2887
  %v3144 = vunpack.c.l.b16 %v2888
  %v3145 = vunpack.c.l.b16 %v2889
  %v3146 = vunpack.c.l.b16 %v2890
  %v3147 = vunpack.c.l.b16 %v2891
  %v3148 = vunpack.c.l.b16 %v2892
  %v3149 = vunpack.c.l.b16 %v2893
  %v3150 = vunpack.c.l.b16 %v2894
  %v3151 = vunpack.c.l.b16 %v2895
  %v3152 = vunpack.c.l.b16 %v2896
  %v3153 = vunpack.c.l.b16 %v2897
  %v3154 = vunpack.c.l.b16 %v2898
  %v3155 = vunpack.c.l.b16 %v2899
  %v3156 = vunpack.c.l.b16 %v2900
  %v3157 = vunpack.c.l.b16 %v2901
  %v3158 = vunpack.c.l.b16 %v2902
  %v3159 = vunpack.c.l.b16 %v2903
  %v3160 = vunpack.c.l.b16 %v2904
  %v3161 = vunpack.c.l.b16 %v2905
  %v3162 = vunpack.c.l.b16 %v2906
  %v3163 = vunpack.c.l.b16 %v2907
  %v3164 = vunpack.c.l.b16 %v2908
  %v3165 = vunpack.c.l.b16 %v2909
  %v3166 = vunpack.c.l.b16 %v2910
  %v3167 = vunpack.c.l.b16 %v2911
  %v3168 = vunpack.c.l.b16 %v2912
  %v3169 = vunpack.c.l.b16 %v2913
  %v3170 = vunpack.c.l.b16 %v2914
  %v3171 = vunpack.c.l.b16 %v2915
  %v3172 = vunpack.c.l.b16 %v2916
  %v3173 = vunpack.c.l.b16 %v2917
  %v3174 = vunpack.c.l.b16 %v2918
  %v3175 = vunpack.c.l.b16 %v2919
  %v3176 = vunpack.c.l.b16 %v2920
  %v3177 = vunpack.c.l.b16 %v2921
  %v3178 = vunpack.c.l.b16 %v2922
  %v3179 = vunpack.c.l.b16 %v2923
  %v3180 = vunpack.c.l.b16 %v2924
  %v3181 = vunpack.c.l.b16 %v2925
  %v3182 = vunpack.c.l.b16 %v2926
  %v3183 = vunpack.c.l.b16 %v2927
  %v3184 = vunpack.c.l.b16 %v2928
  %v3185 = vunpack.c.l.b16 %v2929
  %v3186 = vunpack.c.l.b16 %v2930
  %v3187 = vunpack.c.l.b16 %v2931
  %v3188 = vunpack.c.l.b16 %v2932
  %v3189 = vunpack.c.l.b16 %v2933
  %v3190 = vunpack.c.l.b16 %v2934
  %v3191 = vunpack.c.l.b16 %v2935
  %v3192 = vunpack.c.l.b16 %v2936
  %v3193 = vunpack.c.l.b16 %v2937
  %v3194 = vunpack.c.l.b16 %v2938
  %v3195 = vunpack.c.l.b16 %v2939
  %v3196 = vpack.c.b16 %v3069, %v3068
  %v3197 = vpack.c.b16 %v3071, %v3070
  %v3198 = vpack.c.b16 %v3073, %v3072
  %v3199 = vpack.c.b16 %v3075, %v3074
  %v3200 = vpack.c.b16 %v3077, %v3076
  %v3201 = vpack.c.b16 %v3079, %v3078
  %v3202 = vpack.c.b16 %v3081, %v3080
  %v3203 = vpack.c.b16 %v3083, %v3082
  %v3204 = vpack.c.b16 %v3085, %v3084
  %v3205 = vpack.c.b16 %v3087, %v3086
  %v3206 = vpack.c.b16 %v3089, %v3088
  %v3207 = vpack.c.b16 %v3091, %v3090
  %v3208 = vpack.c.b16 %v3093, %v3092
  %v3209 = vpack.c.b16 %v3095, %v3094
  %v3210 = vpack.c.b16 %v3097, %v3096
  %v3211 = vpack.c.b16 %v3099, %v3098
  %v3212 = vpack.c.b16 %v3101, %v3100
  %v3213 = vpack.c.b16 %v3103, %v3102
  %v3214 = vpack.c.b16 %v3105, %v3104
  %v3215 = vpack.c.b16 %v3107, %v3106
  %v3216 = vpack.c.b16 %v3109, %v3108
  %v3217 = vpack.c.b16 %v3111, %v3110
  %v3218 = vpack.c.b16 %v3113, %v3112
  %v3219 = vpack.c.b16 %v3115, %v3114
  %v3220 = vpack.c.b16 %v3117, %v3116
  %v3221 = vpack.c.b16 %v3119, %v3118
  %v3222 = vpack.c.b16 %v3121, %v3120
  %v3223 = vpack.c.b16 %v3123, %v3122
  %v3224 = vpack.c.b16 %v3125, %v3124
  %v3225 = vpack.c.b16 %v3127, %v3126
  %v3226 = vpack.c.b16 %v3129, %v3128
  %v3227 = vpack.c.b16 %v3131, %v3130
  %v3228 = vpack.c.b16 %v3133, %v3132
  %v3229 = vpack.c.b16 %v3135, %v3134
  %v3230 = vpack.c.b16 %v3137, %v3136
  %v3231 = vpack.c.b16 %v3139, %v3138
  %v3232 = vpack.c.b16 %v3141, %v3140
  %v3233 = vpack.c.b16 %v3143, %v3142
  %v3234 = vpack.c.b16 %v3145, %v3144
  %v3235 = vpack.c.b16 %v3147, %v3146
  %v3236 = vpack.c.b16 %v3149, %v3148
  %v3237 = vpack.c.b16 %v3151, %v3150
  %v3238 = vpack.c.b16 %v3153, %v3152
  %v3239 = vpack.c.b16 %v3155, %v3154
  %v3240 = vpack.c.b16 %v3157, %v3156
  %v3241 = vpack.c.b16 %v3159, %v3158
  %v3242 = vpack.c.b16 %v3161, %v3160
  %v3243 = vpack.c.b16 %v3163, %v3162
  %v3244 = vpack.c.b16 %v3165, %v3164
  %v3245 = vpack.c.b16 %v3167, %v3166
  %v3246 = vpack.c.b16 %v3169, %v3168
  %v3247 = vpack.c.b16 %v3171, %v3170
  %v3248 = vpack.c.b16 %v3173, %v3172
  %v3249 = vpack.c.b16 %v3175, %v3174
  %v3250 = vpack.c.b16 %v3177, %v3176
  %v3251 = vpack.c.b16 %v3179, %v3178
  %v3252 = vpack.c.b16 %v3181, %v3180
  %v3253 = vpack.c.b16 %v3183, %v3182
  %v3254 = vpack.c.b16 %v3185, %v3184
  %v3255 = vpack.c.b16 %v3187, %v3186
  %v3256 = vpack.c.b16 %v3189, %v3188
  %v3257 = vpack.c.b16 %v3191, %v3190
  %v3258 = vpack.c.b16 %v3193, %v3192
  %v3259 = vpack.c.b16 %v3195, %v3194
  %3324 = vmatprep.subr.bf16.mxu0 0
  %3325 = vmatpush1.bf16.msra.mxu0 %v3196
  %3326 = vmatprep.subr.bf16.mxu0 0
  %3327 = vmatpush1.bf16.msra.mxu0 %v3197
  %3328 = vmatprep.subr.bf16.mxu0 0
  %3329 = vmatpush1.bf16.msra.mxu0 %v3198
  %3330 = vmatprep.subr.bf16.mxu0 0
  %3331 = vmatpush1.bf16.msra.mxu0 %v3199
  %3332 = vmatprep.subr.bf16.mxu0 0
  %3333 = vmatpush1.bf16.msra.mxu0 %v3200
  %3334 = vmatprep.subr.bf16.mxu0 0
  %3335 = vmatpush1.bf16.msra.mxu0 %v3201
  %3336 = vmatprep.subr.bf16.mxu0 0
  %3337 = vmatpush1.bf16.msra.mxu0 %v3202
  %3338 = vmatprep.subr.bf16.mxu0 0
  %3339 = vmatpush1.bf16.msra.mxu0 %v3203
  %3340 = vmatprep.subr.bf16.mxu0 0
  %3341 = vmatpush1.bf16.msra.mxu0 %v3204
  %3342 = vmatprep.subr.bf16.mxu0 0
  %3343 = vmatpush1.bf16.msra.mxu0 %v3205
  %3344 = vmatprep.subr.bf16.mxu0 0
  %3345 = vmatpush1.bf16.msra.mxu0 %v3206
  %3346 = vmatprep.subr.bf16.mxu0 0
  %3347 = vmatpush1.bf16.msra.mxu0 %v3207
  %3348 = vmatprep.subr.bf16.mxu0 0
  %3349 = vmatpush1.bf16.msra.mxu0 %v3208
  %3350 = vmatprep.subr.bf16.mxu0 0
  %3351 = vmatpush1.bf16.msra.mxu0 %v3209
  %3352 = vmatprep.subr.bf16.mxu0 0
  %3353 = vmatpush1.bf16.msra.mxu0 %v3210
  %3354 = vmatprep.subr.bf16.mxu0 0
  %3355 = vmatpush1.bf16.msra.mxu0 %v3211
  %3356 = vmatprep.mubr.bf16.mxu0 %v2805
  %3357 = vmatmul.mubr.bf16.gmra.mrb[0].mxu0 %v2804
  %v3358 = vpop.f32.mrb[0].mxu0
  %v3359 = vadd.f32 0.0, %v3358
  %v3360 = vpop.f32.mrb[0].mxu0
  %v3361 = vpop.f32.mrb[0].mxu0
  %v3362 = vpop.f32.mrb[0].mxu0
  %3363 = vdwg.mxu0
  %3364 = vmatprep.subr.bf16.mxu0 0
  %3365 = vmatpush1.bf16.msra.mxu0 %v3212
  %3366 = vmatprep.subr.bf16.mxu0 0
  %3367 = vmatpush1.bf16.msra.mxu0 %v3213
  %3368 = vmatprep.subr.bf16.mxu0 0
  %3369 = vmatpush1.bf16.msra.mxu0 %v3214
  %3370 = vmatprep.subr.bf16.mxu0 0
  %3371 = vmatpush1.bf16.msra.mxu0 %v3215
  %3372 = vmatprep.subr.bf16.mxu0 0
  %3373 = vmatpush1.bf16.msra.mxu0 %v3216
  %3374 = vmatprep.subr.bf16.mxu0 0
  %3375 = vmatpush1.bf16.msra.mxu0 %v3217
  %3376 = vmatprep.subr.bf16.mxu0 0
  %3377 = vmatpush1.bf16.msra.mxu0 %v3218
  %3378 = vmatprep.subr.bf16.mxu0 0
  %3379 = vmatpush1.bf16.msra.mxu0 %v3219
  %3380 = vmatprep.subr.bf16.mxu0 0
  %3381 = vmatpush1.bf16.msra.mxu0 %v3220
  %3382 = vmatprep.subr.bf16.mxu0 0
  %3383 = vmatpush1.bf16.msra.mxu0 %v3221
  %3384 = vmatprep.subr.bf16.mxu0 0
  %3385 = vmatpush1.bf16.msra.mxu0 %v3222
  %3386 = vmatprep.subr.bf16.mxu0 0
  %3387 = vmatpush1.bf16.msra.mxu0 %v3223
  %3388 = vmatprep.subr.bf16.mxu0 0
  %3389 = vmatpush1.bf16.msra.mxu0 %v3224
  %3390 = vmatprep.subr.bf16.mxu0 0
  %3391 = vmatpush1.bf16.msra.mxu0 %v3225
  %3392 = vmatprep.subr.bf16.mxu0 0
  %3393 = vmatpush1.bf16.msra.mxu0 %v3226
  %3394 = vmatprep.subr.bf16.mxu0 0
  %3395 = vmatpush1.bf16.msra.mxu0 %v3227
  %3396 = vmatprep.mubr.bf16.mxu0 %v2807
  %3397 = vmatmul.mubr.bf16.gmra.mrb[0].mxu0 %v2806
  %v3398 = vpop.f32.mrb[0].mxu0
  %v3399 = vadd.f32 %v3359, %v3398
  %v3400 = vpop.f32.mrb[0].mxu0
  %v3401 = vpop.f32.mrb[0].mxu0
  %v3402 = vpop.f32.mrb[0].mxu0
  %3403 = vdwg.mxu0
  %3404 = vmatprep.subr.bf16.mxu0 0
  %3405 = vmatpush1.bf16.msra.mxu0 %v3228
  %3406 = vmatprep.subr.bf16.mxu0 0
  %3407 = vmatpush1.bf16.msra.mxu0 %v3229
  %3408 = vmatprep.subr.bf16.mxu0 0
  %3409 = vmatpush1.bf16.msra.mxu0 %v3230
  %3410 = vmatprep.subr.bf16.mxu0 0
  %3411 = vmatpush1.bf16.msra.mxu0 %v3231
  %3412 = vmatprep.subr.bf16.mxu0 0
  %3413 = vmatpush1.bf16.msra.mxu0 %v3232
  %3414 = vmatprep.subr.bf16.mxu0 0
  %3415 = vmatpush1.bf16.msra.mxu0 %v3233
  %3416 = vmatprep.subr.bf16.mxu0 0
  %3417 = vmatpush1.bf16.msra.mxu0 %v3234
  %3418 = vmatprep.subr.bf16.mxu0 0
  %3419 = vmatpush1.bf16.msra.mxu0 %v3235
  %3420 = vmatprep.subr.bf16.mxu0 0
  %3421 = vmatpush1.bf16.msra.mxu0 %v3236
  %3422 = vmatprep.subr.bf16.mxu0 0
  %3423 = vmatpush1.bf16.msra.mxu0 %v3237
  %3424 = vmatprep.subr.bf16.mxu0 0
  %3425 = vmatpush1.bf16.msra.mxu0 %v3238
  %3426 = vmatprep.subr.bf16.mxu0 0
  %3427 = vmatpush1.bf16.msra.mxu0 %v3239
  %3428 = vmatprep.subr.bf16.mxu0 0
  %3429 = vmatpush1.bf16.msra.mxu0 %v3240
  %3430 = vmatprep.subr.bf16.mxu0 0
  %3431 = vmatpush1.bf16.msra.mxu0 %v3241
  %3432 = vmatprep.subr.bf16.mxu0 0
  %3433 = vmatpush1.bf16.msra.mxu0 %v3242
  %3434 = vmatprep.subr.bf16.mxu0 0
  %3435 = vmatpush1.bf16.msra.mxu0 %v3243
  %3436 = vmatprep.mubr.bf16.mxu0 %v2809
  %3437 = vmatmul.mubr.bf16.gmra.mrb[0].mxu0 %v2808
  %v3438 = vpop.f32.mrb[0].mxu0
  %v3439 = vadd.f32 %v3399, %v3438
  %v3440 = vpop.f32.mrb[0].mxu0
  %v3441 = vpop.f32.mrb[0].mxu0
  %v3442 = vpop.f32.mrb[0].mxu0
  %3443 = vdwg.mxu0
  %3444 = vmatprep.subr.bf16.mxu0 0
  %3445 = vmatpush1.bf16.msra.mxu0 %v3244
  %3446 = vmatprep.subr.bf16.mxu0 0
  %3447 = vmatpush1.bf16.msra.mxu0 %v3245
  %3448 = vmatprep.subr.bf16.mxu0 0
  %3449 = vmatpush1.bf16.msra.mxu0 %v3246
  %3450 = vmatprep.subr.bf16.mxu0 0
  %3451 = vmatpush1.bf16.msra.mxu0 %v3247
  %3452 = vmatprep.subr.bf16.mxu0 0
  %3453 = vmatpush1.bf16.msra.mxu0 %v3248
  %3454 = vmatprep.subr.bf16.mxu0 0
  %3455 = vmatpush1.bf16.msra.mxu0 %v3249
  %3456 = vmatprep.subr.bf16.mxu0 0
  %3457 = vmatpush1.bf16.msra.mxu0 %v3250
  %3458 = vmatprep.subr.bf16.mxu0 0
  %3459 = vmatpush1.bf16.msra.mxu0 %v3251
  %3460 = vmatprep.subr.bf16.mxu0 0
  %3461 = vmatpush1.bf16.msra.mxu0 %v3252
  %3462 = vmatprep.subr.bf16.mxu0 0
  %3463 = vmatpush1.bf16.msra.mxu0 %v3253
  %3464 = vmatprep.subr.bf16.mxu0 0
  %3465 = vmatpush1.bf16.msra.mxu0 %v3254
  %3466 = vmatprep.subr.bf16.mxu0 0
  %3467 = vmatpush1.bf16.msra.mxu0 %v3255
  %3468 = vmatprep.subr.bf16.mxu0 0
  %3469 = vmatpush1.bf16.msra.mxu0 %v3256
  %3470 = vmatprep.subr.bf16.mxu0 0
  %3471 = vmatpush1.bf16.msra.mxu0 %v3257
  %3472 = vmatprep.subr.bf16.mxu0 0
  %3473 = vmatpush1.bf16.msra.mxu0 %v3258
  %3474 = vmatprep.subr.bf16.mxu0 0
  %3475 = vmatpush1.bf16.msra.mxu0 %v3259
  %3476 = vmatprep.mubr.bf16.mxu0 %v2811
  %3477 = vmatmul.mubr.bf16.gmra.mrb[0].mxu0 %v2810
  %v3478 = vpop.f32.mrb[0].mxu0
  %v3479 = vadd.f32 %v3439, %v3478
  %v3480 = vpop.f32.mrb[0].mxu0
  %v3481 = vpop.f32.mrb[0].mxu0
  %v3482 = vpop.f32.mrb[0].mxu0
  %3483 = vdwg.mxu0
  %v3484 = vpack.c.bf16 %v3479, %v3479
  %v3486 = vsel %vm2620, %v3484, 0
  %3488 = vmatprep.subr.bf16.mxu0 %v2557
  %3489 = vmatpush1.bf16.msra.mxu0 %v2556
  %3490 = vmatprep.subr.bf16.mxu0 %v2565
  %3491 = vmatpush1.bf16.msra.mxu0 %v2564
  %3492 = vmatprep.subr.bf16.mxu0 %v2573
  %3493 = vmatpush1.bf16.msra.mxu0 %v2572
  %3494 = vmatprep.subr.bf16.mxu0 %v2581
  %3495 = vmatpush1.bf16.msra.mxu0 %v2580
  %3496 = vmatprep.subr.bf16.mxu0 0
  %3497 = vmatpush1.bf16.msra.mxu0 0
  %3498 = vmatprep.subr.bf16.mxu0 0
  %3499 = vmatpush1.bf16.msra.mxu0 0
  %3500 = vmatprep.subr.bf16.mxu0 0
  %3501 = vmatpush1.bf16.msra.mxu0 0
  %3502 = vmatprep.subr.bf16.mxu0 0
  %3503 = vmatpush1.bf16.msra.mxu0 0
  %3504 = vmatprep.subr.bf16.mxu0 0
  %3505 = vmatpush1.bf16.msra.mxu0 0
  %3506 = vmatprep.subr.bf16.mxu0 0
  %3507 = vmatpush1.bf16.msra.mxu0 0
  %3508 = vmatprep.subr.bf16.mxu0 0
  %3509 = vmatpush1.bf16.msra.mxu0 0
  %3510 = vmatprep.subr.bf16.mxu0 0
  %3511 = vmatpush1.bf16.msra.mxu0 0
  %3512 = vmatprep.subr.bf16.mxu0 0
  %3513 = vmatpush1.bf16.msra.mxu0 0
  %3514 = vmatprep.subr.bf16.mxu0 0
  %3515 = vmatpush1.bf16.msra.mxu0 0
  %3516 = vmatprep.subr.bf16.mxu0 0
  %3517 = vmatpush1.bf16.msra.mxu0 0
  %3518 = vmatprep.subr.bf16.mxu0 0
  %3519 = vmatpush1.bf16.msra.mxu0 0
  %3520 = vmatprep.mubr.bf16.mxu0 0
  %3521 = vmatmul.mubr.bf16.gmra.mrb[0].mxu0 %v3486
  %v3522 = vpop.f32.mrb[0].mxu0
  %v3523 = vadd.f32 0.001, %v3522
  %v3524 = vpop.f32.mrb[0].mxu0
  %v3525 = vadd.f32 0.001, %v3524
  %v3526 = vpop.f32.mrb[0].mxu0
  %v3527 = vpop.f32.mrb[0].mxu0
  %3528 = vdwg.mxu0
  %3529 = vmatprep.subr.bf16.mxu0 %v2559
  %3530 = vmatpush1.bf16.msra.mxu0 %v2558
  %3531 = vmatprep.subr.bf16.mxu0 %v2567
  %3532 = vmatpush1.bf16.msra.mxu0 %v2566
  %3533 = vmatprep.subr.bf16.mxu0 %v2575
  %3534 = vmatpush1.bf16.msra.mxu0 %v2574
  %3535 = vmatprep.subr.bf16.mxu0 %v2583
  %3536 = vmatpush1.bf16.msra.mxu0 %v2582
  %3537 = vmatprep.subr.bf16.mxu0 0
  %3538 = vmatpush1.bf16.msra.mxu0 0
  %3539 = vmatprep.subr.bf16.mxu0 0
  %3540 = vmatpush1.bf16.msra.mxu0 0
  %3541 = vmatprep.subr.bf16.mxu0 0
  %3542 = vmatpush1.bf16.msra.mxu0 0
  %3543 = vmatprep.subr.bf16.mxu0 0
  %3544 = vmatpush1.bf16.msra.mxu0 0
  %3545 = vmatprep.subr.bf16.mxu0 0
  %3546 = vmatpush1.bf16.msra.mxu0 0
  %3547 = vmatprep.subr.bf16.mxu0 0
  %3548 = vmatpush1.bf16.msra.mxu0 0
  %3549 = vmatprep.subr.bf16.mxu0 0
  %3550 = vmatpush1.bf16.msra.mxu0 0
  %3551 = vmatprep.subr.bf16.mxu0 0
  %3552 = vmatpush1.bf16.msra.mxu0 0
  %3553 = vmatprep.subr.bf16.mxu0 0
  %3554 = vmatpush1.bf16.msra.mxu0 0
  %3555 = vmatprep.subr.bf16.mxu0 0
  %3556 = vmatpush1.bf16.msra.mxu0 0
  %3557 = vmatprep.subr.bf16.mxu0 0
  %3558 = vmatpush1.bf16.msra.mxu0 0
  %3559 = vmatprep.subr.bf16.mxu0 0
  %3560 = vmatpush1.bf16.msra.mxu0 0
  %3561 = vmatprep.mubr.bf16.mxu0 0
  %3562 = vmatmul.mubr.bf16.gmra.mrb[0].mxu0 %v3486
  %v3563 = vpop.f32.mrb[0].mxu0
  %v3564 = vadd.f32 0.001, %v3563
  %v3565 = vpop.f32.mrb[0].mxu0
  %v3566 = vadd.f32 0.001, %v3565
  %v3567 = vpop.f32.mrb[0].mxu0
  %v3568 = vpop.f32.mrb[0].mxu0
  %3569 = vdwg.mxu0
  %3570 = vmatprep.subr.bf16.mxu0 %v2561
  %3571 = vmatpush1.bf16.msra.mxu0 %v2560
  %3572 = vmatprep.subr.bf16.mxu0 %v2569
  %3573 = vmatpush1.bf16.msra.mxu0 %v2568
  %3574 = vmatprep.subr.bf16.mxu0 %v2577
  %3575 = vmatpush1.bf16.msra.mxu0 %v2576
  %3576 = vmatprep.subr.bf16.mxu0 %v2585
  %3577 = vmatpush1.bf16.msra.mxu0 %v2584
  %3578 = vmatprep.subr.bf16.mxu0 0
  %3579 = vmatpush1.bf16.msra.mxu0 0
  %3580 = vmatprep.subr.bf16.mxu0 0
  %3581 = vmatpush1.bf16.msra.mxu0 0
  %3582 = vmatprep.subr.bf16.mxu0 0
  %3583 = vmatpush1.bf16.msra.mxu0 0
  %3584 = vmatprep.subr.bf16.mxu0 0
  %3585 = vmatpush1.bf16.msra.mxu0 0
  %3586 = vmatprep.subr.bf16.mxu0 0
  %3587 = vmatpush1.bf16.msra.mxu0 0
  %3588 = vmatprep.subr.bf16.mxu0 0
  %3589 = vmatpush1.bf16.msra.mxu0 0
  %3590 = vmatprep.subr.bf16.mxu0 0
  %3591 = vmatpush1.bf16.msra.mxu0 0
  %3592 = vmatprep.subr.bf16.mxu0 0
  %3593 = vmatpush1.bf16.msra.mxu0 0
  %3594 = vmatprep.subr.bf16.mxu0 0
  %3595 = vmatpush1.bf16.msra.mxu0 0
  %3596 = vmatprep.subr.bf16.mxu0 0
  %3597 = vmatpush1.bf16.msra.mxu0 0
  %3598 = vmatprep.subr.bf16.mxu0 0
  %3599 = vmatpush1.bf16.msra.mxu0 0
  %3600 = vmatprep.subr.bf16.mxu0 0
  %3601 = vmatpush1.bf16.msra.mxu0 0
  %3602 = vmatprep.mubr.bf16.mxu0 0
  %3603 = vmatmul.mubr.bf16.gmra.mrb[0].mxu0 %v3486
  %v3604 = vpop.f32.mrb[0].mxu0
  %v3605 = vadd.f32 0.001, %v3604
  %v3606 = vpop.f32.mrb[0].mxu0
  %v3607 = vadd.f32 0.001, %v3606
  %v3608 = vpop.f32.mrb[0].mxu0
  %v3609 = vpop.f32.mrb[0].mxu0
  %3610 = vdwg.mxu0
  %3611 = vmatprep.subr.bf16.mxu0 %v2563
  %3612 = vmatpush1.bf16.msra.mxu0 %v2562
  %3613 = vmatprep.subr.bf16.mxu0 %v2571
  %3614 = vmatpush1.bf16.msra.mxu0 %v2570
  %3615 = vmatprep.subr.bf16.mxu0 %v2579
  %3616 = vmatpush1.bf16.msra.mxu0 %v2578
  %3617 = vmatprep.subr.bf16.mxu0 %v2587
  %3618 = vmatpush1.bf16.msra.mxu0 %v2586
  %3619 = vmatprep.subr.bf16.mxu0 0
  %3620 = vmatpush1.bf16.msra.mxu0 0
  %3621 = vmatprep.subr.bf16.mxu0 0
  %3622 = vmatpush1.bf16.msra.mxu0 0
  %3623 = vmatprep.subr.bf16.mxu0 0
  %3624 = vmatpush1.bf16.msra.mxu0 0
  %3625 = vmatprep.subr.bf16.mxu0 0
  %3626 = vmatpush1.bf16.msra.mxu0 0
  %3627 = vmatprep.subr.bf16.mxu0 0
  %3628 = vmatpush1.bf16.msra.mxu0 0
  %3629 = vmatprep.subr.bf16.mxu0 0
  %3630 = vmatpush1.bf16.msra.mxu0 0
  %3631 = vmatprep.subr.bf16.mxu0 0
  %3632 = vmatpush1.bf16.msra.mxu0 0
  %3633 = vmatprep.subr.bf16.mxu0 0
  %3634 = vmatpush1.bf16.msra.mxu0 0
  %3635 = vmatprep.subr.bf16.mxu0 0
  %3636 = vmatpush1.bf16.msra.mxu0 0
  %3637 = vmatprep.subr.bf16.mxu0 0
  %3638 = vmatpush1.bf16.msra.mxu0 0
  %3639 = vmatprep.subr.bf16.mxu0 0
  %3640 = vmatpush1.bf16.msra.mxu0 0
  %3641 = vmatprep.subr.bf16.mxu0 0
  %3642 = vmatpush1.bf16.msra.mxu0 0
  %3643 = vmatprep.mubr.bf16.mxu0 0
  %3644 = vmatmul.mubr.bf16.gmra.mrb[0].mxu0 %v3486
  %v3645 = vpop.f32.mrb[0].mxu0
  %v3646 = vadd.f32 0.001, %v3645
  %v3647 = vpop.f32.mrb[0].mxu0
  %v3648 = vadd.f32 0.001, %v3647
  %v3649 = vpop.f32.mrb[0].mxu0
  %v3650 = vpop.f32.mrb[0].mxu0
  %3651 = vdwg.mxu0
  %v3652 = vrsqrt.pop %v3523
  %v3653 = vrsqrt.pop %v3525
  %v3654 = vrsqrt.pop %v3564
  %v3655 = vrsqrt.pop %v3566
  %v3656 = vrsqrt.pop %v3605
  %v3657 = vrsqrt.pop %v3607
  %v3658 = vrsqrt.pop %v3646
  %v3659 = vrsqrt.pop %v3648
  %v3660 = vmul.f32 %v2788, %v3652
  %v3661 = vmul.f32 %v2789, %v3653
  %v3662 = vmul.f32 %v2790, %v3654
  %v3663 = vmul.f32 %v2791, %v3655
  %v3664 = vmul.f32 %v2792, %v3656
  %v3665 = vmul.f32 %v2793, %v3657
  %v3666 = vmul.f32 %v2794, %v3658
  %v3667 = vmul.f32 %v2795, %v3659
  %v3668 = vld [vmem:[%s7] sm:$0xff]
  %v3670 = vlaneseq
  %v3671 = vshrl.u32 %v3670, 7
  %v3672 = vsub.s32 0, %v3671
  %v3673 = vrot.slane %v3668, %v3672
  %v3674 = vlaneseq
  %v3675 = vshrl.u32 %v3674, 7
  %v3676 = vsub.s32 1, %v3675
  %v3677 = vrot.slane %v3668, %v3676
  %v3678 = vlaneseq
  %v3679 = vshrl.u32 %v3678, 7
  %v3680 = vsub.s32 2, %v3679
  %v3681 = vrot.slane %v3668, %v3680
  %v3682 = vlaneseq
  %v3683 = vshrl.u32 %v3682, 7
  %v3684 = vsub.s32 3, %v3683
  %v3685 = vrot.slane %v3668, %v3684
  %v3686 = vlaneseq
  %v3687 = vshrl.u32 %v3686, 7
  %v3688 = vsub.s32 4, %v3687
  %v3689 = vrot.slane %v3668, %v3688
  %v3690 = vlaneseq
  %v3691 = vshrl.u32 %v3690, 7
  %v3692 = vsub.s32 5, %v3691
  %v3693 = vrot.slane %v3668, %v3692
  %v3694 = vlaneseq
  %v3695 = vshrl.u32 %v3694, 7
  %v3696 = vsub.s32 6, %v3695
  %v3697 = vrot.slane %v3668, %v3696
  %v3698 = vlaneseq
  %v3699 = vshrl.u32 %v3698, 7
  %v3700 = vsub.s32 7, %v3699
  %v3701 = vrot.slane %v3668, %v3700
  %v3710 = vmul.f32 %v3660, %v3673
  %v3711 = vmul.f32 %v3661, %v3677
  %v3712 = vmul.f32 %v3662, %v3681
  %v3713 = vmul.f32 %v3663, %v3685
  %v3714 = vmul.f32 %v3664, %v3689
  %v3715 = vmul.f32 %v3665, %v3693
  %v3716 = vmul.f32 %v3666, %v3697
  %v3717 = vmul.f32 %v3667, %v3701
  %v3718 = vld [vmem:[%s8] sm:$0xff]
  %v3720 = vlaneseq
  %v3721 = vshrl.u32 %v3720, 7
  %v3722 = vsub.s32 0, %v3721
  %v3723 = vrot.slane %v3718, %v3722
  %v3724 = vlaneseq
  %v3725 = vshrl.u32 %v3724, 7
  %v3726 = vsub.s32 1, %v3725
  %v3727 = vrot.slane %v3718, %v3726
  %v3728 = vlaneseq
  %v3729 = vshrl.u32 %v3728, 7
  %v3730 = vsub.s32 2, %v3729
  %v3731 = vrot.slane %v3718, %v3730
  %v3732 = vlaneseq
  %v3733 = vshrl.u32 %v3732, 7
  %v3734 = vsub.s32 3, %v3733
  %v3735 = vrot.slane %v3718, %v3734
  %v3736 = vlaneseq
  %v3737 = vshrl.u32 %v3736, 7
  %v3738 = vsub.s32 4, %v3737
  %v3739 = vrot.slane %v3718, %v3738
  %v3740 = vlaneseq
  %v3741 = vshrl.u32 %v3740, 7
  %v3742 = vsub.s32 5, %v3741
  %v3743 = vrot.slane %v3718, %v3742
  %v3744 = vlaneseq
  %v3745 = vshrl.u32 %v3744, 7
  %v3746 = vsub.s32 6, %v3745
  %v3747 = vrot.slane %v3718, %v3746
  %v3748 = vlaneseq
  %v3749 = vshrl.u32 %v3748, 7
  %v3750 = vsub.s32 7, %v3749
  %v3751 = vrot.slane %v3718, %v3750
  %v3760 = vadd.f32 %v3710, %v3723
  %v3761 = vadd.f32 %v3711, %v3727
  %v3762 = vadd.f32 %v3712, %v3731
  %v3763 = vadd.f32 %v3713, %v3735
  %v3764 = vadd.f32 %v3714, %v3739
  %v3765 = vadd.f32 %v3715, %v3743
  %v3766 = vadd.f32 %v3716, %v3747
  %v3767 = vadd.f32 %v3717, %v3751
  %v3768 = vxor.u32 %v3760, 2147483648
  %v3769 = vxor.u32 %v3761, 2147483648
  %v3770 = vxor.u32 %v3762, 2147483648
  %v3771 = vxor.u32 %v3763, 2147483648
  %v3772 = vxor.u32 %v3764, 2147483648
  %v3773 = vxor.u32 %v3765, 2147483648
  %v3774 = vxor.u32 %v3766, 2147483648
  %v3775 = vxor.u32 %v3767, 2147483648
  %v3776 = vmul.f32 %v3768, 1.442695
  %v3777 = vpow.pop %v3776
  %v3778 = vmul.f32 %v3769, 1.442695
  %v3779 = vpow.pop %v3778
  %v3780 = vmul.f32 %v3770, 1.442695
  %v3781 = vpow.pop %v3780
  %v3782 = vmul.f32 %v3771, 1.442695
  %v3783 = vpow.pop %v3782
  %v3784 = vmul.f32 %v3772, 1.442695
  %v3785 = vpow.pop %v3784
  %v3786 = vmul.f32 %v3773, 1.442695
  %v3787 = vpow.pop %v3786
  %v3788 = vmul.f32 %v3774, 1.442695
  %v3789 = vpow.pop %v3788
  %v3790 = vmul.f32 %v3775, 1.442695
  %v3791 = vpow.pop %v3790
  %v3792 = vadd.f32 %v3777, 1.0
  %v3793 = vadd.f32 %v3779, 1.0
  %v3794 = vadd.f32 %v3781, 1.0
  %v3795 = vadd.f32 %v3783, 1.0
  %v3796 = vadd.f32 %v3785, 1.0
  %v3797 = vadd.f32 %v3787, 1.0
  %v3798 = vadd.f32 %v3789, 1.0
  %v3799 = vadd.f32 %v3791, 1.0
  %v3800 = vrcp.pop %v3792
  %v3801 = vmul.f32 1.0, %v3800
  %v3802 = vrcp.pop %v3793
  %v3803 = vmul.f32 1.0, %v3802
  %v3804 = vrcp.pop %v3794
  %v3805 = vmul.f32 1.0, %v3804
  %v3806 = vrcp.pop %v3795
  %v3807 = vmul.f32 1.0, %v3806
  %v3808 = vrcp.pop %v3796
  %v3809 = vmul.f32 1.0, %v3808
  %v3810 = vrcp.pop %v3797
  %v3811 = vmul.f32 1.0, %v3810
  %v3812 = vrcp.pop %v3798
  %v3813 = vmul.f32 1.0, %v3812
  %v3814 = vrcp.pop %v3799
  %v3815 = vmul.f32 1.0, %v3814
  %v3816 = vmul.f32 %v3760, %v3801
  %v3817 = vmul.f32 %v3761, %v3803
  %v3818 = vmul.f32 %v3762, %v3805
  %v3819 = vmul.f32 %v3763, %v3807
  %v3820 = vmul.f32 %v3764, %v3809
  %v3821 = vmul.f32 %v3765, %v3811
  %v3822 = vmul.f32 %v3766, %v3813
  %v3823 = vmul.f32 %v3767, %v3815
  %v3824 = vpack.c.bf16 %v3816, %v3816
  %v3825 = vpack.c.bf16 %v3817, %v3817
  %v3826 = vpack.c.bf16 %v3818, %v3818
  %v3827 = vpack.c.bf16 %v3819, %v3819
  %v3828 = vpack.c.bf16 %v3820, %v3820
  %v3829 = vpack.c.bf16 %v3821, %v3821
  %v3830 = vpack.c.bf16 %v3822, %v3822
  %v3831 = vpack.c.bf16 %v3823, %v3823
  %v3832 = vld [vmem:[%s9] sm:$0xff]
  %v3833 = vld [vmem:[%s9 + $0x8] sm:$0xff]
  %v3834 = vld [vmem:[%s9 + $0x10] sm:$0xff]
  %v3835 = vld [vmem:[%s9 + $0x18] sm:$0xff]
  %v3836 = vld [vmem:[%s9 + $0x20] sm:$0xff]
  %v3837 = vld [vmem:[%s9 + $0x28] sm:$0xff]
  %v3838 = vld [vmem:[%s9 + $0x30] sm:$0xff]
  %v3839 = vld [vmem:[%s9 + $0x38] sm:$0xff]
  %v3840 = vld [vmem:[%s9 + $0x40] sm:$0xff]
  %v3841 = vld [vmem:[%s9 + $0x48] sm:$0xff]
  %v3842 = vld [vmem:[%s9 + $0x50] sm:$0xff]
  %v3843 = vld [vmem:[%s9 + $0x58] sm:$0xff]
  %v3844 = vld [vmem:[%s9 + $0x60] sm:$0xff]
  %v3845 = vld [vmem:[%s9 + $0x68] sm:$0xff]
  %v3846 = vld [vmem:[%s9 + $0x70] sm:$0xff]
  %v3847 = vld [vmem:[%s9 + $0x78] sm:$0xff]
  %v3848 = vld [vmem:[%s9 + $0x80] sm:$0xff]
  %v3849 = vld [vmem:[%s9 + $0x88] sm:$0xff]
  %v3850 = vld [vmem:[%s9 + $0x90] sm:$0xff]
  %v3851 = vld [vmem:[%s9 + $0x98] sm:$0xff]
  %v3852 = vld [vmem:[%s9 + $0xa0] sm:$0xff]
  %v3853 = vld [vmem:[%s9 + $0xa8] sm:$0xff]
  %v3854 = vld [vmem:[%s9 + $0xb0] sm:$0xff]
  %v3855 = vld [vmem:[%s9 + $0xb8] sm:$0xff]
  %v3856 = vld [vmem:[%s9 + $0xc0] sm:$0xff]
  %v3857 = vld [vmem:[%s9 + $0xc8] sm:$0xff]
  %v3858 = vld [vmem:[%s9 + $0xd0] sm:$0xff]
  %v3859 = vld [vmem:[%s9 + $0xd8] sm:$0xff]
  %v3860 = vld [vmem:[%s9 + $0xe0] sm:$0xff]
  %v3861 = vld [vmem:[%s9 + $0xe8] sm:$0xff]
  %v3862 = vld [vmem:[%s9 + $0xf0] sm:$0xff]
  %v3863 = vld [vmem:[%s9 + $0xf8] sm:$0xff]
  %v3864 = vld [vmem:[%s9 + $0x100] sm:$0xff]
  %v3865 = vld [vmem:[%s9 + $0x108] sm:$0xff]
  %v3866 = vld [vmem:[%s9 + $0x110] sm:$0xff]
  %v3867 = vld [vmem:[%s9 + $0x118] sm:$0xff]
  %v3868 = vld [vmem:[%s9 + $0x120] sm:$0xff]
  %v3869 = vld [vmem:[%s9 + $0x128] sm:$0xff]
  %v3870 = vld [vmem:[%s9 + $0x130] sm:$0xff]
  %v3871 = vld [vmem:[%s9 + $0x138] sm:$0xff]
  %v3872 = vld [vmem:[%s9 + $0x140] sm:$0xff]
  %v3873 = vld [vmem:[%s9 + $0x148] sm:$0xff]
  %v3874 = vld [vmem:[%s9 + $0x150] sm:$0xff]
  %v3875 = vld [vmem:[%s9 + $0x158] sm:$0xff]
  %v3876 = vld [vmem:[%s9 + $0x160] sm:$0xff]
  %v3877 = vld [vmem:[%s9 + $0x168] sm:$0xff]
  %v3878 = vld [vmem:[%s9 + $0x170] sm:$0xff]
  %v3879 = vld [vmem:[%s9 + $0x178] sm:$0xff]
  %v3880 = vld [vmem:[%s9 + $0x180] sm:$0xff]
  %v3881 = vld [vmem:[%s9 + $0x188] sm:$0xff]
  %v3882 = vld [vmem:[%s9 + $0x190] sm:$0xff]
  %v3883 = vld [vmem:[%s9 + $0x198] sm:$0xff]
  %v3884 = vld [vmem:[%s9 + $0x1a0] sm:$0xff]
  %v3885 = vld [vmem:[%s9 + $0x1a8] sm:$0xff]
  %v3886 = vld [vmem:[%s9 + $0x1b0] sm:$0xff]
  %v3887 = vld [vmem:[%s9 + $0x1b8] sm:$0xff]
  %v3888 = vld [vmem:[%s9 + $0x1c0] sm:$0xff]
  %v3889 = vld [vmem:[%s9 + $0x1c8] sm:$0xff]
  %v3890 = vld [vmem:[%s9 + $0x1d0] sm:$0xff]
  %v3891 = vld [vmem:[%s9 + $0x1d8] sm:$0xff]
  %v3892 = vld [vmem:[%s9 + $0x1e0] sm:$0xff]
  %v3893 = vld [vmem:[%s9 + $0x1e8] sm:$0xff]
  %v3894 = vld [vmem:[%s9 + $0x1f0] sm:$0xff]
  %v3895 = vld [vmem:[%s9 + $0x1f8] sm:$0xff]
  %v3896 = vld [vmem:[%s9 + $0x200] sm:$0xff]
  %v3897 = vld [vmem:[%s9 + $0x208] sm:$0xff]
  %v3898 = vld [vmem:[%s9 + $0x210] sm:$0xff]
  %v3899 = vld [vmem:[%s9 + $0x218] sm:$0xff]
  %v3900 = vld [vmem:[%s9 + $0x220] sm:$0xff]
  %v3901 = vld [vmem:[%s9 + $0x228] sm:$0xff]
  %v3902 = vld [vmem:[%s9 + $0x230] sm:$0xff]
  %v3903 = vld [vmem:[%s9 + $0x238] sm:$0xff]
  %v3904 = vld [vmem:[%s9 + $0x240] sm:$0xff]
  %v3905 = vld [vmem:[%s9 + $0x248] sm:$0xff]
  %v3906 = vld [vmem:[%s9 + $0x250] sm:$0xff]
  %v3907 = vld [vmem:[%s9 + $0x258] sm:$0xff]
  %v3908 = vld [vmem:[%s9 + $0x260] sm:$0xff]
  %v3909 = vld [vmem:[%s9 + $0x268] sm:$0xff]
  %v3910 = vld [vmem:[%s9 + $0x270] sm:$0xff]
  %v3911 = vld [vmem:[%s9 + $0x278] sm:$0xff]
  %v3912 = vld [vmem:[%s9 + $0x280] sm:$0xff]
  %v3913 = vld [vmem:[%s9 + $0x288] sm:$0xff]
  %v3914 = vld [vmem:[%s9 + $0x290] sm:$0xff]
  %v3915 = vld [vmem:[%s9 + $0x298] sm:$0xff]
  %v3916 = vld [vmem:[%s9 + $0x2a0] sm:$0xff]
  %v3917 = vld [vmem:[%s9 + $0x2a8] sm:$0xff]
  %v3918 = vld [vmem:[%s9 + $0x2b0] sm:$0xff]
  %v3919 = vld [vmem:[%s9 + $0x2b8] sm:$0xff]
  %v3920 = vld [vmem:[%s9 + $0x2c0] sm:$0xff]
  %v3921 = vld [vmem:[%s9 + $0x2c8] sm:$0xff]
  %v3922 = vld [vmem:[%s9 + $0x2d0] sm:$0xff]
  %v3923 = vld [vmem:[%s9 + $0x2d8] sm:$0xff]
  %v3924 = vld [vmem:[%s9 + $0x2e0] sm:$0xff]
  %v3925 = vld [vmem:[%s9 + $0x2e8] sm:$0xff]
  %v3926 = vld [vmem:[%s9 + $0x2f0] sm:$0xff]
  %v3927 = vld [vmem:[%s9 + $0x2f8] sm:$0xff]
  %v3928 = vld [vmem:[%s9 + $0x300] sm:$0xff]
  %v3929 = vld [vmem:[%s9 + $0x308] sm:$0xff]
  %v3930 = vld [vmem:[%s9 + $0x310] sm:$0xff]
  %v3931 = vld [vmem:[%s9 + $0x318] sm:$0xff]
  %v3932 = vld [vmem:[%s9 + $0x320] sm:$0xff]
  %v3933 = vld [vmem:[%s9 + $0x328] sm:$0xff]
  %v3934 = vld [vmem:[%s9 + $0x330] sm:$0xff]
  %v3935 = vld [vmem:[%s9 + $0x338] sm:$0xff]
  %v3936 = vld [vmem:[%s9 + $0x340] sm:$0xff]
  %v3937 = vld [vmem:[%s9 + $0x348] sm:$0xff]
  %v3938 = vld [vmem:[%s9 + $0x350] sm:$0xff]
  %v3939 = vld [vmem:[%s9 + $0x358] sm:$0xff]
  %v3940 = vld [vmem:[%s9 + $0x360] sm:$0xff]
  %v3941 = vld [vmem:[%s9 + $0x368] sm:$0xff]
  %v3942 = vld [vmem:[%s9 + $0x370] sm:$0xff]
  %v3943 = vld [vmem:[%s9 + $0x378] sm:$0xff]
  %v3944 = vld [vmem:[%s9 + $0x380] sm:$0xff]
  %v3945 = vld [vmem:[%s9 + $0x388] sm:$0xff]
  %v3946 = vld [vmem:[%s9 + $0x390] sm:$0xff]
  %v3947 = vld [vmem:[%s9 + $0x398] sm:$0xff]
  %v3948 = vld [vmem:[%s9 + $0x3a0] sm:$0xff]
  %v3949 = vld [vmem:[%s9 + $0x3a8] sm:$0xff]
  %v3950 = vld [vmem:[%s9 + $0x3b0] sm:$0xff]
  %v3951 = vld [vmem:[%s9 + $0x3b8] sm:$0xff]
  %v3952 = vld [vmem:[%s9 + $0x3c0] sm:$0xff]
  %v3953 = vld [vmem:[%s9 + $0x3c8] sm:$0xff]
  %v3954 = vld [vmem:[%s9 + $0x3d0] sm:$0xff]
  %v3955 = vld [vmem:[%s9 + $0x3d8] sm:$0xff]
  %v3956 = vld [vmem:[%s9 + $0x3e0] sm:$0xff]
  %v3957 = vld [vmem:[%s9 + $0x3e8] sm:$0xff]
  %v3958 = vld [vmem:[%s9 + $0x3f0] sm:$0xff]
  %v3959 = vld [vmem:[%s9 + $0x3f8] sm:$0xff]
  %v3960 = vld [vmem:[%s9 + $0x400] sm:$0xff]
  %v3961 = vld [vmem:[%s9 + $0x408] sm:$0xff]
  %v3962 = vld [vmem:[%s9 + $0x410] sm:$0xff]
  %v3963 = vld [vmem:[%s9 + $0x418] sm:$0xff]
  %v3964 = vld [vmem:[%s9 + $0x420] sm:$0xff]
  %v3965 = vld [vmem:[%s9 + $0x428] sm:$0xff]
  %v3966 = vld [vmem:[%s9 + $0x430] sm:$0xff]
  %v3967 = vld [vmem:[%s9 + $0x438] sm:$0xff]
  %v3968 = vld [vmem:[%s9 + $0x440] sm:$0xff]
  %v3969 = vld [vmem:[%s9 + $0x448] sm:$0xff]
  %v3970 = vld [vmem:[%s9 + $0x450] sm:$0xff]
  %v3971 = vld [vmem:[%s9 + $0x458] sm:$0xff]
  %v3972 = vld [vmem:[%s9 + $0x460] sm:$0xff]
  %v3973 = vld [vmem:[%s9 + $0x468] sm:$0xff]
  %v3974 = vld [vmem:[%s9 + $0x470] sm:$0xff]
  %v3975 = vld [vmem:[%s9 + $0x478] sm:$0xff]
  %v3976 = vld [vmem:[%s9 + $0x480] sm:$0xff]
  %v3977 = vld [vmem:[%s9 + $0x488] sm:$0xff]
  %v3978 = vld [vmem:[%s9 + $0x490] sm:$0xff]
  %v3979 = vld [vmem:[%s9 + $0x498] sm:$0xff]
  %v3980 = vld [vmem:[%s9 + $0x4a0] sm:$0xff]
  %v3981 = vld [vmem:[%s9 + $0x4a8] sm:$0xff]
  %v3982 = vld [vmem:[%s9 + $0x4b0] sm:$0xff]
  %v3983 = vld [vmem:[%s9 + $0x4b8] sm:$0xff]
  %v3984 = vld [vmem:[%s9 + $0x4c0] sm:$0xff]
  %v3985 = vld [vmem:[%s9 + $0x4c8] sm:$0xff]
  %v3986 = vld [vmem:[%s9 + $0x4d0] sm:$0xff]
  %v3987 = vld [vmem:[%s9 + $0x4d8] sm:$0xff]
  %v3988 = vld [vmem:[%s9 + $0x4e0] sm:$0xff]
  %v3989 = vld [vmem:[%s9 + $0x4e8] sm:$0xff]
  %v3990 = vld [vmem:[%s9 + $0x4f0] sm:$0xff]
  %v3991 = vld [vmem:[%s9 + $0x4f8] sm:$0xff]
  %v3992 = vld [vmem:[%s9 + $0x500] sm:$0xff]
  %v3993 = vld [vmem:[%s9 + $0x508] sm:$0xff]
  %v3994 = vld [vmem:[%s9 + $0x510] sm:$0xff]
  %v3995 = vld [vmem:[%s9 + $0x518] sm:$0xff]
  %v3996 = vld [vmem:[%s9 + $0x520] sm:$0xff]
  %v3997 = vld [vmem:[%s9 + $0x528] sm:$0xff]
  %v3998 = vld [vmem:[%s9 + $0x530] sm:$0xff]
  %v3999 = vld [vmem:[%s9 + $0x538] sm:$0xff]
  %v4000 = vld [vmem:[%s9 + $0x540] sm:$0xff]
  %v4001 = vld [vmem:[%s9 + $0x548] sm:$0xff]
  %v4002 = vld [vmem:[%s9 + $0x550] sm:$0xff]
  %v4003 = vld [vmem:[%s9 + $0x558] sm:$0xff]
  %v4004 = vld [vmem:[%s9 + $0x560] sm:$0xff]
  %v4005 = vld [vmem:[%s9 + $0x568] sm:$0xff]
  %v4006 = vld [vmem:[%s9 + $0x570] sm:$0xff]
  %v4007 = vld [vmem:[%s9 + $0x578] sm:$0xff]
  %v4008 = vld [vmem:[%s9 + $0x580] sm:$0xff]
  %v4009 = vld [vmem:[%s9 + $0x588] sm:$0xff]
  %v4010 = vld [vmem:[%s9 + $0x590] sm:$0xff]
  %v4011 = vld [vmem:[%s9 + $0x598] sm:$0xff]
  %v4012 = vld [vmem:[%s9 + $0x5a0] sm:$0xff]
  %v4013 = vld [vmem:[%s9 + $0x5a8] sm:$0xff]
  %v4014 = vld [vmem:[%s9 + $0x5b0] sm:$0xff]
  %v4015 = vld [vmem:[%s9 + $0x5b8] sm:$0xff]
  %v4016 = vld [vmem:[%s9 + $0x5c0] sm:$0xff]
  %v4017 = vld [vmem:[%s9 + $0x5c8] sm:$0xff]
  %v4018 = vld [vmem:[%s9 + $0x5d0] sm:$0xff]
  %v4019 = vld [vmem:[%s9 + $0x5d8] sm:$0xff]
  %v4020 = vld [vmem:[%s9 + $0x5e0] sm:$0xff]
  %v4021 = vld [vmem:[%s9 + $0x5e8] sm:$0xff]
  %v4022 = vld [vmem:[%s9 + $0x5f0] sm:$0xff]
  %v4023 = vld [vmem:[%s9 + $0x5f8] sm:$0xff]
  %v4024 = vld [vmem:[%s9 + $0x600] sm:$0xff]
  %v4025 = vld [vmem:[%s9 + $0x608] sm:$0xff]
  %v4026 = vld [vmem:[%s9 + $0x610] sm:$0xff]
  %v4027 = vld [vmem:[%s9 + $0x618] sm:$0xff]
  %v4028 = vld [vmem:[%s9 + $0x620] sm:$0xff]
  %v4029 = vld [vmem:[%s9 + $0x628] sm:$0xff]
  %v4030 = vld [vmem:[%s9 + $0x630] sm:$0xff]
  %v4031 = vld [vmem:[%s9 + $0x638] sm:$0xff]
  %v4032 = vld [vmem:[%s9 + $0x640] sm:$0xff]
  %v4033 = vld [vmem:[%s9 + $0x648] sm:$0xff]
  %v4034 = vld [vmem:[%s9 + $0x650] sm:$0xff]
  %v4035 = vld [vmem:[%s9 + $0x658] sm:$0xff]
  %v4036 = vld [vmem:[%s9 + $0x660] sm:$0xff]
  %v4037 = vld [vmem:[%s9 + $0x668] sm:$0xff]
  %v4038 = vld [vmem:[%s9 + $0x670] sm:$0xff]
  %v4039 = vld [vmem:[%s9 + $0x678] sm:$0xff]
  %v4040 = vld [vmem:[%s9 + $0x680] sm:$0xff]
  %v4041 = vld [vmem:[%s9 + $0x688] sm:$0xff]
  %v4042 = vld [vmem:[%s9 + $0x690] sm:$0xff]
  %v4043 = vld [vmem:[%s9 + $0x698] sm:$0xff]
  %v4044 = vld [vmem:[%s9 + $0x6a0] sm:$0xff]
  %v4045 = vld [vmem:[%s9 + $0x6a8] sm:$0xff]
  %v4046 = vld [vmem:[%s9 + $0x6b0] sm:$0xff]
  %v4047 = vld [vmem:[%s9 + $0x6b8] sm:$0xff]
  %v4048 = vld [vmem:[%s9 + $0x6c0] sm:$0xff]
  %v4049 = vld [vmem:[%s9 + $0x6c8] sm:$0xff]
  %v4050 = vld [vmem:[%s9 + $0x6d0] sm:$0xff]
  %v4051 = vld [vmem:[%s9 + $0x6d8] sm:$0xff]
  %v4052 = vld [vmem:[%s9 + $0x6e0] sm:$0xff]
  %v4053 = vld [vmem:[%s9 + $0x6e8] sm:$0xff]
  %v4054 = vld [vmem:[%s9 + $0x6f0] sm:$0xff]
  %v4055 = vld [vmem:[%s9 + $0x6f8] sm:$0xff]
  %v4056 = vld [vmem:[%s9 + $0x700] sm:$0xff]
  %v4057 = vld [vmem:[%s9 + $0x708] sm:$0xff]
  %v4058 = vld [vmem:[%s9 + $0x710] sm:$0xff]
  %v4059 = vld [vmem:[%s9 + $0x718] sm:$0xff]
  %v4060 = vld [vmem:[%s9 + $0x720] sm:$0xff]
  %v4061 = vld [vmem:[%s9 + $0x728] sm:$0xff]
  %v4062 = vld [vmem:[%s9 + $0x730] sm:$0xff]
  %v4063 = vld [vmem:[%s9 + $0x738] sm:$0xff]
  %v4064 = vld [vmem:[%s9 + $0x740] sm:$0xff]
  %v4065 = vld [vmem:[%s9 + $0x748] sm:$0xff]
  %v4066 = vld [vmem:[%s9 + $0x750] sm:$0xff]
  %v4067 = vld [vmem:[%s9 + $0x758] sm:$0xff]
  %v4068 = vld [vmem:[%s9 + $0x760] sm:$0xff]
  %v4069 = vld [vmem:[%s9 + $0x768] sm:$0xff]
  %v4070 = vld [vmem:[%s9 + $0x770] sm:$0xff]
  %v4071 = vld [vmem:[%s9 + $0x778] sm:$0xff]
  %v4072 = vld [vmem:[%s9 + $0x780] sm:$0xff]
  %v4073 = vld [vmem:[%s9 + $0x788] sm:$0xff]
  %v4074 = vld [vmem:[%s9 + $0x790] sm:$0xff]
  %v4075 = vld [vmem:[%s9 + $0x798] sm:$0xff]
  %v4076 = vld [vmem:[%s9 + $0x7a0] sm:$0xff]
  %v4077 = vld [vmem:[%s9 + $0x7a8] sm:$0xff]
  %v4078 = vld [vmem:[%s9 + $0x7b0] sm:$0xff]
  %v4079 = vld [vmem:[%s9 + $0x7b8] sm:$0xff]
  %v4080 = vld [vmem:[%s9 + $0x7c0] sm:$0xff]
  %v4081 = vld [vmem:[%s9 + $0x7c8] sm:$0xff]
  %v4082 = vld [vmem:[%s9 + $0x7d0] sm:$0xff]
  %v4083 = vld [vmem:[%s9 + $0x7d8] sm:$0xff]
  %v4084 = vld [vmem:[%s9 + $0x7e0] sm:$0xff]
  %v4085 = vld [vmem:[%s9 + $0x7e8] sm:$0xff]
  %v4086 = vld [vmem:[%s9 + $0x7f0] sm:$0xff]
  %v4087 = vld [vmem:[%s9 + $0x7f8] sm:$0xff]
  %v4088 = vld [vmem:[%s9 + $0x800] sm:$0xff]
  %v4089 = vld [vmem:[%s9 + $0x808] sm:$0xff]
  %v4090 = vld [vmem:[%s9 + $0x810] sm:$0xff]
  %v4091 = vld [vmem:[%s9 + $0x818] sm:$0xff]
  %v4092 = vld [vmem:[%s9 + $0x820] sm:$0xff]
  %v4093 = vld [vmem:[%s9 + $0x828] sm:$0xff]
  %v4094 = vld [vmem:[%s9 + $0x830] sm:$0xff]
  %v4095 = vld [vmem:[%s9 + $0x838] sm:$0xff]
  %v4096 = vld [vmem:[%s9 + $0x840] sm:$0xff]
  %v4097 = vld [vmem:[%s9 + $0x848] sm:$0xff]
  %v4098 = vld [vmem:[%s9 + $0x850] sm:$0xff]
  %v4099 = vld [vmem:[%s9 + $0x858] sm:$0xff]
  %v4100 = vld [vmem:[%s9 + $0x860] sm:$0xff]
  %v4101 = vld [vmem:[%s9 + $0x868] sm:$0xff]
  %v4102 = vld [vmem:[%s9 + $0x870] sm:$0xff]
  %v4103 = vld [vmem:[%s9 + $0x878] sm:$0xff]
  %v4104 = vld [vmem:[%s9 + $0x880] sm:$0xff]
  %v4105 = vld [vmem:[%s9 + $0x888] sm:$0xff]
  %v4106 = vld [vmem:[%s9 + $0x890] sm:$0xff]
  %v4107 = vld [vmem:[%s9 + $0x898] sm:$0xff]
  %v4108 = vld [vmem:[%s9 + $0x8a0] sm:$0xff]
  %v4109 = vld [vmem:[%s9 + $0x8a8] sm:$0xff]
  %v4110 = vld [vmem:[%s9 + $0x8b0] sm:$0xff]
  %v4111 = vld [vmem:[%s9 + $0x8b8] sm:$0xff]
  %v4112 = vld [vmem:[%s9 + $0x8c0] sm:$0xff]
  %v4113 = vld [vmem:[%s9 + $0x8c8] sm:$0xff]
  %v4114 = vld [vmem:[%s9 + $0x8d0] sm:$0xff]
  %v4115 = vld [vmem:[%s9 + $0x8d8] sm:$0xff]
  %v4116 = vld [vmem:[%s9 + $0x8e0] sm:$0xff]
  %v4117 = vld [vmem:[%s9 + $0x8e8] sm:$0xff]
  %v4118 = vld [vmem:[%s9 + $0x8f0] sm:$0xff]
  %v4119 = vld [vmem:[%s9 + $0x8f8] sm:$0xff]
  %v4120 = vld [vmem:[%s9 + $0x900] sm:$0xff]
  %v4121 = vld [vmem:[%s9 + $0x908] sm:$0xff]
  %v4122 = vld [vmem:[%s9 + $0x910] sm:$0xff]
  %v4123 = vld [vmem:[%s9 + $0x918] sm:$0xff]
  %v4124 = vld [vmem:[%s9 + $0x920] sm:$0xff]
  %v4125 = vld [vmem:[%s9 + $0x928] sm:$0xff]
  %v4126 = vld [vmem:[%s9 + $0x930] sm:$0xff]
  %v4127 = vld [vmem:[%s9 + $0x938] sm:$0xff]
  %v4128 = vld [vmem:[%s9 + $0x940] sm:$0xff]
  %v4129 = vld [vmem:[%s9 + $0x948] sm:$0xff]
  %v4130 = vld [vmem:[%s9 + $0x950] sm:$0xff]
  %v4131 = vld [vmem:[%s9 + $0x958] sm:$0xff]
  %v4132 = vld [vmem:[%s9 + $0x960] sm:$0xff]
  %v4133 = vld [vmem:[%s9 + $0x968] sm:$0xff]
  %v4134 = vld [vmem:[%s9 + $0x970] sm:$0xff]
  %v4135 = vld [vmem:[%s9 + $0x978] sm:$0xff]
  %v4136 = vld [vmem:[%s9 + $0x980] sm:$0xff]
  %v4137 = vld [vmem:[%s9 + $0x988] sm:$0xff]
  %v4138 = vld [vmem:[%s9 + $0x990] sm:$0xff]
  %v4139 = vld [vmem:[%s9 + $0x998] sm:$0xff]
  %v4140 = vld [vmem:[%s9 + $0x9a0] sm:$0xff]
  %v4141 = vld [vmem:[%s9 + $0x9a8] sm:$0xff]
  %v4142 = vld [vmem:[%s9 + $0x9b0] sm:$0xff]
  %v4143 = vld [vmem:[%s9 + $0x9b8] sm:$0xff]
  %v4144 = vld [vmem:[%s9 + $0x9c0] sm:$0xff]
  %v4145 = vld [vmem:[%s9 + $0x9c8] sm:$0xff]
  %v4146 = vld [vmem:[%s9 + $0x9d0] sm:$0xff]
  %v4147 = vld [vmem:[%s9 + $0x9d8] sm:$0xff]
  %v4148 = vld [vmem:[%s9 + $0x9e0] sm:$0xff]
  %v4149 = vld [vmem:[%s9 + $0x9e8] sm:$0xff]
  %v4150 = vld [vmem:[%s9 + $0x9f0] sm:$0xff]
  %v4151 = vld [vmem:[%s9 + $0x9f8] sm:$0xff]
  %v4152 = vld [vmem:[%s9 + $0xa00] sm:$0xff]
  %v4153 = vld [vmem:[%s9 + $0xa08] sm:$0xff]
  %v4154 = vld [vmem:[%s9 + $0xa10] sm:$0xff]
  %v4155 = vld [vmem:[%s9 + $0xa18] sm:$0xff]
  %v4156 = vld [vmem:[%s9 + $0xa20] sm:$0xff]
  %v4157 = vld [vmem:[%s9 + $0xa28] sm:$0xff]
  %v4158 = vld [vmem:[%s9 + $0xa30] sm:$0xff]
  %v4159 = vld [vmem:[%s9 + $0xa38] sm:$0xff]
  %v4160 = vld [vmem:[%s9 + $0xa40] sm:$0xff]
  %v4161 = vld [vmem:[%s9 + $0xa48] sm:$0xff]
  %v4162 = vld [vmem:[%s9 + $0xa50] sm:$0xff]
  %v4163 = vld [vmem:[%s9 + $0xa58] sm:$0xff]
  %v4164 = vld [vmem:[%s9 + $0xa60] sm:$0xff]
  %v4165 = vld [vmem:[%s9 + $0xa68] sm:$0xff]
  %v4166 = vld [vmem:[%s9 + $0xa70] sm:$0xff]
  %v4167 = vld [vmem:[%s9 + $0xa78] sm:$0xff]
  %v4168 = vld [vmem:[%s9 + $0xa80] sm:$0xff]
  %v4169 = vld [vmem:[%s9 + $0xa88] sm:$0xff]
  %v4170 = vld [vmem:[%s9 + $0xa90] sm:$0xff]
  %v4171 = vld [vmem:[%s9 + $0xa98] sm:$0xff]
  %v4172 = vld [vmem:[%s9 + $0xaa0] sm:$0xff]
  %v4173 = vld [vmem:[%s9 + $0xaa8] sm:$0xff]
  %v4174 = vld [vmem:[%s9 + $0xab0] sm:$0xff]
  %v4175 = vld [vmem:[%s9 + $0xab8] sm:$0xff]
  %v4176 = vld [vmem:[%s9 + $0xac0] sm:$0xff]
  %v4177 = vld [vmem:[%s9 + $0xac8] sm:$0xff]
  %v4178 = vld [vmem:[%s9 + $0xad0] sm:$0xff]
  %v4179 = vld [vmem:[%s9 + $0xad8] sm:$0xff]
  %v4180 = vld [vmem:[%s9 + $0xae0] sm:$0xff]
  %v4181 = vld [vmem:[%s9 + $0xae8] sm:$0xff]
  %v4182 = vld [vmem:[%s9 + $0xaf0] sm:$0xff]
  %v4183 = vld [vmem:[%s9 + $0xaf8] sm:$0xff]
  %v4184 = vld [vmem:[%s9 + $0xb00] sm:$0xff]
  %v4185 = vld [vmem:[%s9 + $0xb08] sm:$0xff]
  %v4186 = vld [vmem:[%s9 + $0xb10] sm:$0xff]
  %v4187 = vld [vmem:[%s9 + $0xb18] sm:$0xff]
  %v4188 = vld [vmem:[%s9 + $0xb20] sm:$0xff]
  %v4189 = vld [vmem:[%s9 + $0xb28] sm:$0xff]
  %v4190 = vld [vmem:[%s9 + $0xb30] sm:$0xff]
  %v4191 = vld [vmem:[%s9 + $0xb38] sm:$0xff]
  %v4192 = vld [vmem:[%s9 + $0xb40] sm:$0xff]
  %v4193 = vld [vmem:[%s9 + $0xb48] sm:$0xff]
  %v4194 = vld [vmem:[%s9 + $0xb50] sm:$0xff]
  %v4195 = vld [vmem:[%s9 + $0xb58] sm:$0xff]
  %v4196 = vld [vmem:[%s9 + $0xb60] sm:$0xff]
  %v4197 = vld [vmem:[%s9 + $0xb68] sm:$0xff]
  %v4198 = vld [vmem:[%s9 + $0xb70] sm:$0xff]
  %v4199 = vld [vmem:[%s9 + $0xb78] sm:$0xff]
  %v4200 = vld [vmem:[%s9 + $0xb80] sm:$0xff]
  %v4201 = vld [vmem:[%s9 + $0xb88] sm:$0xff]
  %v4202 = vld [vmem:[%s9 + $0xb90] sm:$0xff]
  %v4203 = vld [vmem:[%s9 + $0xb98] sm:$0xff]
  %v4204 = vld [vmem:[%s9 + $0xba0] sm:$0xff]
  %v4205 = vld [vmem:[%s9 + $0xba8] sm:$0xff]
  %v4206 = vld [vmem:[%s9 + $0xbb0] sm:$0xff]
  %v4207 = vld [vmem:[%s9 + $0xbb8] sm:$0xff]
  %v4208 = vld [vmem:[%s9 + $0xbc0] sm:$0xff]
  %v4209 = vld [vmem:[%s9 + $0xbc8] sm:$0xff]
  %v4210 = vld [vmem:[%s9 + $0xbd0] sm:$0xff]
  %v4211 = vld [vmem:[%s9 + $0xbd8] sm:$0xff]
  %v4212 = vld [vmem:[%s9 + $0xbe0] sm:$0xff]
  %v4213 = vld [vmem:[%s9 + $0xbe8] sm:$0xff]
  %v4214 = vld [vmem:[%s9 + $0xbf0] sm:$0xff]
  %v4215 = vld [vmem:[%s9 + $0xbf8] sm:$0xff]
  %v4216 = vld [vmem:[%s10] sm:$0x3f]
  %v4218 = vlaneseq
  %v4219 = vshrl.u32 %v4218, 7
  %v4220 = vsub.s32 0, %v4219
  %v4221 = vrot.slane %v4216, %v4220
  %v4222 = vlaneseq
  %v4223 = vshrl.u32 %v4222, 7
  %v4224 = vsub.s32 1, %v4223
  %v4225 = vrot.slane %v4216, %v4224
  %v4226 = vlaneseq
  %v4227 = vshrl.u32 %v4226, 7
  %v4228 = vsub.s32 2, %v4227
  %v4229 = vrot.slane %v4216, %v4228
  %v4230 = vlaneseq
  %v4231 = vshrl.u32 %v4230, 7
  %v4232 = vsub.s32 3, %v4231
  %v4233 = vrot.slane %v4216, %v4232
  %v4234 = vlaneseq
  %v4235 = vshrl.u32 %v4234, 7
  %v4236 = vsub.s32 4, %v4235
  %v4237 = vrot.slane %v4216, %v4236
  %v4238 = vlaneseq
  %v4239 = vshrl.u32 %v4238, 7
  %v4240 = vsub.s32 5, %v4239
  %v4241 = vrot.slane %v4216, %v4240
  %v4632 = vunpack.c.l.b16 %v3832
  %v4633 = vunpack.c.h.b16 %v3832
  %v4634 = vunpack.c.l.b16 %v3833
  %v4635 = vunpack.c.h.b16 %v3833
  %v4636 = vunpack.c.l.b16 %v3834
  %v4637 = vunpack.c.h.b16 %v3834
  %v4638 = vunpack.c.l.b16 %v3835
  %v4639 = vunpack.c.h.b16 %v3835
  %v4640 = vunpack.c.l.b16 %v3836
  %v4641 = vunpack.c.h.b16 %v3836
  %v4642 = vunpack.c.l.b16 %v3837
  %v4643 = vunpack.c.h.b16 %v3837
  %v4644 = vunpack.c.l.b16 %v3838
  %v4645 = vunpack.c.h.b16 %v3838
  %v4646 = vunpack.c.l.b16 %v3839
  %v4647 = vunpack.c.h.b16 %v3839
  %v4648 = vunpack.c.l.b16 %v3840
  %v4649 = vunpack.c.h.b16 %v3840
  %v4650 = vunpack.c.l.b16 %v3841
  %v4651 = vunpack.c.h.b16 %v3841
  %v4652 = vunpack.c.l.b16 %v3842
  %v4653 = vunpack.c.h.b16 %v3842
  %v4654 = vunpack.c.l.b16 %v3843
  %v4655 = vunpack.c.h.b16 %v3843
  %v4656 = vunpack.c.l.b16 %v3844
  %v4657 = vunpack.c.h.b16 %v3844
  %v4658 = vunpack.c.l.b16 %v3845
  %v4659 = vunpack.c.h.b16 %v3845
  %v4660 = vunpack.c.l.b16 %v3846
  %v4661 = vunpack.c.h.b16 %v3846
  %v4662 = vunpack.c.l.b16 %v3847
  %v4663 = vunpack.c.h.b16 %v3847
  %v4664 = vunpack.c.l.b16 %v3848
  %v4665 = vunpack.c.h.b16 %v3848
  %v4666 = vunpack.c.l.b16 %v3849
  %v4667 = vunpack.c.h.b16 %v3849
  %v4668 = vunpack.c.l.b16 %v3850
  %v4669 = vunpack.c.h.b16 %v3850
  %v4670 = vunpack.c.l.b16 %v3851
  %v4671 = vunpack.c.h.b16 %v3851
  %v4672 = vunpack.c.l.b16 %v3852
  %v4673 = vunpack.c.h.b16 %v3852
  %v4674 = vunpack.c.l.b16 %v3853
  %v4675 = vunpack.c.h.b16 %v3853
  %v4676 = vunpack.c.l.b16 %v3854
  %v4677 = vunpack.c.h.b16 %v3854
  %v4678 = vunpack.c.l.b16 %v3855
  %v4679 = vunpack.c.h.b16 %v3855
  %v4680 = vunpack.c.l.b16 %v3856
  %v4681 = vunpack.c.h.b16 %v3856
  %v4682 = vunpack.c.l.b16 %v3857
  %v4683 = vunpack.c.h.b16 %v3857
  %v4684 = vunpack.c.l.b16 %v3858
  %v4685 = vunpack.c.h.b16 %v3858
  %v4686 = vunpack.c.l.b16 %v3859
  %v4687 = vunpack.c.h.b16 %v3859
  %v4688 = vunpack.c.l.b16 %v3860
  %v4689 = vunpack.c.h.b16 %v3860
  %v4690 = vunpack.c.l.b16 %v3861
  %v4691 = vunpack.c.h.b16 %v3861
  %v4692 = vunpack.c.l.b16 %v3862
  %v4693 = vunpack.c.h.b16 %v3862
  %v4694 = vunpack.c.l.b16 %v3863
  %v4695 = vunpack.c.h.b16 %v3863
  %v4696 = vunpack.c.l.b16 %v3864
  %v4697 = vunpack.c.h.b16 %v3864
  %v4698 = vunpack.c.l.b16 %v3865
  %v4699 = vunpack.c.h.b16 %v3865
  %v4700 = vunpack.c.l.b16 %v3866
  %v4701 = vunpack.c.h.b16 %v3866
  %v4702 = vunpack.c.l.b16 %v3867
  %v4703 = vunpack.c.h.b16 %v3867
  %v4704 = vunpack.c.l.b16 %v3868
  %v4705 = vunpack.c.h.b16 %v3868
  %v4706 = vunpack.c.l.b16 %v3869
  %v4707 = vunpack.c.h.b16 %v3869
  %v4708 = vunpack.c.l.b16 %v3870
  %v4709 = vunpack.c.h.b16 %v3870
  %v4710 = vunpack.c.l.b16 %v3871
  %v4711 = vunpack.c.h.b16 %v3871
  %v4712 = vunpack.c.l.b16 %v3872
  %v4713 = vunpack.c.h.b16 %v3872
  %v4714 = vunpack.c.l.b16 %v3873
  %v4715 = vunpack.c.h.b16 %v3873
  %v4716 = vunpack.c.l.b16 %v3874
  %v4717 = vunpack.c.h.b16 %v3874
  %v4718 = vunpack.c.l.b16 %v3875
  %v4719 = vunpack.c.h.b16 %v3875
  %v4720 = vunpack.c.l.b16 %v3876
  %v4721 = vunpack.c.h.b16 %v3876
  %v4722 = vunpack.c.l.b16 %v3877
  %v4723 = vunpack.c.h.b16 %v3877
  %v4724 = vunpack.c.l.b16 %v3878
  %v4725 = vunpack.c.h.b16 %v3878
  %v4726 = vunpack.c.l.b16 %v3879
  %v4727 = vunpack.c.h.b16 %v3879
  %v4728 = vunpack.c.l.b16 %v3880
  %v4729 = vunpack.c.h.b16 %v3880
  %v4730 = vunpack.c.l.b16 %v3881
  %v4731 = vunpack.c.h.b16 %v3881
  %v4732 = vunpack.c.l.b16 %v3882
  %v4733 = vunpack.c.h.b16 %v3882
  %v4734 = vunpack.c.l.b16 %v3883
  %v4735 = vunpack.c.h.b16 %v3883
  %v4736 = vunpack.c.l.b16 %v3884
  %v4737 = vunpack.c.h.b16 %v3884
  %v4738 = vunpack.c.l.b16 %v3885
  %v4739 = vunpack.c.h.b16 %v3885
  %v4740 = vunpack.c.l.b16 %v3886
  %v4741 = vunpack.c.h.b16 %v3886
  %v4742 = vunpack.c.l.b16 %v3887
  %v4743 = vunpack.c.h.b16 %v3887
  %v4744 = vunpack.c.l.b16 %v3888
  %v4745 = vunpack.c.h.b16 %v3888
  %v4746 = vunpack.c.l.b16 %v3889
  %v4747 = vunpack.c.h.b16 %v3889
  %v4748 = vunpack.c.l.b16 %v3890
  %v4749 = vunpack.c.h.b16 %v3890
  %v4750 = vunpack.c.l.b16 %v3891
  %v4751 = vunpack.c.h.b16 %v3891
  %v4752 = vunpack.c.l.b16 %v3892
  %v4753 = vunpack.c.h.b16 %v3892
  %v4754 = vunpack.c.l.b16 %v3893
  %v4755 = vunpack.c.h.b16 %v3893
  %v4756 = vunpack.c.l.b16 %v3894
  %v4757 = vunpack.c.h.b16 %v3894
  %v4758 = vunpack.c.l.b16 %v3895
  %v4759 = vunpack.c.h.b16 %v3895
  %v4760 = vunpack.c.l.b16 %v3896
  %v4761 = vunpack.c.h.b16 %v3896
  %v4762 = vunpack.c.l.b16 %v3897
  %v4763 = vunpack.c.h.b16 %v3897
  %v4764 = vunpack.c.l.b16 %v3898
  %v4765 = vunpack.c.h.b16 %v3898
  %v4766 = vunpack.c.l.b16 %v3899
  %v4767 = vunpack.c.h.b16 %v3899
  %v4768 = vunpack.c.l.b16 %v3900
  %v4769 = vunpack.c.h.b16 %v3900
  %v4770 = vunpack.c.l.b16 %v3901
  %v4771 = vunpack.c.h.b16 %v3901
  %v4772 = vunpack.c.l.b16 %v3902
  %v4773 = vunpack.c.h.b16 %v3902
  %v4774 = vunpack.c.l.b16 %v3903
  %v4775 = vunpack.c.h.b16 %v3903
  %v4776 = vunpack.c.l.b16 %v3904
  %v4777 = vunpack.c.h.b16 %v3904
  %v4778 = vunpack.c.l.b16 %v3905
  %v4779 = vunpack.c.h.b16 %v3905
  %v4780 = vunpack.c.l.b16 %v3906
  %v4781 = vunpack.c.h.b16 %v3906
  %v4782 = vunpack.c.l.b16 %v3907
  %v4783 = vunpack.c.h.b16 %v3907
  %v4784 = vunpack.c.l.b16 %v3908
  %v4785 = vunpack.c.h.b16 %v3908
  %v4786 = vunpack.c.l.b16 %v3909
  %v4787 = vunpack.c.h.b16 %v3909
  %v4788 = vunpack.c.l.b16 %v3910
  %v4789 = vunpack.c.h.b16 %v3910
  %v4790 = vunpack.c.l.b16 %v3911
  %v4791 = vunpack.c.h.b16 %v3911
  %v4792 = vunpack.c.l.b16 %v3912
  %v4793 = vunpack.c.h.b16 %v3912
  %v4794 = vunpack.c.l.b16 %v3913
  %v4795 = vunpack.c.h.b16 %v3913
  %v4796 = vunpack.c.l.b16 %v3914
  %v4797 = vunpack.c.h.b16 %v3914
  %v4798 = vunpack.c.l.b16 %v3915
  %v4799 = vunpack.c.h.b16 %v3915
  %v4800 = vunpack.c.l.b16 %v3916
  %v4801 = vunpack.c.h.b16 %v3916
  %v4802 = vunpack.c.l.b16 %v3917
  %v4803 = vunpack.c.h.b16 %v3917
  %v4804 = vunpack.c.l.b16 %v3918
  %v4805 = vunpack.c.h.b16 %v3918
  %v4806 = vunpack.c.l.b16 %v3919
  %v4807 = vunpack.c.h.b16 %v3919
  %v4808 = vunpack.c.l.b16 %v3920
  %v4809 = vunpack.c.h.b16 %v3920
  %v4810 = vunpack.c.l.b16 %v3921
  %v4811 = vunpack.c.h.b16 %v3921
  %v4812 = vunpack.c.l.b16 %v3922
  %v4813 = vunpack.c.h.b16 %v3922
  %v4814 = vunpack.c.l.b16 %v3923
  %v4815 = vunpack.c.h.b16 %v3923
  %v4816 = vunpack.c.l.b16 %v3924
  %v4817 = vunpack.c.h.b16 %v3924
  %v4818 = vunpack.c.l.b16 %v3925
  %v4819 = vunpack.c.h.b16 %v3925
  %v4820 = vunpack.c.l.b16 %v3926
  %v4821 = vunpack.c.h.b16 %v3926
  %v4822 = vunpack.c.l.b16 %v3927
  %v4823 = vunpack.c.h.b16 %v3927
  %v4824 = vunpack.c.l.b16 %v3928
  %v4825 = vunpack.c.h.b16 %v3928
  %v4826 = vunpack.c.l.b16 %v3929
  %v4827 = vunpack.c.h.b16 %v3929
  %v4828 = vunpack.c.l.b16 %v3930
  %v4829 = vunpack.c.h.b16 %v3930
  %v4830 = vunpack.c.l.b16 %v3931
  %v4831 = vunpack.c.h.b16 %v3931
  %v4832 = vunpack.c.l.b16 %v3932
  %v4833 = vunpack.c.h.b16 %v3932
  %v4834 = vunpack.c.l.b16 %v3933
  %v4835 = vunpack.c.h.b16 %v3933
  %v4836 = vunpack.c.l.b16 %v3934
  %v4837 = vunpack.c.h.b16 %v3934
  %v4838 = vunpack.c.l.b16 %v3935
  %v4839 = vunpack.c.h.b16 %v3935
  %v4840 = vunpack.c.l.b16 %v3936
  %v4841 = vunpack.c.h.b16 %v3936
  %v4842 = vunpack.c.l.b16 %v3937
  %v4843 = vunpack.c.h.b16 %v3937
  %v4844 = vunpack.c.l.b16 %v3938
  %v4845 = vunpack.c.h.b16 %v3938
  %v4846 = vunpack.c.l.b16 %v3939
  %v4847 = vunpack.c.h.b16 %v3939
  %v4848 = vunpack.c.l.b16 %v3940
  %v4849 = vunpack.c.h.b16 %v3940
  %v4850 = vunpack.c.l.b16 %v3941
  %v4851 = vunpack.c.h.b16 %v3941
  %v4852 = vunpack.c.l.b16 %v3942
  %v4853 = vunpack.c.h.b16 %v3942
  %v4854 = vunpack.c.l.b16 %v3943
  %v4855 = vunpack.c.h.b16 %v3943
  %v4856 = vunpack.c.l.b16 %v3944
  %v4857 = vunpack.c.h.b16 %v3944
  %v4858 = vunpack.c.l.b16 %v3945
  %v4859 = vunpack.c.h.b16 %v3945
  %v4860 = vunpack.c.l.b16 %v3946
  %v4861 = vunpack.c.h.b16 %v3946
  %v4862 = vunpack.c.l.b16 %v3947
  %v4863 = vunpack.c.h.b16 %v3947
  %v4864 = vunpack.c.l.b16 %v3948
  %v4865 = vunpack.c.h.b16 %v3948
  %v4866 = vunpack.c.l.b16 %v3949
  %v4867 = vunpack.c.h.b16 %v3949
  %v4868 = vunpack.c.l.b16 %v3950
  %v4869 = vunpack.c.h.b16 %v3950
  %v4870 = vunpack.c.l.b16 %v3951
  %v4871 = vunpack.c.h.b16 %v3951
  %v4872 = vunpack.c.l.b16 %v3952
  %v4873 = vunpack.c.h.b16 %v3952
  %v4874 = vunpack.c.l.b16 %v3953
  %v4875 = vunpack.c.h.b16 %v3953
  %v4876 = vunpack.c.l.b16 %v3954
  %v4877 = vunpack.c.h.b16 %v3954
  %v4878 = vunpack.c.l.b16 %v3955
  %v4879 = vunpack.c.h.b16 %v3955
  %v4880 = vunpack.c.l.b16 %v3956
  %v4881 = vunpack.c.h.b16 %v3956
  %v4882 = vunpack.c.l.b16 %v3957
  %v4883 = vunpack.c.h.b16 %v3957
  %v4884 = vunpack.c.l.b16 %v3958
  %v4885 = vunpack.c.h.b16 %v3958
  %v4886 = vunpack.c.l.b16 %v3959
  %v4887 = vunpack.c.h.b16 %v3959
  %v4888 = vunpack.c.l.b16 %v3960
  %v4889 = vunpack.c.h.b16 %v3960
  %v4890 = vunpack.c.l.b16 %v3961
  %v4891 = vunpack.c.h.b16 %v3961
  %v4892 = vunpack.c.l.b16 %v3962
  %v4893 = vunpack.c.h.b16 %v3962
  %v4894 = vunpack.c.l.b16 %v3963
  %v4895 = vunpack.c.h.b16 %v3963
  %v4896 = vunpack.c.l.b16 %v3964
  %v4897 = vunpack.c.h.b16 %v3964
  %v4898 = vunpack.c.l.b16 %v3965
  %v4899 = vunpack.c.h.b16 %v3965
  %v4900 = vunpack.c.l.b16 %v3966
  %v4901 = vunpack.c.h.b16 %v3966
  %v4902 = vunpack.c.l.b16 %v3967
  %v4903 = vunpack.c.h.b16 %v3967
  %v4904 = vunpack.c.l.b16 %v3968
  %v4905 = vunpack.c.h.b16 %v3968
  %v4906 = vunpack.c.l.b16 %v3969
  %v4907 = vunpack.c.h.b16 %v3969
  %v4908 = vunpack.c.l.b16 %v3970
  %v4909 = vunpack.c.h.b16 %v3970
  %v4910 = vunpack.c.l.b16 %v3971
  %v4911 = vunpack.c.h.b16 %v3971
  %v4912 = vunpack.c.l.b16 %v3972
  %v4913 = vunpack.c.h.b16 %v3972
  %v4914 = vunpack.c.l.b16 %v3973
  %v4915 = vunpack.c.h.b16 %v3973
  %v4916 = vunpack.c.l.b16 %v3974
  %v4917 = vunpack.c.h.b16 %v3974
  %v4918 = vunpack.c.l.b16 %v3975
  %v4919 = vunpack.c.h.b16 %v3975
  %v4920 = vunpack.c.l.b16 %v3976
  %v4921 = vunpack.c.h.b16 %v3976
  %v4922 = vunpack.c.l.b16 %v3977
  %v4923 = vunpack.c.h.b16 %v3977
  %v4924 = vunpack.c.l.b16 %v3978
  %v4925 = vunpack.c.h.b16 %v3978
  %v4926 = vunpack.c.l.b16 %v3979
  %v4927 = vunpack.c.h.b16 %v3979
  %v4928 = vunpack.c.l.b16 %v3980
  %v4929 = vunpack.c.h.b16 %v3980
  %v4930 = vunpack.c.l.b16 %v3981
  %v4931 = vunpack.c.h.b16 %v3981
  %v4932 = vunpack.c.l.b16 %v3982
  %v4933 = vunpack.c.h.b16 %v3982
  %v4934 = vunpack.c.l.b16 %v3983
  %v4935 = vunpack.c.h.b16 %v3983
  %v4936 = vunpack.c.l.b16 %v3984
  %v4937 = vunpack.c.h.b16 %v3984
  %v4938 = vunpack.c.l.b16 %v3985
  %v4939 = vunpack.c.h.b16 %v3985
  %v4940 = vunpack.c.l.b16 %v3986
  %v4941 = vunpack.c.h.b16 %v3986
  %v4942 = vunpack.c.l.b16 %v3987
  %v4943 = vunpack.c.h.b16 %v3987
  %v4944 = vunpack.c.l.b16 %v3988
  %v4945 = vunpack.c.h.b16 %v3988
  %v4946 = vunpack.c.l.b16 %v3989
  %v4947 = vunpack.c.h.b16 %v3989
  %v4948 = vunpack.c.l.b16 %v3990
  %v4949 = vunpack.c.h.b16 %v3990
  %v4950 = vunpack.c.l.b16 %v3991
  %v4951 = vunpack.c.h.b16 %v3991
  %v4952 = vunpack.c.l.b16 %v3992
  %v4953 = vunpack.c.h.b16 %v3992
  %v4954 = vunpack.c.l.b16 %v3993
  %v4955 = vunpack.c.h.b16 %v3993
  %v4956 = vunpack.c.l.b16 %v3994
  %v4957 = vunpack.c.h.b16 %v3994
  %v4958 = vunpack.c.l.b16 %v3995
  %v4959 = vunpack.c.h.b16 %v3995
  %v4960 = vunpack.c.l.b16 %v3996
  %v4961 = vunpack.c.h.b16 %v3996
  %v4962 = vunpack.c.l.b16 %v3997
  %v4963 = vunpack.c.h.b16 %v3997
  %v4964 = vunpack.c.l.b16 %v3998
  %v4965 = vunpack.c.h.b16 %v3998
  %v4966 = vunpack.c.l.b16 %v3999
  %v4967 = vunpack.c.h.b16 %v3999
  %v4968 = vunpack.c.l.b16 %v4000
  %v4969 = vunpack.c.h.b16 %v4000
  %v4970 = vunpack.c.l.b16 %v4001
  %v4971 = vunpack.c.h.b16 %v4001
  %v4972 = vunpack.c.l.b16 %v4002
  %v4973 = vunpack.c.h.b16 %v4002
  %v4974 = vunpack.c.l.b16 %v4003
  %v4975 = vunpack.c.h.b16 %v4003
  %v4976 = vunpack.c.l.b16 %v4004
  %v4977 = vunpack.c.h.b16 %v4004
  %v4978 = vunpack.c.l.b16 %v4005
  %v4979 = vunpack.c.h.b16 %v4005
  %v4980 = vunpack.c.l.b16 %v4006
  %v4981 = vunpack.c.h.b16 %v4006
  %v4982 = vunpack.c.l.b16 %v4007
  %v4983 = vunpack.c.h.b16 %v4007
  %v4984 = vunpack.c.l.b16 %v4008
  %v4985 = vunpack.c.h.b16 %v4008
  %v4986 = vunpack.c.l.b16 %v4009
  %v4987 = vunpack.c.h.b16 %v4009
  %v4988 = vunpack.c.l.b16 %v4010
  %v4989 = vunpack.c.h.b16 %v4010
  %v4990 = vunpack.c.l.b16 %v4011
  %v4991 = vunpack.c.h.b16 %v4011
  %v4992 = vunpack.c.l.b16 %v4012
  %v4993 = vunpack.c.h.b16 %v4012
  %v4994 = vunpack.c.l.b16 %v4013
  %v4995 = vunpack.c.h.b16 %v4013
  %v4996 = vunpack.c.l.b16 %v4014
  %v4997 = vunpack.c.h.b16 %v4014
  %v4998 = vunpack.c.l.b16 %v4015
  %v4999 = vunpack.c.h.b16 %v4015
  %v5000 = vunpack.c.l.b16 %v4016
  %v5001 = vunpack.c.h.b16 %v4016
  %v5002 = vunpack.c.l.b16 %v4017
  %v5003 = vunpack.c.h.b16 %v4017
  %v5004 = vunpack.c.l.b16 %v4018
  %v5005 = vunpack.c.h.b16 %v4018
  %v5006 = vunpack.c.l.b16 %v4019
  %v5007 = vunpack.c.h.b16 %v4019
  %v5008 = vunpack.c.l.b16 %v4020
  %v5009 = vunpack.c.h.b16 %v4020
  %v5010 = vunpack.c.l.b16 %v4021
  %v5011 = vunpack.c.h.b16 %v4021
  %v5012 = vunpack.c.l.b16 %v4022
  %v5013 = vunpack.c.h.b16 %v4022
  %v5014 = vunpack.c.l.b16 %v4023
  %v5015 = vunpack.c.h.b16 %v4023
  %v5016 = vunpack.c.l.b16 %v4024
  %v5017 = vunpack.c.h.b16 %v4024
  %v5018 = vunpack.c.l.b16 %v4025
  %v5019 = vunpack.c.h.b16 %v4025
  %v5020 = vunpack.c.l.b16 %v4026
  %v5021 = vunpack.c.h.b16 %v4026
  %v5022 = vunpack.c.l.b16 %v4027
  %v5023 = vunpack.c.h.b16 %v4027
  %v5024 = vunpack.c.l.b16 %v4028
  %v5025 = vunpack.c.h.b16 %v4028
  %v5026 = vunpack.c.l.b16 %v4029
  %v5027 = vunpack.c.h.b16 %v4029
  %v5028 = vunpack.c.l.b16 %v4030
  %v5029 = vunpack.c.h.b16 %v4030
  %v5030 = vunpack.c.l.b16 %v4031
  %v5031 = vunpack.c.h.b16 %v4031
  %v5032 = vunpack.c.l.b16 %v4032
  %v5033 = vunpack.c.h.b16 %v4032
  %v5034 = vunpack.c.l.b16 %v4033
  %v5035 = vunpack.c.h.b16 %v4033
  %v5036 = vunpack.c.l.b16 %v4034
  %v5037 = vunpack.c.h.b16 %v4034
  %v5038 = vunpack.c.l.b16 %v4035
  %v5039 = vunpack.c.h.b16 %v4035
  %v5040 = vunpack.c.l.b16 %v4036
  %v5041 = vunpack.c.h.b16 %v4036
  %v5042 = vunpack.c.l.b16 %v4037
  %v5043 = vunpack.c.h.b16 %v4037
  %v5044 = vunpack.c.l.b16 %v4038
  %v5045 = vunpack.c.h.b16 %v4038
  %v5046 = vunpack.c.l.b16 %v4039
  %v5047 = vunpack.c.h.b16 %v4039
  %v5048 = vunpack.c.l.b16 %v4040
  %v5049 = vunpack.c.h.b16 %v4040
  %v5050 = vunpack.c.l.b16 %v4041
  %v5051 = vunpack.c.h.b16 %v4041
  %v5052 = vunpack.c.l.b16 %v4042
  %v5053 = vunpack.c.h.b16 %v4042
  %v5054 = vunpack.c.l.b16 %v4043
  %v5055 = vunpack.c.h.b16 %v4043
  %v5056 = vunpack.c.l.b16 %v4044
  %v5057 = vunpack.c.h.b16 %v4044
  %v5058 = vunpack.c.l.b16 %v4045
  %v5059 = vunpack.c.h.b16 %v4045
  %v5060 = vunpack.c.l.b16 %v4046
  %v5061 = vunpack.c.h.b16 %v4046
  %v5062 = vunpack.c.l.b16 %v4047
  %v5063 = vunpack.c.h.b16 %v4047
  %v5064 = vunpack.c.l.b16 %v4048
  %v5065 = vunpack.c.h.b16 %v4048
  %v5066 = vunpack.c.l.b16 %v4049
  %v5067 = vunpack.c.h.b16 %v4049
  %v5068 = vunpack.c.l.b16 %v4050
  %v5069 = vunpack.c.h.b16 %v4050
  %v5070 = vunpack.c.l.b16 %v4051
  %v5071 = vunpack.c.h.b16 %v4051
  %v5072 = vunpack.c.l.b16 %v4052
  %v5073 = vunpack.c.h.b16 %v4052
  %v5074 = vunpack.c.l.b16 %v4053
  %v5075 = vunpack.c.h.b16 %v4053
  %v5076 = vunpack.c.l.b16 %v4054
  %v5077 = vunpack.c.h.b16 %v4054
  %v5078 = vunpack.c.l.b16 %v4055
  %v5079 = vunpack.c.h.b16 %v4055
  %v5080 = vunpack.c.l.b16 %v4056
  %v5081 = vunpack.c.h.b16 %v4056
  %v5082 = vunpack.c.l.b16 %v4057
  %v5083 = vunpack.c.h.b16 %v4057
  %v5084 = vunpack.c.l.b16 %v4058
  %v5085 = vunpack.c.h.b16 %v4058
  %v5086 = vunpack.c.l.b16 %v4059
  %v5087 = vunpack.c.h.b16 %v4059
  %v5088 = vunpack.c.l.b16 %v4060
  %v5089 = vunpack.c.h.b16 %v4060
  %v5090 = vunpack.c.l.b16 %v4061
  %v5091 = vunpack.c.h.b16 %v4061
  %v5092 = vunpack.c.l.b16 %v4062
  %v5093 = vunpack.c.h.b16 %v4062
  %v5094 = vunpack.c.l.b16 %v4063
  %v5095 = vunpack.c.h.b16 %v4063
  %v5096 = vunpack.c.l.b16 %v4064
  %v5097 = vunpack.c.h.b16 %v4064
  %v5098 = vunpack.c.l.b16 %v4065
  %v5099 = vunpack.c.h.b16 %v4065
  %v5100 = vunpack.c.l.b16 %v4066
  %v5101 = vunpack.c.h.b16 %v4066
  %v5102 = vunpack.c.l.b16 %v4067
  %v5103 = vunpack.c.h.b16 %v4067
  %v5104 = vunpack.c.l.b16 %v4068
  %v5105 = vunpack.c.h.b16 %v4068
  %v5106 = vunpack.c.l.b16 %v4069
  %v5107 = vunpack.c.h.b16 %v4069
  %v5108 = vunpack.c.l.b16 %v4070
  %v5109 = vunpack.c.h.b16 %v4070
  %v5110 = vunpack.c.l.b16 %v4071
  %v5111 = vunpack.c.h.b16 %v4071
  %v5112 = vunpack.c.l.b16 %v4072
  %v5113 = vunpack.c.h.b16 %v4072
  %v5114 = vunpack.c.l.b16 %v4073
  %v5115 = vunpack.c.h.b16 %v4073
  %v5116 = vunpack.c.l.b16 %v4074
  %v5117 = vunpack.c.h.b16 %v4074
  %v5118 = vunpack.c.l.b16 %v4075
  %v5119 = vunpack.c.h.b16 %v4075
  %v5120 = vunpack.c.l.b16 %v4076
  %v5121 = vunpack.c.h.b16 %v4076
  %v5122 = vunpack.c.l.b16 %v4077
  %v5123 = vunpack.c.h.b16 %v4077
  %v5124 = vunpack.c.l.b16 %v4078
  %v5125 = vunpack.c.h.b16 %v4078
  %v5126 = vunpack.c.l.b16 %v4079
  %v5127 = vunpack.c.h.b16 %v4079
  %v5128 = vunpack.c.l.b16 %v4080
  %v5129 = vunpack.c.h.b16 %v4080
  %v5130 = vunpack.c.l.b16 %v4081
  %v5131 = vunpack.c.h.b16 %v4081
  %v5132 = vunpack.c.l.b16 %v4082
  %v5133 = vunpack.c.h.b16 %v4082
  %v5134 = vunpack.c.l.b16 %v4083
  %v5135 = vunpack.c.h.b16 %v4083
  %v5136 = vunpack.c.l.b16 %v4084
  %v5137 = vunpack.c.h.b16 %v4084
  %v5138 = vunpack.c.l.b16 %v4085
  %v5139 = vunpack.c.h.b16 %v4085
  %v5140 = vunpack.c.l.b16 %v4086
  %v5141 = vunpack.c.h.b16 %v4086
  %v5142 = vunpack.c.l.b16 %v4087
  %v5143 = vunpack.c.h.b16 %v4087
  %v5144 = vunpack.c.l.b16 %v4088
  %v5145 = vunpack.c.h.b16 %v4088
  %v5146 = vunpack.c.l.b16 %v4089
  %v5147 = vunpack.c.h.b16 %v4089
  %v5148 = vunpack.c.l.b16 %v4090
  %v5149 = vunpack.c.h.b16 %v4090
  %v5150 = vunpack.c.l.b16 %v4091
  %v5151 = vunpack.c.h.b16 %v4091
  %v5152 = vunpack.c.l.b16 %v4092
  %v5153 = vunpack.c.h.b16 %v4092
  %v5154 = vunpack.c.l.b16 %v4093
  %v5155 = vunpack.c.h.b16 %v4093
  %v5156 = vunpack.c.l.b16 %v4094
  %v5157 = vunpack.c.h.b16 %v4094
  %v5158 = vunpack.c.l.b16 %v4095
  %v5159 = vunpack.c.h.b16 %v4095
  %v5160 = vunpack.c.l.b16 %v4096
  %v5161 = vunpack.c.h.b16 %v4096
  %v5162 = vunpack.c.l.b16 %v4097
  %v5163 = vunpack.c.h.b16 %v4097
  %v5164 = vunpack.c.l.b16 %v4098
  %v5165 = vunpack.c.h.b16 %v4098
  %v5166 = vunpack.c.l.b16 %v4099
  %v5167 = vunpack.c.h.b16 %v4099
  %v5168 = vunpack.c.l.b16 %v4100
  %v5169 = vunpack.c.h.b16 %v4100
  %v5170 = vunpack.c.l.b16 %v4101
  %v5171 = vunpack.c.h.b16 %v4101
  %v5172 = vunpack.c.l.b16 %v4102
  %v5173 = vunpack.c.h.b16 %v4102
  %v5174 = vunpack.c.l.b16 %v4103
  %v5175 = vunpack.c.h.b16 %v4103
  %v5176 = vunpack.c.l.b16 %v4104
  %v5177 = vunpack.c.h.b16 %v4104
  %v5178 = vunpack.c.l.b16 %v4105
  %v5179 = vunpack.c.h.b16 %v4105
  %v5180 = vunpack.c.l.b16 %v4106
  %v5181 = vunpack.c.h.b16 %v4106
  %v5182 = vunpack.c.l.b16 %v4107
  %v5183 = vunpack.c.h.b16 %v4107
  %v5184 = vunpack.c.l.b16 %v4108
  %v5185 = vunpack.c.h.b16 %v4108
  %v5186 = vunpack.c.l.b16 %v4109
  %v5187 = vunpack.c.h.b16 %v4109
  %v5188 = vunpack.c.l.b16 %v4110
  %v5189 = vunpack.c.h.b16 %v4110
  %v5190 = vunpack.c.l.b16 %v4111
  %v5191 = vunpack.c.h.b16 %v4111
  %v5192 = vunpack.c.l.b16 %v4112
  %v5193 = vunpack.c.h.b16 %v4112
  %v5194 = vunpack.c.l.b16 %v4113
  %v5195 = vunpack.c.h.b16 %v4113
  %v5196 = vunpack.c.l.b16 %v4114
  %v5197 = vunpack.c.h.b16 %v4114
  %v5198 = vunpack.c.l.b16 %v4115
  %v5199 = vunpack.c.h.b16 %v4115
  %v5200 = vunpack.c.l.b16 %v4116
  %v5201 = vunpack.c.h.b16 %v4116
  %v5202 = vunpack.c.l.b16 %v4117
  %v5203 = vunpack.c.h.b16 %v4117
  %v5204 = vunpack.c.l.b16 %v4118
  %v5205 = vunpack.c.h.b16 %v4118
  %v5206 = vunpack.c.l.b16 %v4119
  %v5207 = vunpack.c.h.b16 %v4119
  %v5208 = vunpack.c.l.b16 %v4120
  %v5209 = vunpack.c.h.b16 %v4120
  %v5210 = vunpack.c.l.b16 %v4121
  %v5211 = vunpack.c.h.b16 %v4121
  %v5212 = vunpack.c.l.b16 %v4122
  %v5213 = vunpack.c.h.b16 %v4122
  %v5214 = vunpack.c.l.b16 %v4123
  %v5215 = vunpack.c.h.b16 %v4123
  %v5216 = vunpack.c.l.b16 %v4124
  %v5217 = vunpack.c.h.b16 %v4124
  %v5218 = vunpack.c.l.b16 %v4125
  %v5219 = vunpack.c.h.b16 %v4125
  %v5220 = vunpack.c.l.b16 %v4126
  %v5221 = vunpack.c.h.b16 %v4126
  %v5222 = vunpack.c.l.b16 %v4127
  %v5223 = vunpack.c.h.b16 %v4127
  %v5224 = vunpack.c.l.b16 %v4128
  %v5225 = vunpack.c.h.b16 %v4128
  %v5226 = vunpack.c.l.b16 %v4129
  %v5227 = vunpack.c.h.b16 %v4129
  %v5228 = vunpack.c.l.b16 %v4130
  %v5229 = vunpack.c.h.b16 %v4130
  %v5230 = vunpack.c.l.b16 %v4131
  %v5231 = vunpack.c.h.b16 %v4131
  %v5232 = vunpack.c.l.b16 %v4132
  %v5233 = vunpack.c.h.b16 %v4132
  %v5234 = vunpack.c.l.b16 %v4133
  %v5235 = vunpack.c.h.b16 %v4133
  %v5236 = vunpack.c.l.b16 %v4134
  %v5237 = vunpack.c.h.b16 %v4134
  %v5238 = vunpack.c.l.b16 %v4135
  %v5239 = vunpack.c.h.b16 %v4135
  %v5240 = vunpack.c.l.b16 %v4136
  %v5241 = vunpack.c.h.b16 %v4136
  %v5242 = vunpack.c.l.b16 %v4137
  %v5243 = vunpack.c.h.b16 %v4137
  %v5244 = vunpack.c.l.b16 %v4138
  %v5245 = vunpack.c.h.b16 %v4138
  %v5246 = vunpack.c.l.b16 %v4139
  %v5247 = vunpack.c.h.b16 %v4139
  %v5248 = vunpack.c.l.b16 %v4140
  %v5249 = vunpack.c.h.b16 %v4140
  %v5250 = vunpack.c.l.b16 %v4141
  %v5251 = vunpack.c.h.b16 %v4141
  %v5252 = vunpack.c.l.b16 %v4142
  %v5253 = vunpack.c.h.b16 %v4142
  %v5254 = vunpack.c.l.b16 %v4143
  %v5255 = vunpack.c.h.b16 %v4143
  %v5256 = vunpack.c.l.b16 %v4144
  %v5257 = vunpack.c.h.b16 %v4144
  %v5258 = vunpack.c.l.b16 %v4145
  %v5259 = vunpack.c.h.b16 %v4145
  %v5260 = vunpack.c.l.b16 %v4146
  %v5261 = vunpack.c.h.b16 %v4146
  %v5262 = vunpack.c.l.b16 %v4147
  %v5263 = vunpack.c.h.b16 %v4147
  %v5264 = vunpack.c.l.b16 %v4148
  %v5265 = vunpack.c.h.b16 %v4148
  %v5266 = vunpack.c.l.b16 %v4149
  %v5267 = vunpack.c.h.b16 %v4149
  %v5268 = vunpack.c.l.b16 %v4150
  %v5269 = vunpack.c.h.b16 %v4150
  %v5270 = vunpack.c.l.b16 %v4151
  %v5271 = vunpack.c.h.b16 %v4151
  %v5272 = vunpack.c.l.b16 %v4152
  %v5273 = vunpack.c.h.b16 %v4152
  %v5274 = vunpack.c.l.b16 %v4153
  %v5275 = vunpack.c.h.b16 %v4153
  %v5276 = vunpack.c.l.b16 %v4154
  %v5277 = vunpack.c.h.b16 %v4154
  %v5278 = vunpack.c.l.b16 %v4155
  %v5279 = vunpack.c.h.b16 %v4155
  %v5280 = vunpack.c.l.b16 %v4156
  %v5281 = vunpack.c.h.b16 %v4156
  %v5282 = vunpack.c.l.b16 %v4157
  %v5283 = vunpack.c.h.b16 %v4157
  %v5284 = vunpack.c.l.b16 %v4158
  %v5285 = vunpack.c.h.b16 %v4158
  %v5286 = vunpack.c.l.b16 %v4159
  %v5287 = vunpack.c.h.b16 %v4159
  %v5288 = vunpack.c.l.b16 %v4160
  %v5289 = vunpack.c.h.b16 %v4160
  %v5290 = vunpack.c.l.b16 %v4161
  %v5291 = vunpack.c.h.b16 %v4161
  %v5292 = vunpack.c.l.b16 %v4162
  %v5293 = vunpack.c.h.b16 %v4162
  %v5294 = vunpack.c.l.b16 %v4163
  %v5295 = vunpack.c.h.b16 %v4163
  %v5296 = vunpack.c.l.b16 %v4164
  %v5297 = vunpack.c.h.b16 %v4164
  %v5298 = vunpack.c.l.b16 %v4165
  %v5299 = vunpack.c.h.b16 %v4165
  %v5300 = vunpack.c.l.b16 %v4166
  %v5301 = vunpack.c.h.b16 %v4166
  %v5302 = vunpack.c.l.b16 %v4167
  %v5303 = vunpack.c.h.b16 %v4167
  %v5304 = vunpack.c.l.b16 %v4168
  %v5305 = vunpack.c.h.b16 %v4168
  %v5306 = vunpack.c.l.b16 %v4169
  %v5307 = vunpack.c.h.b16 %v4169
  %v5308 = vunpack.c.l.b16 %v4170
  %v5309 = vunpack.c.h.b16 %v4170
  %v5310 = vunpack.c.l.b16 %v4171
  %v5311 = vunpack.c.h.b16 %v4171
  %v5312 = vunpack.c.l.b16 %v4172
  %v5313 = vunpack.c.h.b16 %v4172
  %v5314 = vunpack.c.l.b16 %v4173
  %v5315 = vunpack.c.h.b16 %v4173
  %v5316 = vunpack.c.l.b16 %v4174
  %v5317 = vunpack.c.h.b16 %v4174
  %v5318 = vunpack.c.l.b16 %v4175
  %v5319 = vunpack.c.h.b16 %v4175
  %v5320 = vunpack.c.l.b16 %v4176
  %v5321 = vunpack.c.h.b16 %v4176
  %v5322 = vunpack.c.l.b16 %v4177
  %v5323 = vunpack.c.h.b16 %v4177
  %v5324 = vunpack.c.l.b16 %v4178
  %v5325 = vunpack.c.h.b16 %v4178
  %v5326 = vunpack.c.l.b16 %v4179
  %v5327 = vunpack.c.h.b16 %v4179
  %v5328 = vunpack.c.l.b16 %v4180
  %v5329 = vunpack.c.h.b16 %v4180
  %v5330 = vunpack.c.l.b16 %v4181
  %v5331 = vunpack.c.h.b16 %v4181
  %v5332 = vunpack.c.l.b16 %v4182
  %v5333 = vunpack.c.h.b16 %v4182
  %v5334 = vunpack.c.l.b16 %v4183
  %v5335 = vunpack.c.h.b16 %v4183
  %v5336 = vunpack.c.l.b16 %v4184
  %v5337 = vunpack.c.h.b16 %v4184
  %v5338 = vunpack.c.l.b16 %v4185
  %v5339 = vunpack.c.h.b16 %v4185
  %v5340 = vunpack.c.l.b16 %v4186
  %v5341 = vunpack.c.h.b16 %v4186
  %v5342 = vunpack.c.l.b16 %v4187
  %v5343 = vunpack.c.h.b16 %v4187
  %v5344 = vunpack.c.l.b16 %v4188
  %v5345 = vunpack.c.h.b16 %v4188
  %v5346 = vunpack.c.l.b16 %v4189
  %v5347 = vunpack.c.h.b16 %v4189
  %v5348 = vunpack.c.l.b16 %v4190
  %v5349 = vunpack.c.h.b16 %v4190
  %v5350 = vunpack.c.l.b16 %v4191
  %v5351 = vunpack.c.h.b16 %v4191
  %v5352 = vunpack.c.l.b16 %v4192
  %v5353 = vunpack.c.h.b16 %v4192
  %v5354 = vunpack.c.l.b16 %v4193
  %v5355 = vunpack.c.h.b16 %v4193
  %v5356 = vunpack.c.l.b16 %v4194
  %v5357 = vunpack.c.h.b16 %v4194
  %v5358 = vunpack.c.l.b16 %v4195
  %v5359 = vunpack.c.h.b16 %v4195
  %v5360 = vunpack.c.l.b16 %v4196
  %v5361 = vunpack.c.h.b16 %v4196
  %v5362 = vunpack.c.l.b16 %v4197
  %v5363 = vunpack.c.h.b16 %v4197
  %v5364 = vunpack.c.l.b16 %v4198
  %v5365 = vunpack.c.h.b16 %v4198
  %v5366 = vunpack.c.l.b16 %v4199
  %v5367 = vunpack.c.h.b16 %v4199
  %v5368 = vunpack.c.l.b16 %v4200
  %v5369 = vunpack.c.h.b16 %v4200
  %v5370 = vunpack.c.l.b16 %v4201
  %v5371 = vunpack.c.h.b16 %v4201
  %v5372 = vunpack.c.l.b16 %v4202
  %v5373 = vunpack.c.h.b16 %v4202
  %v5374 = vunpack.c.l.b16 %v4203
  %v5375 = vunpack.c.h.b16 %v4203
  %v5376 = vunpack.c.l.b16 %v4204
  %v5377 = vunpack.c.h.b16 %v4204
  %v5378 = vunpack.c.l.b16 %v4205
  %v5379 = vunpack.c.h.b16 %v4205
  %v5380 = vunpack.c.l.b16 %v4206
  %v5381 = vunpack.c.h.b16 %v4206
  %v5382 = vunpack.c.l.b16 %v4207
  %v5383 = vunpack.c.h.b16 %v4207
  %v5384 = vunpack.c.l.b16 %v4208
  %v5385 = vunpack.c.h.b16 %v4208
  %v5386 = vunpack.c.l.b16 %v4209
  %v5387 = vunpack.c.h.b16 %v4209
  %v5388 = vunpack.c.l.b16 %v4210
  %v5389 = vunpack.c.h.b16 %v4210
  %v5390 = vunpack.c.l.b16 %v4211
  %v5391 = vunpack.c.h.b16 %v4211
  %v5392 = vunpack.c.l.b16 %v4212
  %v5393 = vunpack.c.h.b16 %v4212
  %v5394 = vunpack.c.l.b16 %v4213
  %v5395 = vunpack.c.h.b16 %v4213
  %v5396 = vunpack.c.l.b16 %v4214
  %v5397 = vunpack.c.h.b16 %v4214
  %v5398 = vunpack.c.l.b16 %v4215
  %v5399 = vunpack.c.h.b16 %v4215
  %v5400 = vpack.c.b16 %v4638, %v4632
  %v5401 = vpack.c.b16 %v4639, %v4633
  %v5402 = vpack.c.b16 %v4640, %v4634
  %v5403 = vpack.c.b16 %v4641, %v4635
  %v5404 = vpack.c.b16 %v4642, %v4636
  %v5405 = vpack.c.b16 %v4643, %v4637
  %v5406 = vpack.c.b16 %v4650, %v4644
  %v5407 = vpack.c.b16 %v4651, %v4645
  %v5408 = vpack.c.b16 %v4652, %v4646
  %v5409 = vpack.c.b16 %v4653, %v4647
  %v5410 = vpack.c.b16 %v4654, %v4648
  %v5411 = vpack.c.b16 %v4655, %v4649
  %v5412 = vpack.c.b16 %v4662, %v4656
  %v5413 = vpack.c.b16 %v4663, %v4657
  %v5414 = vpack.c.b16 %v4664, %v4658
  %v5415 = vpack.c.b16 %v4665, %v4659
  %v5416 = vpack.c.b16 %v4666, %v4660
  %v5417 = vpack.c.b16 %v4667, %v4661
  %v5418 = vpack.c.b16 %v4674, %v4668
  %v5419 = vpack.c.b16 %v4675, %v4669
  %v5420 = vpack.c.b16 %v4676, %v4670
  %v5421 = vpack.c.b16 %v4677, %v4671
  %v5422 = vpack.c.b16 %v4678, %v4672
  %v5423 = vpack.c.b16 %v4679, %v4673
  %v5424 = vpack.c.b16 %v4686, %v4680
  %v5425 = vpack.c.b16 %v4687, %v4681
  %v5426 = vpack.c.b16 %v4688, %v4682
  %v5427 = vpack.c.b16 %v4689, %v4683
  %v5428 = vpack.c.b16 %v4690, %v4684
  %v5429 = vpack.c.b16 %v4691, %v4685
  %v5430 = vpack.c.b16 %v4698, %v4692
  %v5431 = vpack.c.b16 %v4699, %v4693
  %v5432 = vpack.c.b16 %v4700, %v4694
  %v5433 = vpack.c.b16 %v4701, %v4695
  %v5434 = vpack.c.b16 %v4702, %v4696
  %v5435 = vpack.c.b16 %v4703, %v4697
  %v5436 = vpack.c.b16 %v4710, %v4704
  %v5437 = vpack.c.b16 %v4711, %v4705
  %v5438 = vpack.c.b16 %v4712, %v4706
  %v5439 = vpack.c.b16 %v4713, %v4707
  %v5440 = vpack.c.b16 %v4714, %v4708
  %v5441 = vpack.c.b16 %v4715, %v4709
  %v5442 = vpack.c.b16 %v4722, %v4716
  %v5443 = vpack.c.b16 %v4723, %v4717
  %v5444 = vpack.c.b16 %v4724, %v4718
  %v5445 = vpack.c.b16 %v4725, %v4719
  %v5446 = vpack.c.b16 %v4726, %v4720
  %v5447 = vpack.c.b16 %v4727, %v4721
  %v5448 = vpack.c.b16 %v4734, %v4728
  %v5449 = vpack.c.b16 %v4735, %v4729
  %v5450 = vpack.c.b16 %v4736, %v4730
  %v5451 = vpack.c.b16 %v4737, %v4731
  %v5452 = vpack.c.b16 %v4738, %v4732
  %v5453 = vpack.c.b16 %v4739, %v4733
  %v5454 = vpack.c.b16 %v4746, %v4740
  %v5455 = vpack.c.b16 %v4747, %v4741
  %v5456 = vpack.c.b16 %v4748, %v4742
  %v5457 = vpack.c.b16 %v4749, %v4743
  %v5458 = vpack.c.b16 %v4750, %v4744
  %v5459 = vpack.c.b16 %v4751, %v4745
  %v5460 = vpack.c.b16 %v4758, %v4752
  %v5461 = vpack.c.b16 %v4759, %v4753
  %v5462 = vpack.c.b16 %v4760, %v4754
  %v5463 = vpack.c.b16 %v4761, %v4755
  %v5464 = vpack.c.b16 %v4762, %v4756
  %v5465 = vpack.c.b16 %v4763, %v4757
  %v5466 = vpack.c.b16 %v4770, %v4764
  %v5467 = vpack.c.b16 %v4771, %v4765
  %v5468 = vpack.c.b16 %v4772, %v4766
  %v5469 = vpack.c.b16 %v4773, %v4767
  %v5470 = vpack.c.b16 %v4774, %v4768
  %v5471 = vpack.c.b16 %v4775, %v4769
  %v5472 = vpack.c.b16 %v4782, %v4776
  %v5473 = vpack.c.b16 %v4783, %v4777
  %v5474 = vpack.c.b16 %v4784, %v4778
  %v5475 = vpack.c.b16 %v4785, %v4779
  %v5476 = vpack.c.b16 %v4786, %v4780
  %v5477 = vpack.c.b16 %v4787, %v4781
  %v5478 = vpack.c.b16 %v4794, %v4788
  %v5479 = vpack.c.b16 %v4795, %v4789
  %v5480 = vpack.c.b16 %v4796, %v4790
  %v5481 = vpack.c.b16 %v4797, %v4791
  %v5482 = vpack.c.b16 %v4798, %v4792
  %v5483 = vpack.c.b16 %v4799, %v4793
  %v5484 = vpack.c.b16 %v4806, %v4800
  %v5485 = vpack.c.b16 %v4807, %v4801
  %v5486 = vpack.c.b16 %v4808, %v4802
  %v5487 = vpack.c.b16 %v4809, %v4803
  %v5488 = vpack.c.b16 %v4810, %v4804
  %v5489 = vpack.c.b16 %v4811, %v4805
  %v5490 = vpack.c.b16 %v4818, %v4812
  %v5491 = vpack.c.b16 %v4819, %v4813
  %v5492 = vpack.c.b16 %v4820, %v4814
  %v5493 = vpack.c.b16 %v4821, %v4815
  %v5494 = vpack.c.b16 %v4822, %v4816
  %v5495 = vpack.c.b16 %v4823, %v4817
  %v5496 = vpack.c.b16 %v4830, %v4824
  %v5497 = vpack.c.b16 %v4831, %v4825
  %v5498 = vpack.c.b16 %v4832, %v4826
  %v5499 = vpack.c.b16 %v4833, %v4827
  %v5500 = vpack.c.b16 %v4834, %v4828
  %v5501 = vpack.c.b16 %v4835, %v4829
  %v5502 = vpack.c.b16 %v4842, %v4836
  %v5503 = vpack.c.b16 %v4843, %v4837
  %v5504 = vpack.c.b16 %v4844, %v4838
  %v5505 = vpack.c.b16 %v4845, %v4839
  %v5506 = vpack.c.b16 %v4846, %v4840
  %v5507 = vpack.c.b16 %v4847, %v4841
  %v5508 = vpack.c.b16 %v4854, %v4848
  %v5509 = vpack.c.b16 %v4855, %v4849
  %v5510 = vpack.c.b16 %v4856, %v4850
  %v5511 = vpack.c.b16 %v4857, %v4851
  %v5512 = vpack.c.b16 %v4858, %v4852
  %v5513 = vpack.c.b16 %v4859, %v4853
  %v5514 = vpack.c.b16 %v4866, %v4860
  %v5515 = vpack.c.b16 %v4867, %v4861
  %v5516 = vpack.c.b16 %v4868, %v4862
  %v5517 = vpack.c.b16 %v4869, %v4863
  %v5518 = vpack.c.b16 %v4870, %v4864
  %v5519 = vpack.c.b16 %v4871, %v4865
  %v5520 = vpack.c.b16 %v4878, %v4872
  %v5521 = vpack.c.b16 %v4879, %v4873
  %v5522 = vpack.c.b16 %v4880, %v4874
  %v5523 = vpack.c.b16 %v4881, %v4875
  %v5524 = vpack.c.b16 %v4882, %v4876
  %v5525 = vpack.c.b16 %v4883, %v4877
  %v5526 = vpack.c.b16 %v4890, %v4884
  %v5527 = vpack.c.b16 %v4891, %v4885
  %v5528 = vpack.c.b16 %v4892, %v4886
  %v5529 = vpack.c.b16 %v4893, %v4887
  %v5530 = vpack.c.b16 %v4894, %v4888
  %v5531 = vpack.c.b16 %v4895, %v4889
  %v5532 = vpack.c.b16 %v4902, %v4896
  %v5533 = vpack.c.b16 %v4903, %v4897
  %v5534 = vpack.c.b16 %v4904, %v4898
  %v5535 = vpack.c.b16 %v4905, %v4899
  %v5536 = vpack.c.b16 %v4906, %v4900
  %v5537 = vpack.c.b16 %v4907, %v4901
  %v5538 = vpack.c.b16 %v4914, %v4908
  %v5539 = vpack.c.b16 %v4915, %v4909
  %v5540 = vpack.c.b16 %v4916, %v4910
  %v5541 = vpack.c.b16 %v4917, %v4911
  %v5542 = vpack.c.b16 %v4918, %v4912
  %v5543 = vpack.c.b16 %v4919, %v4913
  %v5544 = vpack.c.b16 %v4926, %v4920
  %v5545 = vpack.c.b16 %v4927, %v4921
  %v5546 = vpack.c.b16 %v4928, %v4922
  %v5547 = vpack.c.b16 %v4929, %v4923
  %v5548 = vpack.c.b16 %v4930, %v4924
  %v5549 = vpack.c.b16 %v4931, %v4925
  %v5550 = vpack.c.b16 %v4938, %v4932
  %v5551 = vpack.c.b16 %v4939, %v4933
  %v5552 = vpack.c.b16 %v4940, %v4934
  %v5553 = vpack.c.b16 %v4941, %v4935
  %v5554 = vpack.c.b16 %v4942, %v4936
  %v5555 = vpack.c.b16 %v4943, %v4937
  %v5556 = vpack.c.b16 %v4950, %v4944
  %v5557 = vpack.c.b16 %v4951, %v4945
  %v5558 = vpack.c.b16 %v4952, %v4946
  %v5559 = vpack.c.b16 %v4953, %v4947
  %v5560 = vpack.c.b16 %v4954, %v4948
  %v5561 = vpack.c.b16 %v4955, %v4949
  %v5562 = vpack.c.b16 %v4962, %v4956
  %v5563 = vpack.c.b16 %v4963, %v4957
  %v5564 = vpack.c.b16 %v4964, %v4958
  %v5565 = vpack.c.b16 %v4965, %v4959
  %v5566 = vpack.c.b16 %v4966, %v4960
  %v5567 = vpack.c.b16 %v4967, %v4961
  %v5568 = vpack.c.b16 %v4974, %v4968
  %v5569 = vpack.c.b16 %v4975, %v4969
  %v5570 = vpack.c.b16 %v4976, %v4970
  %v5571 = vpack.c.b16 %v4977, %v4971
  %v5572 = vpack.c.b16 %v4978, %v4972
  %v5573 = vpack.c.b16 %v4979, %v4973
  %v5574 = vpack.c.b16 %v4986, %v4980
  %v5575 = vpack.c.b16 %v4987, %v4981
  %v5576 = vpack.c.b16 %v4988, %v4982
  %v5577 = vpack.c.b16 %v4989, %v4983
  %v5578 = vpack.c.b16 %v4990, %v4984
  %v5579 = vpack.c.b16 %v4991, %v4985
  %v5580 = vpack.c.b16 %v4998, %v4992
  %v5581 = vpack.c.b16 %v4999, %v4993
  %v5582 = vpack.c.b16 %v5000, %v4994
  %v5583 = vpack.c.b16 %v5001, %v4995
  %v5584 = vpack.c.b16 %v5002, %v4996
  %v5585 = vpack.c.b16 %v5003, %v4997
  %v5586 = vpack.c.b16 %v5010, %v5004
  %v5587 = vpack.c.b16 %v5011, %v5005
  %v5588 = vpack.c.b16 %v5012, %v5006
  %v5589 = vpack.c.b16 %v5013, %v5007
  %v5590 = vpack.c.b16 %v5014, %v5008
  %v5591 = vpack.c.b16 %v5015, %v5009
  %v5592 = vpack.c.b16 %v5022, %v5016
  %v5593 = vpack.c.b16 %v5023, %v5017
  %v5594 = vpack.c.b16 %v5024, %v5018
  %v5595 = vpack.c.b16 %v5025, %v5019
  %v5596 = vpack.c.b16 %v5026, %v5020
  %v5597 = vpack.c.b16 %v5027, %v5021
  %v5598 = vpack.c.b16 %v5034, %v5028
  %v5599 = vpack.c.b16 %v5035, %v5029
  %v5600 = vpack.c.b16 %v5036, %v5030
  %v5601 = vpack.c.b16 %v5037, %v5031
  %v5602 = vpack.c.b16 %v5038, %v5032
  %v5603 = vpack.c.b16 %v5039, %v5033
  %v5604 = vpack.c.b16 %v5046, %v5040
  %v5605 = vpack.c.b16 %v5047, %v5041
  %v5606 = vpack.c.b16 %v5048, %v5042
  %v5607 = vpack.c.b16 %v5049, %v5043
  %v5608 = vpack.c.b16 %v5050, %v5044
  %v5609 = vpack.c.b16 %v5051, %v5045
  %v5610 = vpack.c.b16 %v5058, %v5052
  %v5611 = vpack.c.b16 %v5059, %v5053
  %v5612 = vpack.c.b16 %v5060, %v5054
  %v5613 = vpack.c.b16 %v5061, %v5055
  %v5614 = vpack.c.b16 %v5062, %v5056
  %v5615 = vpack.c.b16 %v5063, %v5057
  %v5616 = vpack.c.b16 %v5070, %v5064
  %v5617 = vpack.c.b16 %v5071, %v5065
  %v5618 = vpack.c.b16 %v5072, %v5066
  %v5619 = vpack.c.b16 %v5073, %v5067
  %v5620 = vpack.c.b16 %v5074, %v5068
  %v5621 = vpack.c.b16 %v5075, %v5069
  %v5622 = vpack.c.b16 %v5082, %v5076
  %v5623 = vpack.c.b16 %v5083, %v5077
  %v5624 = vpack.c.b16 %v5084, %v5078
  %v5625 = vpack.c.b16 %v5085, %v5079
  %v5626 = vpack.c.b16 %v5086, %v5080
  %v5627 = vpack.c.b16 %v5087, %v5081
  %v5628 = vpack.c.b16 %v5094, %v5088
  %v5629 = vpack.c.b16 %v5095, %v5089
  %v5630 = vpack.c.b16 %v5096, %v5090
  %v5631 = vpack.c.b16 %v5097, %v5091
  %v5632 = vpack.c.b16 %v5098, %v5092
  %v5633 = vpack.c.b16 %v5099, %v5093
  %v5634 = vpack.c.b16 %v5106, %v5100
  %v5635 = vpack.c.b16 %v5107, %v5101
  %v5636 = vpack.c.b16 %v5108, %v5102
  %v5637 = vpack.c.b16 %v5109, %v5103
  %v5638 = vpack.c.b16 %v5110, %v5104
  %v5639 = vpack.c.b16 %v5111, %v5105
  %v5640 = vpack.c.b16 %v5118, %v5112
  %v5641 = vpack.c.b16 %v5119, %v5113
  %v5642 = vpack.c.b16 %v5120, %v5114
  %v5643 = vpack.c.b16 %v5121, %v5115
  %v5644 = vpack.c.b16 %v5122, %v5116
  %v5645 = vpack.c.b16 %v5123, %v5117
  %v5646 = vpack.c.b16 %v5130, %v5124
  %v5647 = vpack.c.b16 %v5131, %v5125
  %v5648 = vpack.c.b16 %v5132, %v5126
  %v5649 = vpack.c.b16 %v5133, %v5127
  %v5650 = vpack.c.b16 %v5134, %v5128
  %v5651 = vpack.c.b16 %v5135, %v5129
  %v5652 = vpack.c.b16 %v5142, %v5136
  %v5653 = vpack.c.b16 %v5143, %v5137
  %v5654 = vpack.c.b16 %v5144, %v5138
  %v5655 = vpack.c.b16 %v5145, %v5139
  %v5656 = vpack.c.b16 %v5146, %v5140
  %v5657 = vpack.c.b16 %v5147, %v5141
  %v5658 = vpack.c.b16 %v5154, %v5148
  %v5659 = vpack.c.b16 %v5155, %v5149
  %v5660 = vpack.c.b16 %v5156, %v5150
  %v5661 = vpack.c.b16 %v5157, %v5151
  %v5662 = vpack.c.b16 %v5158, %v5152
  %v5663 = vpack.c.b16 %v5159, %v5153
  %v5664 = vpack.c.b16 %v5166, %v5160
  %v5665 = vpack.c.b16 %v5167, %v5161
  %v5666 = vpack.c.b16 %v5168, %v5162
  %v5667 = vpack.c.b16 %v5169, %v5163
  %v5668 = vpack.c.b16 %v5170, %v5164
  %v5669 = vpack.c.b16 %v5171, %v5165
  %v5670 = vpack.c.b16 %v5178, %v5172
  %v5671 = vpack.c.b16 %v5179, %v5173
  %v5672 = vpack.c.b16 %v5180, %v5174
  %v5673 = vpack.c.b16 %v5181, %v5175
  %v5674 = vpack.c.b16 %v5182, %v5176
  %v5675 = vpack.c.b16 %v5183, %v5177
  %v5676 = vpack.c.b16 %v5190, %v5184
  %v5677 = vpack.c.b16 %v5191, %v5185
  %v5678 = vpack.c.b16 %v5192, %v5186
  %v5679 = vpack.c.b16 %v5193, %v5187
  %v5680 = vpack.c.b16 %v5194, %v5188
  %v5681 = vpack.c.b16 %v5195, %v5189
  %v5682 = vpack.c.b16 %v5202, %v5196
  %v5683 = vpack.c.b16 %v5203, %v5197
  %v5684 = vpack.c.b16 %v5204, %v5198
  %v5685 = vpack.c.b16 %v5205, %v5199
  %v5686 = vpack.c.b16 %v5206, %v5200
  %v5687 = vpack.c.b16 %v5207, %v5201
  %v5688 = vpack.c.b16 %v5214, %v5208
  %v5689 = vpack.c.b16 %v5215, %v5209
  %v5690 = vpack.c.b16 %v5216, %v5210
  %v5691 = vpack.c.b16 %v5217, %v5211
  %v5692 = vpack.c.b16 %v5218, %v5212
  %v5693 = vpack.c.b16 %v5219, %v5213
  %v5694 = vpack.c.b16 %v5226, %v5220
  %v5695 = vpack.c.b16 %v5227, %v5221
  %v5696 = vpack.c.b16 %v5228, %v5222
  %v5697 = vpack.c.b16 %v5229, %v5223
  %v5698 = vpack.c.b16 %v5230, %v5224
  %v5699 = vpack.c.b16 %v5231, %v5225
  %v5700 = vpack.c.b16 %v5238, %v5232
  %v5701 = vpack.c.b16 %v5239, %v5233
  %v5702 = vpack.c.b16 %v5240, %v5234
  %v5703 = vpack.c.b16 %v5241, %v5235
  %v5704 = vpack.c.b16 %v5242, %v5236
  %v5705 = vpack.c.b16 %v5243, %v5237
  %v5706 = vpack.c.b16 %v5250, %v5244
  %v5707 = vpack.c.b16 %v5251, %v5245
  %v5708 = vpack.c.b16 %v5252, %v5246
  %v5709 = vpack.c.b16 %v5253, %v5247
  %v5710 = vpack.c.b16 %v5254, %v5248
  %v5711 = vpack.c.b16 %v5255, %v5249
  %v5712 = vpack.c.b16 %v5262, %v5256
  %v5713 = vpack.c.b16 %v5263, %v5257
  %v5714 = vpack.c.b16 %v5264, %v5258
  %v5715 = vpack.c.b16 %v5265, %v5259
  %v5716 = vpack.c.b16 %v5266, %v5260
  %v5717 = vpack.c.b16 %v5267, %v5261
  %v5718 = vpack.c.b16 %v5274, %v5268
  %v5719 = vpack.c.b16 %v5275, %v5269
  %v5720 = vpack.c.b16 %v5276, %v5270
  %v5721 = vpack.c.b16 %v5277, %v5271
  %v5722 = vpack.c.b16 %v5278, %v5272
  %v5723 = vpack.c.b16 %v5279, %v5273
  %v5724 = vpack.c.b16 %v5286, %v5280
  %v5725 = vpack.c.b16 %v5287, %v5281
  %v5726 = vpack.c.b16 %v5288, %v5282
  %v5727 = vpack.c.b16 %v5289, %v5283
  %v5728 = vpack.c.b16 %v5290, %v5284
  %v5729 = vpack.c.b16 %v5291, %v5285
  %v5730 = vpack.c.b16 %v5298, %v5292
  %v5731 = vpack.c.b16 %v5299, %v5293
  %v5732 = vpack.c.b16 %v5300, %v5294
  %v5733 = vpack.c.b16 %v5301, %v5295
  %v5734 = vpack.c.b16 %v5302, %v5296
  %v5735 = vpack.c.b16 %v5303, %v5297
  %v5736 = vpack.c.b16 %v5310, %v5304
  %v5737 = vpack.c.b16 %v5311, %v5305
  %v5738 = vpack.c.b16 %v5312, %v5306
  %v5739 = vpack.c.b16 %v5313, %v5307
  %v5740 = vpack.c.b16 %v5314, %v5308
  %v5741 = vpack.c.b16 %v5315, %v5309
  %v5742 = vpack.c.b16 %v5322, %v5316
  %v5743 = vpack.c.b16 %v5323, %v5317
  %v5744 = vpack.c.b16 %v5324, %v5318
  %v5745 = vpack.c.b16 %v5325, %v5319
  %v5746 = vpack.c.b16 %v5326, %v5320
  %v5747 = vpack.c.b16 %v5327, %v5321
  %v5748 = vpack.c.b16 %v5334, %v5328
  %v5749 = vpack.c.b16 %v5335, %v5329
  %v5750 = vpack.c.b16 %v5336, %v5330
  %v5751 = vpack.c.b16 %v5337, %v5331
  %v5752 = vpack.c.b16 %v5338, %v5332
  %v5753 = vpack.c.b16 %v5339, %v5333
  %v5754 = vpack.c.b16 %v5346, %v5340
  %v5755 = vpack.c.b16 %v5347, %v5341
  %v5756 = vpack.c.b16 %v5348, %v5342
  %v5757 = vpack.c.b16 %v5349, %v5343
  %v5758 = vpack.c.b16 %v5350, %v5344
  %v5759 = vpack.c.b16 %v5351, %v5345
  %v5760 = vpack.c.b16 %v5358, %v5352
  %v5761 = vpack.c.b16 %v5359, %v5353
  %v5762 = vpack.c.b16 %v5360, %v5354
  %v5763 = vpack.c.b16 %v5361, %v5355
  %v5764 = vpack.c.b16 %v5362, %v5356
  %v5765 = vpack.c.b16 %v5363, %v5357
  %v5766 = vpack.c.b16 %v5370, %v5364
  %v5767 = vpack.c.b16 %v5371, %v5365
  %v5768 = vpack.c.b16 %v5372, %v5366
  %v5769 = vpack.c.b16 %v5373, %v5367
  %v5770 = vpack.c.b16 %v5374, %v5368
  %v5771 = vpack.c.b16 %v5375, %v5369
  %v5772 = vpack.c.b16 %v5382, %v5376
  %v5773 = vpack.c.b16 %v5383, %v5377
  %v5774 = vpack.c.b16 %v5384, %v5378
  %v5775 = vpack.c.b16 %v5385, %v5379
  %v5776 = vpack.c.b16 %v5386, %v5380
  %v5777 = vpack.c.b16 %v5387, %v5381
  %v5778 = vpack.c.b16 %v5394, %v5388
  %v5779 = vpack.c.b16 %v5395, %v5389
  %v5780 = vpack.c.b16 %v5396, %v5390
  %v5781 = vpack.c.b16 %v5397, %v5391
  %v5782 = vpack.c.b16 %v5398, %v5392
  %v5783 = vpack.c.b16 %v5399, %v5393
  %6168 = vmatprep.subr.bf16.mxu0 %v5401
  %6169 = vmatpush1.bf16.msra.mxu0 %v5400
  %6170 = vmatprep.subr.bf16.mxu0 %v5407
  %6171 = vmatpush1.bf16.msra.mxu0 %v5406
  %6172 = vmatprep.subr.bf16.mxu0 %v5413
  %6173 = vmatpush1.bf16.msra.mxu0 %v5412
  %6174 = vmatprep.subr.bf16.mxu0 %v5419
  %6175 = vmatpush1.bf16.msra.mxu0 %v5418
  %6176 = vmatprep.subr.bf16.mxu0 %v5425
  %6177 = vmatpush1.bf16.msra.mxu0 %v5424
  %6178 = vmatprep.subr.bf16.mxu0 %v5431
  %6179 = vmatpush1.bf16.msra.mxu0 %v5430
  %6180 = vmatprep.subr.bf16.mxu0 %v5437
  %6181 = vmatpush1.bf16.msra.mxu0 %v5436
  %6182 = vmatprep.subr.bf16.mxu0 %v5443
  %6183 = vmatpush1.bf16.msra.mxu0 %v5442
  %6184 = vmatprep.subr.bf16.mxu0 %v5449
  %6185 = vmatpush1.bf16.msra.mxu0 %v5448
  %6186 = vmatprep.subr.bf16.mxu0 %v5455
  %6187 = vmatpush1.bf16.msra.mxu0 %v5454
  %6188 = vmatprep.subr.bf16.mxu0 %v5461
  %6189 = vmatpush1.bf16.msra.mxu0 %v5460
  %6190 = vmatprep.subr.bf16.mxu0 %v5467
  %6191 = vmatpush1.bf16.msra.mxu0 %v5466
  %6192 = vmatprep.subr.bf16.mxu0 %v5473
  %6193 = vmatpush1.bf16.msra.mxu0 %v5472
  %6194 = vmatprep.subr.bf16.mxu0 %v5479
  %6195 = vmatpush1.bf16.msra.mxu0 %v5478
  %6196 = vmatprep.subr.bf16.mxu0 %v5485
  %6197 = vmatpush1.bf16.msra.mxu0 %v5484
  %6198 = vmatprep.subr.bf16.mxu0 %v5491
  %6199 = vmatpush1.bf16.msra.mxu0 %v5490
  %6200 = vmatprep.mubr.bf16.mxu0 %v3825
  %6201 = vmatmul.mubr.bf16.gmra.mrb[0].mxu0 %v3824
  %v6202 = vpop.f32.mrb[0].mxu0
  %v6203 = vadd.f32 %v4221, %v6202
  %v6204 = vpop.f32.mrb[0].mxu0
  %v6205 = vadd.f32 %v4225, %v6204
  %v6206 = vpop.f32.mrb[0].mxu0
  %v6207 = vpop.f32.mrb[0].mxu0
  %6208 = vdwg.mxu0
  %6209 = vmatprep.subr.bf16.mxu0 %v5497
  %6210 = vmatpush1.bf16.msra.mxu0 %v5496
  %6211 = vmatprep.subr.bf16.mxu0 %v5503
  %6212 = vmatpush1.bf16.msra.mxu0 %v5502
  %6213 = vmatprep.subr.bf16.mxu0 %v5509
  %6214 = vmatpush1.bf16.msra.mxu0 %v5508
  %6215 = vmatprep.subr.bf16.mxu0 %v5515
  %6216 = vmatpush1.bf16.msra.mxu0 %v5514
  %6217 = vmatprep.subr.bf16.mxu0 %v5521
  %6218 = vmatpush1.bf16.msra.mxu0 %v5520
  %6219 = vmatprep.subr.bf16.mxu0 %v5527
  %6220 = vmatpush1.bf16.msra.mxu0 %v5526
  %6221 = vmatprep.subr.bf16.mxu0 %v5533
  %6222 = vmatpush1.bf16.msra.mxu0 %v5532
  %6223 = vmatprep.subr.bf16.mxu0 %v5539
  %6224 = vmatpush1.bf16.msra.mxu0 %v5538
  %6225 = vmatprep.subr.bf16.mxu0 %v5545
  %6226 = vmatpush1.bf16.msra.mxu0 %v5544
  %6227 = vmatprep.subr.bf16.mxu0 %v5551
  %6228 = vmatpush1.bf16.msra.mxu0 %v5550
  %6229 = vmatprep.subr.bf16.mxu0 %v5557
  %6230 = vmatpush1.bf16.msra.mxu0 %v5556
  %6231 = vmatprep.subr.bf16.mxu0 %v5563
  %6232 = vmatpush1.bf16.msra.mxu0 %v5562
  %6233 = vmatprep.subr.bf16.mxu0 %v5569
  %6234 = vmatpush1.bf16.msra.mxu0 %v5568
  %6235 = vmatprep.subr.bf16.mxu0 %v5575
  %6236 = vmatpush1.bf16.msra.mxu0 %v5574
  %6237 = vmatprep.subr.bf16.mxu0 %v5581
  %6238 = vmatpush1.bf16.msra.mxu0 %v5580
  %6239 = vmatprep.subr.bf16.mxu0 %v5587
  %6240 = vmatpush1.bf16.msra.mxu0 %v5586
  %6241 = vmatprep.mubr.bf16.mxu0 %v3827
  %6242 = vmatmul.mubr.bf16.gmra.mrb[0].mxu0 %v3826
  %v6243 = vpop.f32.mrb[0].mxu0
  %v6244 = vadd.f32 %v6203, %v6243
  %v6245 = vpop.f32.mrb[0].mxu0
  %v6246 = vadd.f32 %v6205, %v6245
  %v6247 = vpop.f32.mrb[0].mxu0
  %v6248 = vpop.f32.mrb[0].mxu0
  %6249 = vdwg.mxu0
  %6250 = vmatprep.subr.bf16.mxu0 %v5593
  %6251 = vmatpush1.bf16.msra.mxu0 %v5592
  %6252 = vmatprep.subr.bf16.mxu0 %v5599
  %6253 = vmatpush1.bf16.msra.mxu0 %v5598
  %6254 = vmatprep.subr.bf16.mxu0 %v5605
  %6255 = vmatpush1.bf16.msra.mxu0 %v5604
  %6256 = vmatprep.subr.bf16.mxu0 %v5611
  %6257 = vmatpush1.bf16.msra.mxu0 %v5610
  %6258 = vmatprep.subr.bf16.mxu0 %v5617
  %6259 = vmatpush1.bf16.msra.mxu0 %v5616
  %6260 = vmatprep.subr.bf16.mxu0 %v5623
  %6261 = vmatpush1.bf16.msra.mxu0 %v5622
  %6262 = vmatprep.subr.bf16.mxu0 %v5629
  %6263 = vmatpush1.bf16.msra.mxu0 %v5628
  %6264 = vmatprep.subr.bf16.mxu0 %v5635
  %6265 = vmatpush1.bf16.msra.mxu0 %v5634
  %6266 = vmatprep.subr.bf16.mxu0 %v5641
  %6267 = vmatpush1.bf16.msra.mxu0 %v5640
  %6268 = vmatprep.subr.bf16.mxu0 %v5647
  %6269 = vmatpush1.bf16.msra.mxu0 %v5646
  %6270 = vmatprep.subr.bf16.mxu0 %v5653
  %6271 = vmatpush1.bf16.msra.mxu0 %v5652
  %6272 = vmatprep.subr.bf16.mxu0 %v5659
  %6273 = vmatpush1.bf16.msra.mxu0 %v5658
  %6274 = vmatprep.subr.bf16.mxu0 %v5665
  %6275 = vmatpush1.bf16.msra.mxu0 %v5664
  %6276 = vmatprep.subr.bf16.mxu0 %v5671
  %6277 = vmatpush1.bf16.msra.mxu0 %v5670
  %6278 = vmatprep.subr.bf16.mxu0 %v5677
  %6279 = vmatpush1.bf16.msra.mxu0 %v5676
  %6280 = vmatprep.subr.bf16.mxu0 %v5683
  %6281 = vmatpush1.bf16.msra.mxu0 %v5682
  %6282 = vmatprep.mubr.bf16.mxu0 %v3829
  %6283 = vmatmul.mubr.bf16.gmra.mrb[0].mxu0 %v3828
  %v6284 = vpop.f32.mrb[0].mxu0
  %v6285 = vadd.f32 %v6244, %v6284
  %v6286 = vpop.f32.mrb[0].mxu0
  %v6287 = vadd.f32 %v6246, %v6286
  %v6288 = vpop.f32.mrb[0].mxu0
  %v6289 = vpop.f32.mrb[0].mxu0
  %6290 = vdwg.mxu0
  %6291 = vmatprep.subr.bf16.mxu0 %v5689
  %6292 = vmatpush1.bf16.msra.mxu0 %v5688
  %6293 = vmatprep.subr.bf16.mxu0 %v5695
  %6294 = vmatpush1.bf16.msra.mxu0 %v5694
  %6295 = vmatprep.subr.bf16.mxu0 %v5701
  %6296 = vmatpush1.bf16.msra.mxu0 %v5700
  %6297 = vmatprep.subr.bf16.mxu0 %v5707
  %6298 = vmatpush1.bf16.msra.mxu0 %v5706
  %6299 = vmatprep.subr.bf16.mxu0 %v5713
  %6300 = vmatpush1.bf16.msra.mxu0 %v5712
  %6301 = vmatprep.subr.bf16.mxu0 %v5719
  %6302 = vmatpush1.bf16.msra.mxu0 %v5718
  %6303 = vmatprep.subr.bf16.mxu0 %v5725
  %6304 = vmatpush1.bf16.msra.mxu0 %v5724
  %6305 = vmatprep.subr.bf16.mxu0 %v5731
  %6306 = vmatpush1.bf16.msra.mxu0 %v5730
  %6307 = vmatprep.subr.bf16.mxu0 %v5737
  %6308 = vmatpush1.bf16.msra.mxu0 %v5736
  %6309 = vmatprep.subr.bf16.mxu0 %v5743
  %6310 = vmatpush1.bf16.msra.mxu0 %v5742
  %6311 = vmatprep.subr.bf16.mxu0 %v5749
  %6312 = vmatpush1.bf16.msra.mxu0 %v5748
  %6313 = vmatprep.subr.bf16.mxu0 %v5755
  %6314 = vmatpush1.bf16.msra.mxu0 %v5754
  %6315 = vmatprep.subr.bf16.mxu0 %v5761
  %6316 = vmatpush1.bf16.msra.mxu0 %v5760
  %6317 = vmatprep.subr.bf16.mxu0 %v5767
  %6318 = vmatpush1.bf16.msra.mxu0 %v5766
  %6319 = vmatprep.subr.bf16.mxu0 %v5773
  %6320 = vmatpush1.bf16.msra.mxu0 %v5772
  %6321 = vmatprep.subr.bf16.mxu0 %v5779
  %6322 = vmatpush1.bf16.msra.mxu0 %v5778
  %6323 = vmatprep.mubr.bf16.mxu0 %v3831
  %6324 = vmatmul.mubr.bf16.gmra.mrb[0].mxu0 %v3830
  %v6325 = vpop.f32.mrb[0].mxu0
  %v6326 = vadd.f32 %v6285, %v6325
  %v6327 = vpop.f32.mrb[0].mxu0
  %v6328 = vadd.f32 %v6287, %v6327
  %v6329 = vpop.f32.mrb[0].mxu0
  %v6330 = vpop.f32.mrb[0].mxu0
  %6331 = vdwg.mxu0
  %6332 = vmatprep.subr.bf16.mxu0 %v5403
  %6333 = vmatpush1.bf16.msra.mxu0 %v5402
  %6334 = vmatprep.subr.bf16.mxu0 %v5409
  %6335 = vmatpush1.bf16.msra.mxu0 %v5408
  %6336 = vmatprep.subr.bf16.mxu0 %v5415
  %6337 = vmatpush1.bf16.msra.mxu0 %v5414
  %6338 = vmatprep.subr.bf16.mxu0 %v5421
  %6339 = vmatpush1.bf16.msra.mxu0 %v5420
  %6340 = vmatprep.subr.bf16.mxu0 %v5427
  %6341 = vmatpush1.bf16.msra.mxu0 %v5426
  %6342 = vmatprep.subr.bf16.mxu0 %v5433
  %6343 = vmatpush1.bf16.msra.mxu0 %v5432
  %6344 = vmatprep.subr.bf16.mxu0 %v5439
  %6345 = vmatpush1.bf16.msra.mxu0 %v5438
  %6346 = vmatprep.subr.bf16.mxu0 %v5445
  %6347 = vmatpush1.bf16.msra.mxu0 %v5444
  %6348 = vmatprep.subr.bf16.mxu0 %v5451
  %6349 = vmatpush1.bf16.msra.mxu0 %v5450
  %6350 = vmatprep.subr.bf16.mxu0 %v5457
  %6351 = vmatpush1.bf16.msra.mxu0 %v5456
  %6352 = vmatprep.subr.bf16.mxu0 %v5463
  %6353 = vmatpush1.bf16.msra.mxu0 %v5462
  %6354 = vmatprep.subr.bf16.mxu0 %v5469
  %6355 = vmatpush1.bf16.msra.mxu0 %v5468
  %6356 = vmatprep.subr.bf16.mxu0 %v5475
  %6357 = vmatpush1.bf16.msra.mxu0 %v5474
  %6358 = vmatprep.subr.bf16.mxu0 %v5481
  %6359 = vmatpush1.bf16.msra.mxu0 %v5480
  %6360 = vmatprep.subr.bf16.mxu0 %v5487
  %6361 = vmatpush1.bf16.msra.mxu0 %v5486
  %6362 = vmatprep.subr.bf16.mxu0 %v5493
  %6363 = vmatpush1.bf16.msra.mxu0 %v5492
  %6364 = vmatprep.mubr.bf16.mxu0 %v3825
  %6365 = vmatmul.mubr.bf16.gmra.mrb[0].mxu0 %v3824
  %v6366 = vpop.f32.mrb[0].mxu0
  %v6367 = vadd.f32 %v4229, %v6366
  %v6368 = vpop.f32.mrb[0].mxu0
  %v6369 = vadd.f32 %v4233, %v6368
  %v6370 = vpop.f32.mrb[0].mxu0
  %v6371 = vpop.f32.mrb[0].mxu0
  %6372 = vdwg.mxu0
  %6373 = vmatprep.subr.bf16.mxu0 %v5499
  %6374 = vmatpush1.bf16.msra.mxu0 %v5498
  %6375 = vmatprep.subr.bf16.mxu0 %v5505
  %6376 = vmatpush1.bf16.msra.mxu0 %v5504
  %6377 = vmatprep.subr.bf16.mxu0 %v5511
  %6378 = vmatpush1.bf16.msra.mxu0 %v5510
  %6379 = vmatprep.subr.bf16.mxu0 %v5517
  %6380 = vmatpush1.bf16.msra.mxu0 %v5516
  %6381 = vmatprep.subr.bf16.mxu0 %v5523
  %6382 = vmatpush1.bf16.msra.mxu0 %v5522
  %6383 = vmatprep.subr.bf16.mxu0 %v5529
  %6384 = vmatpush1.bf16.msra.mxu0 %v5528
  %6385 = vmatprep.subr.bf16.mxu0 %v5535
  %6386 = vmatpush1.bf16.msra.mxu0 %v5534
  %6387 = vmatprep.subr.bf16.mxu0 %v5541
  %6388 = vmatpush1.bf16.msra.mxu0 %v5540
  %6389 = vmatprep.subr.bf16.mxu0 %v5547
  %6390 = vmatpush1.bf16.msra.mxu0 %v5546
  %6391 = vmatprep.subr.bf16.mxu0 %v5553
  %6392 = vmatpush1.bf16.msra.mxu0 %v5552
  %6393 = vmatprep.subr.bf16.mxu0 %v5559
  %6394 = vmatpush1.bf16.msra.mxu0 %v5558
  %6395 = vmatprep.subr.bf16.mxu0 %v5565
  %6396 = vmatpush1.bf16.msra.mxu0 %v5564
  %6397 = vmatprep.subr.bf16.mxu0 %v5571
  %6398 = vmatpush1.bf16.msra.mxu0 %v5570
  %6399 = vmatprep.subr.bf16.mxu0 %v5577
  %6400 = vmatpush1.bf16.msra.mxu0 %v5576
  %6401 = vmatprep.subr.bf16.mxu0 %v5583
  %6402 = vmatpush1.bf16.msra.mxu0 %v5582
  %6403 = vmatprep.subr.bf16.mxu0 %v5589
  %6404 = vmatpush1.bf16.msra.mxu0 %v5588
  %6405 = vmatprep.mubr.bf16.mxu0 %v3827
  %6406 = vmatmul.mubr.bf16.gmra.mrb[0].mxu0 %v3826
  %v6407 = vpop.f32.mrb[0].mxu0
  %v6408 = vadd.f32 %v6367, %v6407
  %v6409 = vpop.f32.mrb[0].mxu0
  %v6410 = vadd.f32 %v6369, %v6409
  %v6411 = vpop.f32.mrb[0].mxu0
  %v6412 = vpop.f32.mrb[0].mxu0
  %6413 = vdwg.mxu0
  %6414 = vmatprep.subr.bf16.mxu0 %v5595
  %6415 = vmatpush1.bf16.msra.mxu0 %v5594
  %6416 = vmatprep.subr.bf16.mxu0 %v5601
  %6417 = vmatpush1.bf16.msra.mxu0 %v5600
  %6418 = vmatprep.subr.bf16.mxu0 %v5607
  %6419 = vmatpush1.bf16.msra.mxu0 %v5606
  %6420 = vmatprep.subr.bf16.mxu0 %v5613
  %6421 = vmatpush1.bf16.msra.mxu0 %v5612
  %6422 = vmatprep.subr.bf16.mxu0 %v5619
  %6423 = vmatpush1.bf16.msra.mxu0 %v5618
  %6424 = vmatprep.subr.bf16.mxu0 %v5625
  %6425 = vmatpush1.bf16.msra.mxu0 %v5624
  %6426 = vmatprep.subr.bf16.mxu0 %v5631
  %6427 = vmatpush1.bf16.msra.mxu0 %v5630
  %6428 = vmatprep.subr.bf16.mxu0 %v5637
  %6429 = vmatpush1.bf16.msra.mxu0 %v5636
  %6430 = vmatprep.subr.bf16.mxu0 %v5643
  %6431 = vmatpush1.bf16.msra.mxu0 %v5642
  %6432 = vmatprep.subr.bf16.mxu0 %v5649
  %6433 = vmatpush1.bf16.msra.mxu0 %v5648
  %6434 = vmatprep.subr.bf16.mxu0 %v5655
  %6435 = vmatpush1.bf16.msra.mxu0 %v5654
  %6436 = vmatprep.subr.bf16.mxu0 %v5661
  %6437 = vmatpush1.bf16.msra.mxu0 %v5660
  %6438 = vmatprep.subr.bf16.mxu0 %v5667
  %6439 = vmatpush1.bf16.msra.mxu0 %v5666
  %6440 = vmatprep.subr.bf16.mxu0 %v5673
  %6441 = vmatpush1.bf16.msra.mxu0 %v5672
  %6442 = vmatprep.subr.bf16.mxu0 %v5679
  %6443 = vmatpush1.bf16.msra.mxu0 %v5678
  %6444 = vmatprep.subr.bf16.mxu0 %v5685
  %6445 = vmatpush1.bf16.msra.mxu0 %v5684
  %6446 = vmatprep.mubr.bf16.mxu0 %v3829
  %6447 = vmatmul.mubr.bf16.gmra.mrb[0].mxu0 %v3828
  %v6448 = vpop.f32.mrb[0].mxu0
  %v6449 = vadd.f32 %v6408, %v6448
  %v6450 = vpop.f32.mrb[0].mxu0
  %v6451 = vadd.f32 %v6410, %v6450
  %v6452 = vpop.f32.mrb[0].mxu0
  %v6453 = vpop.f32.mrb[0].mxu0
  %6454 = vdwg.mxu0
  %6455 = vmatprep.subr.bf16.mxu0 %v5691
  %6456 = vmatpush1.bf16.msra.mxu0 %v5690
  %6457 = vmatprep.subr.bf16.mxu0 %v5697
  %6458 = vmatpush1.bf16.msra.mxu0 %v5696
  %6459 = vmatprep.subr.bf16.mxu0 %v5703
  %6460 = vmatpush1.bf16.msra.mxu0 %v5702
  %6461 = vmatprep.subr.bf16.mxu0 %v5709
  %6462 = vmatpush1.bf16.msra.mxu0 %v5708
  %6463 = vmatprep.subr.bf16.mxu0 %v5715
  %6464 = vmatpush1.bf16.msra.mxu0 %v5714
  %6465 = vmatprep.subr.bf16.mxu0 %v5721
  %6466 = vmatpush1.bf16.msra.mxu0 %v5720
  %6467 = vmatprep.subr.bf16.mxu0 %v5727
  %6468 = vmatpush1.bf16.msra.mxu0 %v5726
  %6469 = vmatprep.subr.bf16.mxu0 %v5733
  %6470 = vmatpush1.bf16.msra.mxu0 %v5732
  %6471 = vmatprep.subr.bf16.mxu0 %v5739
  %6472 = vmatpush1.bf16.msra.mxu0 %v5738
  %6473 = vmatprep.subr.bf16.mxu0 %v5745
  %6474 = vmatpush1.bf16.msra.mxu0 %v5744
  %6475 = vmatprep.subr.bf16.mxu0 %v5751
  %6476 = vmatpush1.bf16.msra.mxu0 %v5750
  %6477 = vmatprep.subr.bf16.mxu0 %v5757
  %6478 = vmatpush1.bf16.msra.mxu0 %v5756
  %6479 = vmatprep.subr.bf16.mxu0 %v5763
  %6480 = vmatpush1.bf16.msra.mxu0 %v5762
  %6481 = vmatprep.subr.bf16.mxu0 %v5769
  %6482 = vmatpush1.bf16.msra.mxu0 %v5768
  %6483 = vmatprep.subr.bf16.mxu0 %v5775
  %6484 = vmatpush1.bf16.msra.mxu0 %v5774
  %6485 = vmatprep.subr.bf16.mxu0 %v5781
  %6486 = vmatpush1.bf16.msra.mxu0 %v5780
  %6487 = vmatprep.mubr.bf16.mxu0 %v3831
  %6488 = vmatmul.mubr.bf16.gmra.mrb[0].mxu0 %v3830
  %v6489 = vpop.f32.mrb[0].mxu0
  %v6490 = vadd.f32 %v6449, %v6489
  %v6491 = vpop.f32.mrb[0].mxu0
  %v6492 = vadd.f32 %v6451, %v6491
  %v6493 = vpop.f32.mrb[0].mxu0
  %v6494 = vpop.f32.mrb[0].mxu0
  %6495 = vdwg.mxu0
  %6496 = vmatprep.subr.bf16.mxu0 %v5405
  %6497 = vmatpush1.bf16.msra.mxu0 %v5404
  %6498 = vmatprep.subr.bf16.mxu0 %v5411
  %6499 = vmatpush1.bf16.msra.mxu0 %v5410
  %6500 = vmatprep.subr.bf16.mxu0 %v5417
  %6501 = vmatpush1.bf16.msra.mxu0 %v5416
  %6502 = vmatprep.subr.bf16.mxu0 %v5423
  %6503 = vmatpush1.bf16.msra.mxu0 %v5422
  %6504 = vmatprep.subr.bf16.mxu0 %v5429
  %6505 = vmatpush1.bf16.msra.mxu0 %v5428
  %6506 = vmatprep.subr.bf16.mxu0 %v5435
  %6507 = vmatpush1.bf16.msra.mxu0 %v5434
  %6508 = vmatprep.subr.bf16.mxu0 %v5441
  %6509 = vmatpush1.bf16.msra.mxu0 %v5440
  %6510 = vmatprep.subr.bf16.mxu0 %v5447
  %6511 = vmatpush1.bf16.msra.mxu0 %v5446
  %6512 = vmatprep.subr.bf16.mxu0 %v5453
  %6513 = vmatpush1.bf16.msra.mxu0 %v5452
  %6514 = vmatprep.subr.bf16.mxu0 %v5459
  %6515 = vmatpush1.bf16.msra.mxu0 %v5458
  %6516 = vmatprep.subr.bf16.mxu0 %v5465
  %6517 = vmatpush1.bf16.msra.mxu0 %v5464
  %6518 = vmatprep.subr.bf16.mxu0 %v5471
  %6519 = vmatpush1.bf16.msra.mxu0 %v5470
  %6520 = vmatprep.subr.bf16.mxu0 %v5477
  %6521 = vmatpush1.bf16.msra.mxu0 %v5476
  %6522 = vmatprep.subr.bf16.mxu0 %v5483
  %6523 = vmatpush1.bf16.msra.mxu0 %v5482
  %6524 = vmatprep.subr.bf16.mxu0 %v5489
  %6525 = vmatpush1.bf16.msra.mxu0 %v5488
  %6526 = vmatprep.subr.bf16.mxu0 %v5495
  %6527 = vmatpush1.bf16.msra.mxu0 %v5494
  %6528 = vmatprep.mubr.bf16.mxu0 %v3825
  %6529 = vmatmul.mubr.bf16.gmra.mrb[0].mxu0 %v3824
  %v6530 = vpop.f32.mrb[0].mxu0
  %v6531 = vadd.f32 %v4237, %v6530
  %v6532 = vpop.f32.mrb[0].mxu0
  %v6533 = vadd.f32 %v4241, %v6532
  %v6534 = vpop.f32.mrb[0].mxu0
  %v6535 = vpop.f32.mrb[0].mxu0
  %6536 = vdwg.mxu0
  %6537 = vmatprep.subr.bf16.mxu0 %v5501
  %6538 = vmatpush1.bf16.msra.mxu0 %v5500
  %6539 = vmatprep.subr.bf16.mxu0 %v5507
  %6540 = vmatpush1.bf16.msra.mxu0 %v5506
  %6541 = vmatprep.subr.bf16.mxu0 %v5513
  %6542 = vmatpush1.bf16.msra.mxu0 %v5512
  %6543 = vmatprep.subr.bf16.mxu0 %v5519
  %6544 = vmatpush1.bf16.msra.mxu0 %v5518
  %6545 = vmatprep.subr.bf16.mxu0 %v5525
  %6546 = vmatpush1.bf16.msra.mxu0 %v5524
  %6547 = vmatprep.subr.bf16.mxu0 %v5531
  %6548 = vmatpush1.bf16.msra.mxu0 %v5530
  %6549 = vmatprep.subr.bf16.mxu0 %v5537
  %6550 = vmatpush1.bf16.msra.mxu0 %v5536
  %6551 = vmatprep.subr.bf16.mxu0 %v5543
  %6552 = vmatpush1.bf16.msra.mxu0 %v5542
  %6553 = vmatprep.subr.bf16.mxu0 %v5549
  %6554 = vmatpush1.bf16.msra.mxu0 %v5548
  %6555 = vmatprep.subr.bf16.mxu0 %v5555
  %6556 = vmatpush1.bf16.msra.mxu0 %v5554
  %6557 = vmatprep.subr.bf16.mxu0 %v5561
  %6558 = vmatpush1.bf16.msra.mxu0 %v5560
  %6559 = vmatprep.subr.bf16.mxu0 %v5567
  %6560 = vmatpush1.bf16.msra.mxu0 %v5566
  %6561 = vmatprep.subr.bf16.mxu0 %v5573
  %6562 = vmatpush1.bf16.msra.mxu0 %v5572
  %6563 = vmatprep.subr.bf16.mxu0 %v5579
  %6564 = vmatpush1.bf16.msra.mxu0 %v5578
  %6565 = vmatprep.subr.bf16.mxu0 %v5585
  %6566 = vmatpush1.bf16.msra.mxu0 %v5584
  %6567 = vmatprep.subr.bf16.mxu0 %v5591
  %6568 = vmatpush1.bf16.msra.mxu0 %v5590
  %6569 = vmatprep.mubr.bf16.mxu0 %v3827
  %6570 = vmatmul.mubr.bf16.gmra.mrb[0].mxu0 %v3826
  %v6571 = vpop.f32.mrb[0].mxu0
  %v6572 = vadd.f32 %v6531, %v6571
  %v6573 = vpop.f32.mrb[0].mxu0
  %v6574 = vadd.f32 %v6533, %v6573
  %v6575 = vpop.f32.mrb[0].mxu0
  %v6576 = vpop.f32.mrb[0].mxu0
  %6577 = vdwg.mxu0
  %6578 = vmatprep.subr.bf16.mxu0 %v5597
  %6579 = vmatpush1.bf16.msra.mxu0 %v5596
  %6580 = vmatprep.subr.bf16.mxu0 %v5603
  %6581 = vmatpush1.bf16.msra.mxu0 %v5602
  %6582 = vmatprep.subr.bf16.mxu0 %v5609
  %6583 = vmatpush1.bf16.msra.mxu0 %v5608
  %6584 = vmatprep.subr.bf16.mxu0 %v5615
  %6585 = vmatpush1.bf16.msra.mxu0 %v5614
  %6586 = vmatprep.subr.bf16.mxu0 %v5621
  %6587 = vmatpush1.bf16.msra.mxu0 %v5620
  %6588 = vmatprep.subr.bf16.mxu0 %v5627
  %6589 = vmatpush1.bf16.msra.mxu0 %v5626
  %6590 = vmatprep.subr.bf16.mxu0 %v5633
  %6591 = vmatpush1.bf16.msra.mxu0 %v5632
  %6592 = vmatprep.subr.bf16.mxu0 %v5639
  %6593 = vmatpush1.bf16.msra.mxu0 %v5638
  %6594 = vmatprep.subr.bf16.mxu0 %v5645
  %6595 = vmatpush1.bf16.msra.mxu0 %v5644
  %6596 = vmatprep.subr.bf16.mxu0 %v5651
  %6597 = vmatpush1.bf16.msra.mxu0 %v5650
  %6598 = vmatprep.subr.bf16.mxu0 %v5657
  %6599 = vmatpush1.bf16.msra.mxu0 %v5656
  %6600 = vmatprep.subr.bf16.mxu0 %v5663
  %6601 = vmatpush1.bf16.msra.mxu0 %v5662
  %6602 = vmatprep.subr.bf16.mxu0 %v5669
  %6603 = vmatpush1.bf16.msra.mxu0 %v5668
  %6604 = vmatprep.subr.bf16.mxu0 %v5675
  %6605 = vmatpush1.bf16.msra.mxu0 %v5674
  %6606 = vmatprep.subr.bf16.mxu0 %v5681
  %6607 = vmatpush1.bf16.msra.mxu0 %v5680
  %6608 = vmatprep.subr.bf16.mxu0 %v5687
  %6609 = vmatpush1.bf16.msra.mxu0 %v5686
  %6610 = vmatprep.mubr.bf16.mxu0 %v3829
  %6611 = vmatmul.mubr.bf16.gmra.mrb[0].mxu0 %v3828
  %v6612 = vpop.f32.mrb[0].mxu0
  %v6613 = vadd.f32 %v6572, %v6612
  %v6614 = vpop.f32.mrb[0].mxu0
  %v6615 = vadd.f32 %v6574, %v6614
  %v6616 = vpop.f32.mrb[0].mxu0
  %v6617 = vpop.f32.mrb[0].mxu0
  %6618 = vdwg.mxu0
  %6619 = vmatprep.subr.bf16.mxu0 %v5693
  %6620 = vmatpush1.bf16.msra.mxu0 %v5692
  %6621 = vmatprep.subr.bf16.mxu0 %v5699
  %6622 = vmatpush1.bf16.msra.mxu0 %v5698
  %6623 = vmatprep.subr.bf16.mxu0 %v5705
  %6624 = vmatpush1.bf16.msra.mxu0 %v5704
  %6625 = vmatprep.subr.bf16.mxu0 %v5711
  %6626 = vmatpush1.bf16.msra.mxu0 %v5710
  %6627 = vmatprep.subr.bf16.mxu0 %v5717
  %6628 = vmatpush1.bf16.msra.mxu0 %v5716
  %6629 = vmatprep.subr.bf16.mxu0 %v5723
  %6630 = vmatpush1.bf16.msra.mxu0 %v5722
  %6631 = vmatprep.subr.bf16.mxu0 %v5729
  %6632 = vmatpush1.bf16.msra.mxu0 %v5728
  %6633 = vmatprep.subr.bf16.mxu0 %v5735
  %6634 = vmatpush1.bf16.msra.mxu0 %v5734
  %6635 = vmatprep.subr.bf16.mxu0 %v5741
  %6636 = vmatpush1.bf16.msra.mxu0 %v5740
  %6637 = vmatprep.subr.bf16.mxu0 %v5747
  %6638 = vmatpush1.bf16.msra.mxu0 %v5746
  %6639 = vmatprep.subr.bf16.mxu0 %v5753
  %6640 = vmatpush1.bf16.msra.mxu0 %v5752
  %6641 = vmatprep.subr.bf16.mxu0 %v5759
  %6642 = vmatpush1.bf16.msra.mxu0 %v5758
  %6643 = vmatprep.subr.bf16.mxu0 %v5765
  %6644 = vmatpush1.bf16.msra.mxu0 %v5764
  %6645 = vmatprep.subr.bf16.mxu0 %v5771
  %6646 = vmatpush1.bf16.msra.mxu0 %v5770
  %6647 = vmatprep.subr.bf16.mxu0 %v5777
  %6648 = vmatpush1.bf16.msra.mxu0 %v5776
  %6649 = vmatprep.subr.bf16.mxu0 %v5783
  %6650 = vmatpush1.bf16.msra.mxu0 %v5782
  %6651 = vmatprep.mubr.bf16.mxu0 %v3831
  %6652 = vmatmul.mubr.bf16.gmra.mrb[0].mxu0 %v3830
  %v6653 = vpop.f32.mrb[0].mxu0
  %v6654 = vadd.f32 %v6613, %v6653
  %v6655 = vpop.f32.mrb[0].mxu0
  %v6656 = vadd.f32 %v6615, %v6655
  %v6657 = vpop.f32.mrb[0].mxu0
  %v6658 = vpop.f32.mrb[0].mxu0
  %6659 = vdwg.mxu0
  %6660 = vst [vmem:[%s19] sm:$0xff] %v6326
  %6661 = vst [vmem:[%s19 + $0x8] sm:$0xff] %v6328
  %6662 = vst [vmem:[%s19 + $0x10] sm:$0xff] %v6490
  %6663 = vst [vmem:[%s19 + $0x18] sm:$0xff] %v6492
  %6664 = vst [vmem:[%s19 + $0x20] sm:$0xff] %v6654
  %6665 = vst [vmem:[%s19 + $0x28] sm:$0xff] %v6656
  %v6666 = vld [vmem:[%s11] sm:$0xff]
  %v6667 = vld [vmem:[%s11 + $0x8] sm:$0xff]
  %v6668 = vld [vmem:[%s11 + $0x10] sm:$0xff]
  %v6669 = vld [vmem:[%s11 + $0x18] sm:$0xff]
  %v6671 = vsel %vm137, %v65, 0
  %6673 = vmatprep.subr.mxu0 0.0
  %6674 = vmatpush1.msra.mxu0 %v6666
  %6675 = vmatprep.subr.mxu0 0.0
  %6676 = vmatpush1.msra.mxu0 %v6667
  %6677 = vmatprep.subr.mxu0 0.0
  %6678 = vmatpush1.msra.mxu0 %v6668
  %6679 = vmatprep.subr.mxu0 0.0
  %6680 = vmatpush1.msra.mxu0 %v6669
  %6681 = vmatprep.subr.mxu0 0.0
  %6682 = vmatpush1.msra.mxu0 0.0
  %6683 = vmatprep.subr.mxu0 0.0
  %6684 = vmatpush1.msra.mxu0 0.0
  %6685 = vmatprep.subr.mxu0 0.0
  %6686 = vmatpush1.msra.mxu0 0.0
  %6687 = vmatprep.subr.mxu0 0.0
  %6688 = vmatpush1.msra.mxu0 0.0
  %6689 = vmatprep.subr.mxu0 0.0
  %6690 = vmatpush1.msra.mxu0 0.0
  %6691 = vmatprep.subr.mxu0 0.0
  %6692 = vmatpush1.msra.mxu0 0.0
  %6693 = vmatprep.subr.mxu0 0.0
  %6694 = vmatpush1.msra.mxu0 0.0
  %6695 = vmatprep.subr.mxu0 0.0
  %6696 = vmatpush1.msra.mxu0 0.0
  %6697 = vmatprep.subr.mxu0 0.0
  %6698 = vmatpush1.msra.mxu0 0.0
  %6699 = vmatprep.subr.mxu0 0.0
  %6700 = vmatpush1.msra.mxu0 0.0
  %6701 = vmatprep.subr.mxu0 0.0
  %6702 = vmatpush1.msra.mxu0 0.0
  %6703 = vmatprep.subr.mxu0 0.0
  %6704 = vmatpush1.msra.mxu0 0.0
  %6705 = vmatprep.subr.mxu0 0.0
  %6706 = vmatpush1.msra.mxu0 0.0
  %6707 = vmatprep.subr.mxu0 0.0
  %6708 = vmatpush1.msra.mxu0 0.0
  %6709 = vmatprep.subr.mxu0 0.0
  %6710 = vmatpush1.msra.mxu0 0.0
  %6711 = vmatprep.subr.mxu0 0.0
  %6712 = vmatpush1.msra.mxu0 0.0
  %6713 = vmatprep.subr.mxu0 0.0
  %6714 = vmatpush1.msra.mxu0 0.0
  %6715 = vmatprep.subr.mxu0 0.0
  %6716 = vmatpush1.msra.mxu0 0.0
  %6717 = vmatprep.subr.mxu0 0.0
  %6718 = vmatpush1.msra.mxu0 0.0
  %6719 = vmatprep.subr.mxu0 0.0
  %6720 = vmatpush1.msra.mxu0 0.0
  %6721 = vmatprep.subr.mxu0 0.0
  %6722 = vmatpush1.msra.mxu0 0.0
  %6723 = vmatprep.subr.mxu0 0.0
  %6724 = vmatpush1.msra.mxu0 0.0
  %6725 = vmatprep.subr.mxu0 0.0
  %6726 = vmatpush1.msra.mxu0 0.0
  %6727 = vmatprep.subr.mxu0 0.0
  %6728 = vmatpush1.msra.mxu0 0.0
  %6729 = vmatprep.subr.mxu0 0.0
  %6730 = vmatpush1.msra.mxu0 0.0
  %6731 = vmatprep.subr.mxu0 0.0
  %6732 = vmatpush1.msra.mxu0 0.0
  %6733 = vmatprep.subr.mxu0 0.0
  %6734 = vmatpush1.msra.mxu0 0.0
  %6735 = vmatprep.subr.mxu0 0.0
  %6736 = vmatpush1.msra.mxu0 0.0
  %6737 = vmatprep.mubr.f32.mxu0 0.0
  %6738 = vmatmul.mubr.f32.gmra.mrb[0].mxu0 %v6671
  %v6739 = vpop.f32.mrb[0].mxu0
  %v6740 = vadd.f32 0.0, %v6739
  %v6741 = vpop.f32.mrb[0].mxu0
  %6742 = vdwg.mxu0
  %v6743 = vld [vmem:[%s12] sm:$0x1]
  %v6744 = vld [vmem:[%s13] sm:$0x1]
  %v6745 = vsel %vm137, %v6740, 0.0
  %6746 = vadd.xlane.f32.xlu0 %v6745
  %v6747 = vpop.xlane.xlu0 %6746
  %v6748 = vrcp.pop 32.0
  %v6749 = vmul.f32 %v6747, %v6748
  %v6750 = vsub.f32 %v6740, %v6749
  %v6751 = vmul.f32 %v6750, %v6750
  %v6752 = vsel %vm137, %v6751, 0.0
  %6753 = vadd.xlane.f32.xlu0 %v6752
  %v6754 = vpop.xlane.xlu0 %6753
  %v6755 = vmul.f32 %v6754, %v6748
  %v6756 = vadd.f32 %v6755, 0.001
  %v6757 = vrsqrt.pop %v6756
  %v6758 = vmul.f32 %v6750, %v6757
  %v6760 = vlaneseq
  %v6761 = vshrl.u32 %v6760, 7
  %v6762 = vsub.s32 0, %v6761
  %v6763 = vrot.slane %v6743, %v6762
  %v6765 = vmul.f32 %v6758, %v6763
  %v6767 = vlaneseq
  %v6768 = vshrl.u32 %v6767, 7
  %v6769 = vsub.s32 0, %v6768
  %v6770 = vrot.slane %v6744, %v6769
  %v6772 = vadd.f32 %v6765, %v6770
  %v6773 = vxor.u32 %v6772, 2147483648
  %v6774 = vmul.f32 %v6773, 1.442695
  %v6775 = vpow.pop %v6774
  %v6776 = vadd.f32 %v6775, 1.0
  %v6777 = vrcp.pop %v6776
  %v6778 = vmul.f32 1.0, %v6777
  %v6779 = vmul.f32 %v6772, %v6778
  %v6780 = vld [vmem:[%s14] sm:$0xff]
  %v6781 = vld [vmem:[%s14 + $0x8] sm:$0xff]
  %v6782 = vld [vmem:[%s14 + $0x10] sm:$0xff]
  %v6783 = vld [vmem:[%s14 + $0x18] sm:$0xff]
  %v6785 = vsel %vm137, %v6779, 0
  %6787 = vmatprep.subr.mxu0 0.0
  %6788 = vmatpush1.msra.mxu0 %v6780
  %6789 = vmatprep.subr.mxu0 0.0
  %6790 = vmatpush1.msra.mxu0 %v6781
  %6791 = vmatprep.subr.mxu0 0.0
  %6792 = vmatpush1.msra.mxu0 %v6782
  %6793 = vmatprep.subr.mxu0 0.0
  %6794 = vmatpush1.msra.mxu0 %v6783
  %6795 = vmatprep.subr.mxu0 0.0
  %6796 = vmatpush1.msra.mxu0 0.0
  %6797 = vmatprep.subr.mxu0 0.0
  %6798 = vmatpush1.msra.mxu0 0.0
  %6799 = vmatprep.subr.mxu0 0.0
  %6800 = vmatpush1.msra.mxu0 0.0
  %6801 = vmatprep.subr.mxu0 0.0
  %6802 = vmatpush1.msra.mxu0 0.0
  %6803 = vmatprep.subr.mxu0 0.0
  %6804 = vmatpush1.msra.mxu0 0.0
  %6805 = vmatprep.subr.mxu0 0.0
  %6806 = vmatpush1.msra.mxu0 0.0
  %6807 = vmatprep.subr.mxu0 0.0
  %6808 = vmatpush1.msra.mxu0 0.0
  %6809 = vmatprep.subr.mxu0 0.0
  %6810 = vmatpush1.msra.mxu0 0.0
  %6811 = vmatprep.subr.mxu0 0.0
  %6812 = vmatpush1.msra.mxu0 0.0
  %6813 = vmatprep.subr.mxu0 0.0
  %6814 = vmatpush1.msra.mxu0 0.0
  %6815 = vmatprep.subr.mxu0 0.0
  %6816 = vmatpush1.msra.mxu0 0.0
  %6817 = vmatprep.subr.mxu0 0.0
  %6818 = vmatpush1.msra.mxu0 0.0
  %6819 = vmatprep.subr.mxu0 0.0
  %6820 = vmatpush1.msra.mxu0 0.0
  %6821 = vmatprep.subr.mxu0 0.0
  %6822 = vmatpush1.msra.mxu0 0.0
  %6823 = vmatprep.subr.mxu0 0.0
  %6824 = vmatpush1.msra.mxu0 0.0
  %6825 = vmatprep.subr.mxu0 0.0
  %6826 = vmatpush1.msra.mxu0 0.0
  %6827 = vmatprep.subr.mxu0 0.0
  %6828 = vmatpush1.msra.mxu0 0.0
  %6829 = vmatprep.subr.mxu0 0.0
  %6830 = vmatpush1.msra.mxu0 0.0
  %6831 = vmatprep.subr.mxu0 0.0
  %6832 = vmatpush1.msra.mxu0 0.0
  %6833 = vmatprep.subr.mxu0 0.0
  %6834 = vmatpush1.msra.mxu0 0.0
  %6835 = vmatprep.subr.mxu0 0.0
  %6836 = vmatpush1.msra.mxu0 0.0
  %6837 = vmatprep.subr.mxu0 0.0
  %6838 = vmatpush1.msra.mxu0 0.0
  %6839 = vmatprep.subr.mxu0 0.0
  %6840 = vmatpush1.msra.mxu0 0.0
  %6841 = vmatprep.subr.mxu0 0.0
  %6842 = vmatpush1.msra.mxu0 0.0
  %6843 = vmatprep.subr.mxu0 0.0
  %6844 = vmatpush1.msra.mxu0 0.0
  %6845 = vmatprep.subr.mxu0 0.0
  %6846 = vmatpush1.msra.mxu0 0.0
  %6847 = vmatprep.subr.mxu0 0.0
  %6848 = vmatpush1.msra.mxu0 0.0
  %6849 = vmatprep.subr.mxu0 0.0
  %6850 = vmatpush1.msra.mxu0 0.0
  %6851 = vmatprep.mubr.f32.mxu0 0.0
  %6852 = vmatmul.mubr.f32.gmra.mrb[0].mxu0 %v6785
  %v6853 = vpop.f32.mrb[0].mxu0
  %v6854 = vadd.f32 0.0, %v6853
  %v6855 = vpop.f32.mrb[0].mxu0
  %6856 = vdwg.mxu0
  %v6857 = vld [vmem:[%s15] sm:$0x1]
  %v6858 = vld [vmem:[%s16] sm:$0x1]
  %v6859 = vsel %vm137, %v6854, 0.0
  %6860 = vadd.xlane.f32.xlu0 %v6859
  %v6861 = vpop.xlane.xlu0 %6860
  %v6862 = vmul.f32 %v6861, %v6748
  %v6863 = vsub.f32 %v6854, %v6862
  %v6864 = vmul.f32 %v6863, %v6863
  %v6865 = vsel %vm137, %v6864, 0.0
  %6866 = vadd.xlane.f32.xlu0 %v6865
  %v6867 = vpop.xlane.xlu0 %6866
  %v6868 = vmul.f32 %v6867, %v6748
  %v6869 = vadd.f32 %v6868, 0.001
  %v6870 = vrsqrt.pop %v6869
  %v6871 = vmul.f32 %v6863, %v6870
  %v6873 = vlaneseq
  %v6874 = vshrl.u32 %v6873, 7
  %v6875 = vsub.s32 0, %v6874
  %v6876 = vrot.slane %v6857, %v6875
  %v6878 = vmul.f32 %v6871, %v6876
  %v6880 = vlaneseq
  %v6881 = vshrl.u32 %v6880, 7
  %v6882 = vsub.s32 0, %v6881
  %v6883 = vrot.slane %v6858, %v6882
  %v6885 = vadd.f32 %v6878, %v6883
  %v6886 = vxor.u32 %v6885, 2147483648
  %v6887 = vmul.f32 %v6886, 1.442695
  %v6888 = vpow.pop %v6887
  %v6889 = vadd.f32 %v6888, 1.0
  %v6890 = vrcp.pop %v6889
  %v6891 = vmul.f32 1.0, %v6890
  %v6892 = vmul.f32 %v6885, %v6891
  %v6893 = vld [vmem:[%s17] sm:$0xff]
  %v6894 = vld [vmem:[%s17 + $0x8] sm:$0xff]
  %v6895 = vld [vmem:[%s17 + $0x10] sm:$0xff]
  %v6896 = vld [vmem:[%s17 + $0x18] sm:$0xff]
  %v6897 = vld [vmem:[%s18] sm:$0x1]
  %v6899 = vlaneseq
  %v6900 = vshrl.u32 %v6899, 7
  %v6901 = vsub.s32 0, %v6900
  %v6902 = vrot.slane %v6897, %v6901
  %v6905 = vsel %vm137, %v6892, 0
  %6907 = vmatprep.subr.mxu0 0.0
  %6908 = vmatpush1.msra.mxu0 %v6893
  %6909 = vmatprep.subr.mxu0 0.0
  %6910 = vmatpush1.msra.mxu0 %v6894
  %6911 = vmatprep.subr.mxu0 0.0
  %6912 = vmatpush1.msra.mxu0 %v6895
  %6913 = vmatprep.subr.mxu0 0.0
  %6914 = vmatpush1.msra.mxu0 %v6896
  %6915 = vmatprep.subr.mxu0 0.0
  %6916 = vmatpush1.msra.mxu0 0.0
  %6917 = vmatprep.subr.mxu0 0.0
  %6918 = vmatpush1.msra.mxu0 0.0
  %6919 = vmatprep.subr.mxu0 0.0
  %6920 = vmatpush1.msra.mxu0 0.0
  %6921 = vmatprep.subr.mxu0 0.0
  %6922 = vmatpush1.msra.mxu0 0.0
  %6923 = vmatprep.subr.mxu0 0.0
  %6924 = vmatpush1.msra.mxu0 0.0
  %6925 = vmatprep.subr.mxu0 0.0
  %6926 = vmatpush1.msra.mxu0 0.0
  %6927 = vmatprep.subr.mxu0 0.0
  %6928 = vmatpush1.msra.mxu0 0.0
  %6929 = vmatprep.subr.mxu0 0.0
  %6930 = vmatpush1.msra.mxu0 0.0
  %6931 = vmatprep.subr.mxu0 0.0
  %6932 = vmatpush1.msra.mxu0 0.0
  %6933 = vmatprep.subr.mxu0 0.0
  %6934 = vmatpush1.msra.mxu0 0.0
  %6935 = vmatprep.subr.mxu0 0.0
  %6936 = vmatpush1.msra.mxu0 0.0
  %6937 = vmatprep.subr.mxu0 0.0
  %6938 = vmatpush1.msra.mxu0 0.0
  %6939 = vmatprep.subr.mxu0 0.0
  %6940 = vmatpush1.msra.mxu0 0.0
  %6941 = vmatprep.subr.mxu0 0.0
  %6942 = vmatpush1.msra.mxu0 0.0
  %6943 = vmatprep.subr.mxu0 0.0
  %6944 = vmatpush1.msra.mxu0 0.0
  %6945 = vmatprep.subr.mxu0 0.0
  %6946 = vmatpush1.msra.mxu0 0.0
  %6947 = vmatprep.subr.mxu0 0.0
  %6948 = vmatpush1.msra.mxu0 0.0
  %6949 = vmatprep.subr.mxu0 0.0
  %6950 = vmatpush1.msra.mxu0 0.0
  %6951 = vmatprep.subr.mxu0 0.0
  %6952 = vmatpush1.msra.mxu0 0.0
  %6953 = vmatprep.subr.mxu0 0.0
  %6954 = vmatpush1.msra.mxu0 0.0
  %6955 = vmatprep.subr.mxu0 0.0
  %6956 = vmatpush1.msra.mxu0 0.0
  %6957 = vmatprep.subr.mxu0 0.0
  %6958 = vmatpush1.msra.mxu0 0.0
  %6959 = vmatprep.subr.mxu0 0.0
  %6960 = vmatpush1.msra.mxu0 0.0
  %6961 = vmatprep.subr.mxu0 0.0
  %6962 = vmatpush1.msra.mxu0 0.0
  %6963 = vmatprep.subr.mxu0 0.0
  %6964 = vmatpush1.msra.mxu0 0.0
  %6965 = vmatprep.subr.mxu0 0.0
  %6966 = vmatpush1.msra.mxu0 0.0
  %6967 = vmatprep.subr.mxu0 0.0
  %6968 = vmatpush1.msra.mxu0 0.0
  %6969 = vmatprep.subr.mxu0 0.0
  %6970 = vmatpush1.msra.mxu0 0.0
  %6971 = vmatprep.mubr.f32.mxu0 0.0
  %6972 = vmatmul.mubr.f32.gmra.mrb[0].mxu0 %v6905
  %v6973 = vpop.f32.mrb[0].mxu0
  %v6974 = vadd.f32 %v6902, %v6973
  %v6975 = vpop.f32.mrb[0].mxu0
  %6976 = vdwg.mxu0
  %v6977 = vtanh.pop %v6974
  %6978 = vst [vmem:[%s20] sm:$0xff] %v6977
  // Predicated region
  $region78: #{multi_decoder_forward.1} parent=0 // pred_check
    _
  $region79: #{multi_decoder_forward.1} parent=0 // pred_check_branch
    %6980 = sbr.rel (0) target = $region81
  $region80: #{multi_decoder_forward.1} parent=0 // pred_region
    _
  $region81: #{multi_decoder_forward.1} parent=0 // pred_fallthru
    _
  // Predicated region
  $region82: #{multi_decoder_forward.1} parent=0 // pred_check
    _
  $region83: #{multi_decoder_forward.1} parent=0 // pred_check_branch
    %6982 = sbr.rel (0) target = $region85
  $region84: #{multi_decoder_forward.1} parent=0 // pred_region
    _
  $region85: #{multi_decoder_forward.1} parent=0 // pred_fallthru
    _
  // Predicated region
  $region86: #{multi_decoder_forward.1} parent=0 // pred_check
    _
  $region87: #{multi_decoder_forward.1} parent=0 // pred_check_branch
    %6984 = sbr.rel (0) target = $region89
  $region88: #{multi_decoder_forward.1} parent=0 // pred_region
    _
  $region89: #{multi_decoder_forward.1} parent=0 // pred_fallthru
    _
  // Predicated region
  $region90: #{multi_decoder_forward.1} parent=0 // pred_check
    _
  $region91: #{multi_decoder_forward.1} parent=0 // pred_check_branch
    %6986 = sbr.rel (0) target = $region93
  $region92: #{multi_decoder_forward.1} parent=0 // pred_region
    _
  $region93: #{multi_decoder_forward.1} parent=0 // pred_fallthru
    _

</llo_original>
